<compile_context>
chip_gen: v7x
topology: tpu7x:2x2x1
jax: 0.10.0
libtpu: 0.0.40
codegen_flags: <defaults>
</compile_context>

<pallas_src>
import functools
import jax
import jax.numpy as jnp
from jax.experimental import pallas as pl
from jax.experimental.pallas import tpu as pltpu

MULTIRES = 10   # num_freqs in the Embedder (log-sampled 2^0 .. 2^9)
LANE = 128


def _round_up(n, m):
    return ((n + m - 1) // m) * m


def pos_embed(p):
    """Embedder.embed: [p, sin(p*2^0), cos(p*2^0), ..., sin(p*2^9), cos(p*2^9)]."""
    feats = [p]
    for i in range(MULTIRES):
        f = float(2.0 ** i)
        feats.append(jnp.sin(p * f))
        feats.append(jnp.cos(p * f))
    return jnp.concatenate(feats, axis=-1)


def motion_mlp_kernel(x_ref, p_ref, w1_ref, b1_ref, g_ref, be_ref,
                      w2_ref, b2_ref, o_ref, *, identity):
    x = x_ref[...]                                   # (tm, f_dim)
    p = p_ref[...]                                   # (tm, c_dim)

    # Fused positional embedding + concat, assembled in VMEM.  Zero columns
    # pad K up to the lane-aligned width of w1 (mathematically a no-op).
    feats = [x, p]
    for i in range(MULTIRES):
        ang = p * float(2.0 ** i)
        feats.append(jnp.sin(ang))                   # EUP slot
        feats.append(jnp.cos(ang))
    d_used = x.shape[-1] + p.shape[-1] * (1 + 2 * MULTIRES)
    d_pad = w1_ref.shape[0]
    if d_pad > d_used:
        feats.append(jnp.zeros((x.shape[0], d_pad - d_used), x.dtype))
    xc = jnp.concatenate(feats, axis=-1)             # (tm, d_pad), 128-lane K

    # Linear(f_dim + embed_dim, 2*f_dim)
    h = jnp.dot(xc, w1_ref[...], preferred_element_type=jnp.float32) + b1_ref[...]

    # LayerNorm(2*f_dim), eps=1e-5, biased variance (PyTorch semantics),
    # one-pass variance so the two cross-lane reductions issue back-to-back.
    mean = jnp.mean(h, axis=-1, keepdims=True)
    var = jnp.mean(h * h, axis=-1, keepdims=True) - mean * mean
    h = (h - mean) * jax.lax.rsqrt(var + 1e-5)
    h = h * g_ref[...] + be_ref[...]

    # ReLU
    h = jnp.maximum(h, 0.0)

    # Linear(2*f_dim, f_dim)
    out = jnp.dot(h, w2_ref[...], preferred_element_type=jnp.float32) + b2_ref[...]
    if identity:
        out = out + x
    o_ref[...] = out.astype(o_ref.dtype)


def motion_mlp(x, pose_info, params, *, identity=True, tm=256):
    """x: (..., f_dim), pose_info: (..., c_dim). Leading dims are flattened."""
    orig_shape = x.shape
    f_dim = x.shape[-1]
    c_dim = pose_info.shape[-1]
    x2 = x.reshape(-1, f_dim)
    p2 = pose_info.reshape(-1, c_dim)
    N = x2.shape[0]

    # Row tile: large by default, shrunk for small inputs; pad N to a multiple.
    tm_eff = min(tm, _round_up(N, 8))
    N_pad = _round_up(N, tm_eff)
    if N_pad != N:
        x2 = jnp.pad(x2, ((0, N_pad - N), (0, 0)))
        p2 = jnp.pad(p2, ((0, N_pad - N), (0, 0)))

    d_in = f_dim + c_dim * (1 + 2 * MULTIRES)
    d_pad = _round_up(d_in, LANE)
    h_dim = params["w1"].shape[-1]
    w1 = jnp.pad(params["w1"], ((0, d_pad - d_in), (0, 0)))  # zero rows: free

    kernel = functools.partial(motion_mlp_kernel, identity=identity)
    full2d = lambda shape: pl.BlockSpec(shape, lambda i: (0, 0))

    out = pl.pallas_call(
        kernel,
        out_shape=jax.ShapeDtypeStruct((N_pad, f_dim), x.dtype),
        grid_spec=pltpu.PrefetchScalarGridSpec(
            num_scalar_prefetch=0,
            grid=(N_pad // tm_eff,),
            in_specs=[
                pl.BlockSpec((tm_eff, f_dim), lambda i: (i, 0)),  # x tile
                pl.BlockSpec((tm_eff, c_dim), lambda i: (i, 0)),  # pose tile
                full2d((d_pad, h_dim)),                           # w1 (padded K)
                full2d((1, h_dim)),                               # b1
                full2d((1, h_dim)),                               # ln gamma
                full2d((1, h_dim)),                               # ln beta
                full2d((h_dim, f_dim)),                           # w2
                full2d((1, f_dim)),                               # b2
            ],
            out_specs=pl.BlockSpec((tm_eff, f_dim), lambda i: (i, 0)),
        ),
        compiler_params=pltpu.CompilerParams(
            dimension_semantics=("parallel",)),
    )(x2, p2, w1, params["b1"], params["gamma"], params["beta"],
      params["w2"], params["b2"])
    return out[:N].reshape(orig_shape)


def init_params(key, c_dim, f_dim):
    """Deterministic synthetic init matching MotionMLP.__init__ shapes.

    Linear weights: xavier_uniform (as in init_weights); biases: PyTorch-default
    uniform(-1/sqrt(fan_in), 1/sqrt(fan_in)); LayerNorm: gamma=1, beta=0.
    Stored in (in, out) layout so the kernel does x @ W.
    """
    embed_dim = c_dim * (1 + 2 * MULTIRES)
    d_in = f_dim + embed_dim
    h_dim = 2 * f_dim
    k1, k2, k3, k4 = jax.random.split(key, 4)

    def xavier(k, fan_in, fan_out):
        bound = (6.0 / (fan_in + fan_out)) ** 0.5
        return jax.random.uniform(k, (fan_in, fan_out), jnp.float32, -bound, bound)

    def bias(k, fan_in, fan_out):
        bound = 1.0 / (fan_in ** 0.5)
        return jax.random.uniform(k, (1, fan_out), jnp.float32, -bound, bound)

    return {
        "w1": xavier(k1, d_in, h_dim),
        "b1": bias(k2, d_in, h_dim),
        "gamma": jnp.ones((1, h_dim), jnp.float32),
        "beta": jnp.zeros((1, h_dim), jnp.float32),
        "w2": xavier(k3, h_dim, f_dim),
        "b2": bias(k4, h_dim, f_dim),
    }


def motion_mlp_ref(x, pose_info, params, identity=True):
    """Pure-JAX reference for sanity checking."""
    xc = jnp.concatenate([x, pos_embed(pose_info)], axis=-1)
    h = xc @ params["w1"] + params["b1"]
    mean = jnp.mean(h, axis=-1, keepdims=True)
    var = jnp.mean((h - mean) ** 2, axis=-1, keepdims=True)
    h = (h - mean) * jax.lax.rsqrt(var + 1e-5) * params["gamma"] + params["beta"]
    h = jnp.maximum(h, 0.0)
    out = h @ params["w2"] + params["b2"]
    return out + x if identity else out


if __name__ == "__main__":
    c_dim, f_dim = 4, 32
    B, S = 2, 8  # small demo: 16 tokens

    key = jax.random.PRNGKey(0)
    kx, kp, kw = jax.random.split(key, 3)
    x = jax.random.normal(kx, (B, S, f_dim), jnp.float32)
    pose_info = jax.random.normal(kp, (B, S, c_dim), jnp.float32)
    params = init_params(kw, c_dim, f_dim)

    out = motion_mlp(x, pose_info, params, identity=True)
    out = jax.block_until_ready(out)

    ref = motion_mlp_ref(x, pose_info, params, identity=True)
    assert out.shape == (B, S, f_dim)
    assert jnp.allclose(out, ref, atol=1e-4, rtol=1e-4)
    print("KERNEL_OK")
</pallas_src>

<mosaic_0001>
module attributes {stable_mosaic.version = 11 : i64} {
  func.func @motion_mlp_kernel(%arg0: i32, %arg1: memref<16x32xf32, #tpu.memory_space<vmem>>, %arg2: memref<16x4xf32, #tpu.memory_space<vmem>>, %arg3: memref<128x64xf32, #tpu.memory_space<vmem>>, %arg4: memref<1x64xf32, #tpu.memory_space<vmem>>, %arg5: memref<1x64xf32, #tpu.memory_space<vmem>>, %arg6: memref<1x64xf32, #tpu.memory_space<vmem>>, %arg7: memref<64x32xf32, #tpu.memory_space<vmem>>, %arg8: memref<1x32xf32, #tpu.memory_space<vmem>>, %arg9: memref<16x32xf32, #tpu.memory_space<vmem>>) attributes {dimension_semantics = [#tpu.dimension_semantics<parallel>], iteration_bounds = array<i64: 1>, scalar_prefetch = 0 : i64, scratch_operands = 0 : i64, tpu.core_type = #tpu.core_type<tc>, window_params = [{transform_indices = @transform_0, window_bounds = array<i64: 16, 32>}, {transform_indices = @transform_1, window_bounds = array<i64: 16, 4>}, {pipeline_mode = #tpu.pipeline_mode<synchronous>, transform_indices = @transform_2, window_bounds = array<i64: 128, 64>}, {pipeline_mode = #tpu.pipeline_mode<synchronous>, transform_indices = @transform_3, window_bounds = array<i64: 1, 64>}, {pipeline_mode = #tpu.pipeline_mode<synchronous>, transform_indices = @transform_4, window_bounds = array<i64: 1, 64>}, {pipeline_mode = #tpu.pipeline_mode<synchronous>, transform_indices = @transform_5, window_bounds = array<i64: 1, 64>}, {pipeline_mode = #tpu.pipeline_mode<synchronous>, transform_indices = @transform_6, window_bounds = array<i64: 64, 32>}, {pipeline_mode = #tpu.pipeline_mode<synchronous>, transform_indices = @transform_7, window_bounds = array<i64: 1, 32>}, {transform_indices = @transform_8, window_bounds = array<i64: 16, 32>}]} {
    %c0 = arith.constant 0 : index
    %c0_0 = arith.constant 0 : index
    %0 = vector.load %arg1[%c0, %c0_0] : memref<16x32xf32, #tpu.memory_space<vmem>>, vector<16x32xf32>
    %c0_1 = arith.constant 0 : index
    %c0_2 = arith.constant 0 : index
    %1 = vector.load %arg2[%c0_1, %c0_2] : memref<16x4xf32, #tpu.memory_space<vmem>>, vector<16x4xf32>
    %cst = arith.constant 1.000000e+00 : f32
    %2 = vector.broadcast %cst : f32 to vector<16x4xf32>
    %3 = arith.mulf %1, %2 : vector<16x4xf32>
    %4 = math.sin %3 : vector<16x4xf32>
    %5 = math.cos %3 : vector<16x4xf32>
    %cst_3 = arith.constant 2.000000e+00 : f32
    %6 = vector.broadcast %cst_3 : f32 to vector<16x4xf32>
    %7 = arith.mulf %1, %6 : vector<16x4xf32>
    %8 = math.sin %7 : vector<16x4xf32>
    %9 = math.cos %7 : vector<16x4xf32>
    %cst_4 = arith.constant 4.000000e+00 : f32
    %10 = vector.broadcast %cst_4 : f32 to vector<16x4xf32>
    %11 = arith.mulf %1, %10 : vector<16x4xf32>
    %12 = math.sin %11 : vector<16x4xf32>
    %13 = math.cos %11 : vector<16x4xf32>
    %cst_5 = arith.constant 8.000000e+00 : f32
    %14 = vector.broadcast %cst_5 : f32 to vector<16x4xf32>
    %15 = arith.mulf %1, %14 : vector<16x4xf32>
    %16 = math.sin %15 : vector<16x4xf32>
    %17 = math.cos %15 : vector<16x4xf32>
    %cst_6 = arith.constant 1.600000e+01 : f32
    %18 = vector.broadcast %cst_6 : f32 to vector<16x4xf32>
    %19 = arith.mulf %1, %18 : vector<16x4xf32>
    %20 = math.sin %19 : vector<16x4xf32>
    %21 = math.cos %19 : vector<16x4xf32>
    %cst_7 = arith.constant 3.200000e+01 : f32
    %22 = vector.broadcast %cst_7 : f32 to vector<16x4xf32>
    %23 = arith.mulf %1, %22 : vector<16x4xf32>
    %24 = math.sin %23 : vector<16x4xf32>
    %25 = math.cos %23 : vector<16x4xf32>
    %cst_8 = arith.constant 6.400000e+01 : f32
    %26 = vector.broadcast %cst_8 : f32 to vector<16x4xf32>
    %27 = arith.mulf %1, %26 : vector<16x4xf32>
    %28 = math.sin %27 : vector<16x4xf32>
    %29 = math.cos %27 : vector<16x4xf32>
    %cst_9 = arith.constant 1.280000e+02 : f32
    %30 = vector.broadcast %cst_9 : f32 to vector<16x4xf32>
    %31 = arith.mulf %1, %30 : vector<16x4xf32>
    %32 = math.sin %31 : vector<16x4xf32>
    %33 = math.cos %31 : vector<16x4xf32>
    %cst_10 = arith.constant 2.560000e+02 : f32
    %34 = vector.broadcast %cst_10 : f32 to vector<16x4xf32>
    %35 = arith.mulf %1, %34 : vector<16x4xf32>
    %36 = math.sin %35 : vector<16x4xf32>
    %37 = math.cos %35 : vector<16x4xf32>
    %cst_11 = arith.constant 5.120000e+02 : f32
    %38 = vector.broadcast %cst_11 : f32 to vector<16x4xf32>
    %39 = arith.mulf %1, %38 : vector<16x4xf32>
    %40 = math.sin %39 : vector<16x4xf32>
    %41 = math.cos %39 : vector<16x4xf32>
    %cst_12 = arith.constant 0.000000e+00 : f32
    %42 = vector.broadcast %cst_12 : f32 to vector<16x12xf32>
    %43 = tpu.concatenate %0, %1, %4, %5, %8, %9, %12, %13, %16, %17, %20, %21, %24, %25, %28, %29 in 1 : vector<16x32xf32>, vector<16x4xf32>, vector<16x4xf32>, vector<16x4xf32>, vector<16x4xf32>, vector<16x4xf32>, vector<16x4xf32>, vector<16x4xf32>, vector<16x4xf32>, vector<16x4xf32>, vector<16x4xf32>, vector<16x4xf32>, vector<16x4xf32>, vector<16x4xf32>, vector<16x4xf32>, vector<16x4xf32> -> vector<16x92xf32>
    %44 = tpu.concatenate %32, %33, %36, %37, %40, %41, %42 in 1 : vector<16x4xf32>, vector<16x4xf32>, vector<16x4xf32>, vector<16x4xf32>, vector<16x4xf32>, vector<16x4xf32>, vector<16x12xf32> -> vector<16x36xf32>
    %45 = tpu.concatenate %43, %44 in 1 : vector<16x92xf32>, vector<16x36xf32> -> vector<16x128xf32>
    %c0_13 = arith.constant 0 : index
    %c0_14 = arith.constant 0 : index
    %46 = vector.load %arg3[%c0_13, %c0_14] : memref<128x64xf32, #tpu.memory_space<vmem>>, vector<128x64xf32>
    %cst_15 = arith.constant dense<0.000000e+00> : vector<16x64xf32>
    %47 = tpu.matmul %45, %46, %cst_15 {dimension_numbers = #tpu.dot_dimension_numbers<[1], [0], [0], [1], [0, 0, 1, 1], [], []>} : vector<16x128xf32>, vector<128x64xf32>, vector<16x64xf32> -> vector<16x64xf32>
    %c0_16 = arith.constant 0 : index
    %c0_17 = arith.constant 0 : index
    %48 = vector.load %arg4[%c0_16, %c0_17] : memref<1x64xf32, #tpu.memory_space<vmem>>, vector<1x64xf32>
    %49 = vector.broadcast %48 : vector<1x64xf32> to vector<16x64xf32>
    %50 = arith.addf %47, %49 : vector<16x64xf32>
    %cst_18 = arith.constant dense<0.000000e+00> : vector<16xf32>
    %51 = vector.multi_reduction <add>, %50, %cst_18 [1] : vector<16x64xf32> to vector<16xf32>
    %52 = vector.shape_cast %51 : vector<16xf32> to vector<16x1xf32>
    %cst_19 = arith.constant 6.400000e+01 : f32
    %53 = vector.broadcast %cst_19 : f32 to vector<16x1xf32>
    %54 = arith.divf %52, %53 : vector<16x1xf32>
    %55 = arith.mulf %50, %50 : vector<16x64xf32>
    %cst_20 = arith.constant dense<0.000000e+00> : vector<16xf32>
    %56 = vector.multi_reduction <add>, %55, %cst_20 [1] : vector<16x64xf32> to vector<16xf32>
    %57 = vector.shape_cast %56 : vector<16xf32> to vector<16x1xf32>
    %cst_21 = arith.constant 6.400000e+01 : f32
    %58 = vector.broadcast %cst_21 : f32 to vector<16x1xf32>
    %59 = arith.divf %57, %58 : vector<16x1xf32>
    %60 = arith.mulf %54, %54 : vector<16x1xf32>
    %61 = arith.subf %59, %60 : vector<16x1xf32>
    %62 = vector.broadcast %54 : vector<16x1xf32> to vector<16x64xf32>
    %63 = arith.subf %50, %62 : vector<16x64xf32>
    %cst_22 = arith.constant 9.99999974E-6 : f32
    %64 = vector.broadcast %cst_22 : f32 to vector<16x1xf32>
    %65 = arith.addf %61, %64 : vector<16x1xf32>
    %66 = math.rsqrt %65 : vector<16x1xf32>
    %67 = vector.broadcast %66 : vector<16x1xf32> to vector<16x64xf32>
    %68 = arith.mulf %63, %67 : vector<16x64xf32>
    %c0_23 = arith.constant 0 : index
    %c0_24 = arith.constant 0 : index
    %69 = vector.load %arg5[%c0_23, %c0_24] : memref<1x64xf32, #tpu.memory_space<vmem>>, vector<1x64xf32>
    %70 = vector.broadcast %69 : vector<1x64xf32> to vector<16x64xf32>
    %71 = arith.mulf %68, %70 : vector<16x64xf32>
    %c0_25 = arith.constant 0 : index
    %c0_26 = arith.constant 0 : index
    %72 = vector.load %arg6[%c0_25, %c0_26] : memref<1x64xf32, #tpu.memory_space<vmem>>, vector<1x64xf32>
    %73 = vector.broadcast %72 : vector<1x64xf32> to vector<16x64xf32>
    %74 = arith.addf %71, %73 : vector<16x64xf32>
    %cst_27 = arith.constant 0.000000e+00 : f32
    %75 = vector.broadcast %cst_27 : f32 to vector<16x64xf32>
    %76 = arith.maximumf %74, %75 : vector<16x64xf32>
    %c0_28 = arith.constant 0 : index
    %c0_29 = arith.constant 0 : index
    %77 = vector.load %arg7[%c0_28, %c0_29] : memref<64x32xf32, #tpu.memory_space<vmem>>, vector<64x32xf32>
    %cst_30 = arith.constant dense<0.000000e+00> : vector<16x32xf32>
    %78 = tpu.matmul %76, %77, %cst_30 {dimension_numbers = #tpu.dot_dimension_numbers<[1], [0], [0], [1], [0, 0, 1, 1], [], []>} : vector<16x64xf32>, vector<64x32xf32>, vector<16x32xf32> -> vector<16x32xf32>
    %c0_31 = arith.constant 0 : index
    %c0_32 = arith.constant 0 : index
    %79 = vector.load %arg8[%c0_31, %c0_32] : memref<1x32xf32, #tpu.memory_space<vmem>>, vector<1x32xf32>
    %80 = vector.broadcast %79 : vector<1x32xf32> to vector<16x32xf32>
    %81 = arith.addf %78, %80 : vector<16x32xf32>
    %82 = arith.addf %81, %0 : vector<16x32xf32>
    %c0_33 = arith.constant 0 : index
    %c0_34 = arith.constant 0 : index
    %83 = vector.load %arg9[%c0_33, %c0_34] : memref<16x32xf32, #tpu.memory_space<vmem>>, vector<16x32xf32>
    tpu.vector_store %arg9[%c0_33, %c0_34], %82 {strides = array<i32>} : memref<16x32xf32, #tpu.memory_space<vmem>>, vector<16x32xf32>,
    return
  }
  func.func @transform_0(%arg0: i32) -> (i32, i32) {
    %c0_i32 = arith.constant 0 : i32
    %c0_i32_0 = arith.constant 0 : i32
    return %arg0, %c0_i32 : i32, i32
  }
  func.func @transform_1(%arg0: i32) -> (i32, i32) {
    %c0_i32 = arith.constant 0 : i32
    %c0_i32_0 = arith.constant 0 : i32
    return %arg0, %c0_i32 : i32, i32
  }
  func.func @transform_2(%arg0: i32) -> (i32, i32) {
    %c0_i32 = arith.constant 0 : i32
    %c0_i32_0 = arith.constant 0 : i32
    %c0_i32_1 = arith.constant 0 : i32
    return %c0_i32, %c0_i32_0 : i32, i32
  }
  func.func @transform_3(%arg0: i32) -> (i32, i32) {
    %c0_i32 = arith.constant 0 : i32
    %c0_i32_0 = arith.constant 0 : i32
    %c0_i32_1 = arith.constant 0 : i32
    return %c0_i32, %c0_i32_0 : i32, i32
  }
  func.func @transform_4(%arg0: i32) -> (i32, i32) {
    %c0_i32 = arith.constant 0 : i32
    %c0_i32_0 = arith.constant 0 : i32
    %c0_i32_1 = arith.constant 0 : i32
    return %c0_i32, %c0_i32_0 : i32, i32
  }
  func.func @transform_5(%arg0: i32) -> (i32, i32) {
    %c0_i32 = arith.constant 0 : i32
    %c0_i32_0 = arith.constant 0 : i32
    %c0_i32_1 = arith.constant 0 : i32
    return %c0_i32, %c0_i32_0 : i32, i32
  }
  func.func @transform_6(%arg0: i32) -> (i32, i32) {
    %c0_i32 = arith.constant 0 : i32
    %c0_i32_0 = arith.constant 0 : i32
    %c0_i32_1 = arith.constant 0 : i32
    return %c0_i32, %c0_i32_0 : i32, i32
  }
  func.func @transform_7(%arg0: i32) -> (i32, i32) {
    %c0_i32 = arith.constant 0 : i32
    %c0_i32_0 = arith.constant 0 : i32
    %c0_i32_1 = arith.constant 0 : i32
    return %c0_i32, %c0_i32_0 : i32, i32
  }
  func.func @transform_8(%arg0: i32) -> (i32, i32) {
    %c0_i32 = arith.constant 0 : i32
    %c0_i32_0 = arith.constant 0 : i32
    return %arg0, %c0_i32 : i32, i32
  }
}

</mosaic_0001>

<llo_original>
// kernel: tpu_custom_call.1
$region0: #{tpu_custom_call.1}
  #allocation0 [shape = 'u32[]', space=smem, size = 0x4, offset = 0x4, fixed_abs, tag = 'smem constant byte address 0x4 - core index']
  #allocation1 [shape = 'u32[144,128]{1,0:T(1,128)}', space=vmem, size = 0x12000, scoped, tag = 'internal scratch']
  %s0 = inlined_call_operand.vmem [shape: f32[16,32], index: 0, kind: input, shape index: {}]
  %s1 = inlined_call_operand.vmem [shape: f32[16,4], index: 1, kind: input, shape index: {}]
  %s2 = inlined_call_operand.vmem [shape: f32[128,64], index: 2, kind: input, shape index: {}]
  %s3 = inlined_call_operand.vmem [shape: f32[1,64], index: 3, kind: input, shape index: {}]
  %s4 = inlined_call_operand.vmem [shape: f32[1,64], index: 4, kind: input, shape index: {}]
  %s5 = inlined_call_operand.vmem [shape: f32[1,64], index: 5, kind: input, shape index: {}]
  %s6 = inlined_call_operand.vmem [shape: f32[64,32], index: 6, kind: input, shape index: {}]
  %s7 = inlined_call_operand.vmem [shape: f32[1,32], index: 7, kind: input, shape index: {}]
  %s8 = inlined_call_operand.hbm [shape: f32[16,32], index: 8, kind: output, shape index: {}]
  %s9 = sld [smem:[#allocation0]]
  $region42: #{tpu_custom_call.1} parent=0
    _
  %s11 = ssub.s32 1, %s9
  %s12 = scalar_select 0, %s11, %s9
  $region1: #{tpu_custom_call.1} parent=0
    #allocation2 [shape = 'u8[8192]{0}', space=vmem, size = 0x2000, scoped, tag = 'output window, operand 0, single buffered']
    #allocation3 [shape = 's32[1]{0}', space=sflag, size = 0x4, scoped, tag = 'scoped memory for tpu_custom_call.1']
    %13 = vsyncpa [#allocation3], 0
    // Predicated region
    $region2: #{tpu_custom_call.1} parent=1 // pred_check
      _
    $region3: #{tpu_custom_call.1} parent=1 // pred_check_branch
      %15 = sbr.rel (0) target = $region5
    $region4: #{tpu_custom_call.1} parent=1 // pred_region
      _
    $region5: #{tpu_custom_call.1} parent=1 // pred_fallthru
      _
    // Predicated region
    $region6: #{tpu_custom_call.1} parent=1 // pred_check
      _
    $region7: #{tpu_custom_call.1} parent=1 // pred_check_branch
      %17 = sbr.rel (0) target = $region9
    $region8: #{tpu_custom_call.1} parent=1 // pred_region
      _
    $region9: #{tpu_custom_call.1} parent=1 // pred_fallthru
      _
    // Predicated region
    $region10: #{tpu_custom_call.1} parent=1 // pred_check
      _
    $region11: #{tpu_custom_call.1} parent=1 // pred_check_branch
      %19 = sbr.rel (0) target = $region13
    $region12: #{tpu_custom_call.1} parent=1 // pred_region
      _
    $region13: #{tpu_custom_call.1} parent=1 // pred_fallthru
      _
    // Predicated region
    $region14: #{tpu_custom_call.1} parent=1 // pred_check
      _
    $region15: #{tpu_custom_call.1} parent=1 // pred_check_branch
      %21 = sbr.rel (0) target = $region17
    $region16: #{tpu_custom_call.1} parent=1 // pred_region
      _
    $region17: #{tpu_custom_call.1} parent=1 // pred_fallthru
      _
    // Predicated region
    $region18: #{tpu_custom_call.1} parent=1 // pred_check
      _
    $region19: #{tpu_custom_call.1} parent=1 // pred_check_branch
      %23 = sbr.rel (0) target = $region21
    $region20: #{tpu_custom_call.1} parent=1 // pred_region
      _
    $region21: #{tpu_custom_call.1} parent=1 // pred_fallthru
      _
    // Predicated region
    $region22: #{tpu_custom_call.1} parent=1 // pred_check
      _
    $region23: #{tpu_custom_call.1} parent=1 // pred_check_branch
      %25 = sbr.rel (0) target = $region25
    $region24: #{tpu_custom_call.1} parent=1 // pred_region
      _
    $region25: #{tpu_custom_call.1} parent=1 // pred_fallthru
      _
    // Predicated region
    $region26: #{tpu_custom_call.1} parent=1 // pred_check
      _
    $region27: #{tpu_custom_call.1} parent=1 // pred_check_branch
      %27 = sbr.rel (0) target = $region29
    $region28: #{tpu_custom_call.1} parent=1 // pred_region
      _
    $region29: #{tpu_custom_call.1} parent=1 // pred_fallthru
      _
    // Predicated region
    $region30: #{tpu_custom_call.1} parent=1 // pred_check
      _
    $region31: #{tpu_custom_call.1} parent=1 // pred_check_branch
      %29 = sbr.rel (0) target = $region33
    $region32: #{tpu_custom_call.1} parent=1 // pred_region
      _
    $region33: #{tpu_custom_call.1} parent=1 // pred_fallthru
      _
    %v30 = vld [vmem:[%s0] sm:$0xff]
    %v31 = vld [vmem:[%s0 + $0x8] sm:$0xff]
    %v32 = vld [vmem:[%s1] sm:$0xff]
    %v33 = vld [vmem:[%s1 + $0x8] sm:$0xff]
    %v34 = vand.u32 2147483647, %v32
    %vm35 = vcmp.le.f32.partialorder %v34, 0.7853982
    %vm36 = vcmp.lt.s32.totalorder %v32, 0
    %v37 = vand.u32 %v32, 2139095040
    %v38 = vshrl.u32 %v37, 23
    %v39 = vsub.s32 %v38, 127
    %v40 = vand.u32 2147483647, %v32
    %v41 = vand.u32 %v40, 8388607
    %v42 = vor.u32 %v41, 8388608
    %v43 = vsub.s32 0, %v42
    %v44 = vadd.s32 %v39, 1
    %vm45 = vcmp.gt.s32.totalorder %v44, 0
    %v46 = vsel %vm45, %v44, 0
    %v47 = vshrl.u32 %v46, 5
    %v48 = vand.u32 %v46, 31
    %v49 = vsub.s32 32, %v48
    %v50 = vshrl.u32 683565275, %v49
    %v51 = vshll.u32 683565275, %v48
    %v52 = vshrl.u32 2475754826, %v49
    %v53 = vor.u32 %v51, %v52
    %v54 = vshll.u32 2475754826, %v48
    %v55 = vshrl.u32 2131351028, %v49
    %v56 = vor.u32 %v54, %v55
    %v57 = vshll.u32 2131351028, %v48
    %v58 = vshrl.u32 2102212464, %v49
    %v59 = vor.u32 %v57, %v58
    %v60 = vshll.u32 2102212464, %v48
    %v61 = vshrl.u32 920167782, %v49
    %v62 = vor.u32 %v60, %v61
    %v63 = vshll.u32 920167782, %v48
    %v64 = vshrl.u32 1326507024, %v49
    %v65 = vor.u32 %v63, %v64
    %vm66 = vcmp.lt.s32.totalorder %v47, 1
    %vm67 = vcmp.lt.s32.totalorder %v47, 2
    %vm68 = vcmp.lt.s32.totalorder %v47, 3
    %vm69 = vcmp.lt.s32.totalorder %v47, 4
    %v70 = vsel %vm66, %v50, %v53
    %v71 = vsel %vm69, %v59, 2102212464
    %v72 = vsel %vm68, %v56, %v71
    %v73 = vsel %vm67, %v70, %v72
    %v74 = vsel %vm66, %v53, %v56
    %v75 = vsel %vm69, %v62, 920167782
    %v76 = vsel %vm68, %v59, %v75
    %v77 = vsel %vm67, %v74, %v76
    %v78 = vsel %vm66, %v56, %v59
    %v79 = vsel %vm69, %v65, 1326507024
    %v80 = vsel %vm68, %v62, %v79
    %v81 = vsel %vm67, %v78, %v80
    %v82 = vshll.u32 %v42, 8
    %v83 = vmul.u32.u64.compose %v82, %v81
    %v84 = vextract.low.u32 %v83
    %v85 = vextract.high.u32 %v83
    %v86 = vmul.u32.u64.compose %v82, %v77
    %v87 = vextract.low.u32 %v86
    %v88 = vextract.high.u32 %v86
    %v89 = vmul.u32 %v82, %v73
    %v90 = vadd.s32 %v85, %v87
    %vm91 = vc.u32 %v85, %v87
    %v92 = vadd.s32 %v88, 1
    %v93 = vsel %vm91, %v92, %v88
    %v94 = vadd.s32 %v89, %v93
    %v95 = vadd.s32 %v94, 536870912
    %v96 = vshrl.u32 %v95, 30
    %v97 = vshll.u32 %v96, 30
    %v98 = vsub.s32 %v94, %v97
    %vm99 = vcmp.lt.s32.totalorder %v98, 0
    %v100 = vsub.s32 0, %v98
    %v101 = vsel %vm99, %v100, %v98
    %v102 = vclz %v101
    %v103 = vsub.s32 %v102, 2
    %vm104 = vcmp.gt.s32.totalorder 0, %v103
    %v105 = vsel %vm104, 0, %v103
    %v106 = vsub.s32 32, %v105
    %v107 = vshll.u32 %v98, %v105
    %v108 = vshrl.u32 %v90, %v106
    %v109 = vor.u32 %v107, %v108
    %v110 = vsub.s32 4294967266, %v105
    %v111 = vadd.s32 %v110, 127
    %v112 = vshll.u32 %v111, 23
    %v113 = vor.u32 4788187, %v112
    %v114 = vand.u32 2147483647, %v113
    %v116 = vcvt.s32.f32 %v109
    %v117 = vmul.f32 %v116, %v114
    %v118 = vxor.u32 %v117, 2147483648
    %v119 = vsel %vm36, %v118, %v117
    %v120 = vsub.s32 4, %v96
    %v121 = vsel %vm36, %v120, %v96
    %v122 = vsel %vm35, %v32, %v119
    %v123 = vsel %vm35, 0, %v121
    %v124 = vcosq.f32.pop %v122
    %v125 = vsinq.f32.pop %v122
    %vm126 = vweird.f32 %v32
    %v127 = vadd.s32 %v123, 3
    %v128 = vand.u32 %v127, 3
    %vm129 = vcmp.lt.s32.totalorder %v128, 2
    %vm130 = vcmp.eq.s32.totalorder %v128, 0
    %v131 = vxor.u32 %v125, 2147483648
    %v132 = vsel %vm130, %v124, %v131
    %vm133 = vcmp.eq.s32.totalorder %v128, 2
    %v134 = vxor.u32 %v124, 2147483648
    %v135 = vsel %vm133, %v134, %v125
    %v136 = vsel %vm129, %v132, %v135
    %v137 = vsel %vm126, nan, %v136
    %v138 = vand.u32 2147483647, %v33
    %vm139 = vcmp.le.f32.partialorder %v138, 0.7853982
    %vm140 = vcmp.lt.s32.totalorder %v33, 0
    %v141 = vand.u32 %v33, 2139095040
    %v142 = vshrl.u32 %v141, 23
    %v143 = vsub.s32 %v142, 127
    %v144 = vand.u32 2147483647, %v33
    %v145 = vand.u32 %v144, 8388607
    %v146 = vor.u32 %v145, 8388608
    %v147 = vsub.s32 0, %v146
    %v148 = vadd.s32 %v143, 1
    %vm149 = vcmp.gt.s32.totalorder %v148, 0
    %v150 = vsel %vm149, %v148, 0
    %v151 = vshrl.u32 %v150, 5
    %v152 = vand.u32 %v150, 31
    %v153 = vsub.s32 32, %v152
    %v154 = vshrl.u32 683565275, %v153
    %v155 = vshll.u32 683565275, %v152
    %v156 = vshrl.u32 2475754826, %v153
    %v157 = vor.u32 %v155, %v156
    %v158 = vshll.u32 2475754826, %v152
    %v159 = vshrl.u32 2131351028, %v153
    %v160 = vor.u32 %v158, %v159
    %v161 = vshll.u32 2131351028, %v152
    %v162 = vshrl.u32 2102212464, %v153
    %v163 = vor.u32 %v161, %v162
    %v164 = vshll.u32 2102212464, %v152
    %v165 = vshrl.u32 920167782, %v153
    %v166 = vor.u32 %v164, %v165
    %v167 = vshll.u32 920167782, %v152
    %v168 = vshrl.u32 1326507024, %v153
    %v169 = vor.u32 %v167, %v168
    %vm170 = vcmp.lt.s32.totalorder %v151, 1
    %vm171 = vcmp.lt.s32.totalorder %v151, 2
    %vm172 = vcmp.lt.s32.totalorder %v151, 3
    %vm173 = vcmp.lt.s32.totalorder %v151, 4
    %v174 = vsel %vm170, %v154, %v157
    %v175 = vsel %vm173, %v163, 2102212464
    %v176 = vsel %vm172, %v160, %v175
    %v177 = vsel %vm171, %v174, %v176
    %v178 = vsel %vm170, %v157, %v160
    %v179 = vsel %vm173, %v166, 920167782
    %v180 = vsel %vm172, %v163, %v179
    %v181 = vsel %vm171, %v178, %v180
    %v182 = vsel %vm170, %v160, %v163
    %v183 = vsel %vm173, %v169, 1326507024
    %v184 = vsel %vm172, %v166, %v183
    %v185 = vsel %vm171, %v182, %v184
    %v186 = vshll.u32 %v146, 8
    %v187 = vmul.u32.u64.compose %v186, %v185
    %v188 = vextract.low.u32 %v187
    %v189 = vextract.high.u32 %v187
    %v190 = vmul.u32.u64.compose %v186, %v181
    %v191 = vextract.low.u32 %v190
    %v192 = vextract.high.u32 %v190
    %v193 = vmul.u32 %v186, %v177
    %v194 = vadd.s32 %v189, %v191
    %vm195 = vc.u32 %v189, %v191
    %v196 = vadd.s32 %v192, 1
    %v197 = vsel %vm195, %v196, %v192
    %v198 = vadd.s32 %v193, %v197
    %v199 = vadd.s32 %v198, 536870912
    %v200 = vshrl.u32 %v199, 30
    %v201 = vshll.u32 %v200, 30
    %v202 = vsub.s32 %v198, %v201
    %vm203 = vcmp.lt.s32.totalorder %v202, 0
    %v204 = vsub.s32 0, %v202
    %v205 = vsel %vm203, %v204, %v202
    %v206 = vclz %v205
    %v207 = vsub.s32 %v206, 2
    %vm208 = vcmp.gt.s32.totalorder 0, %v207
    %v209 = vsel %vm208, 0, %v207
    %v210 = vsub.s32 32, %v209
    %v211 = vshll.u32 %v202, %v209
    %v212 = vshrl.u32 %v194, %v210
    %v213 = vor.u32 %v211, %v212
    %v214 = vsub.s32 4294967266, %v209
    %v215 = vadd.s32 %v214, 127
    %v216 = vshll.u32 %v215, 23
    %v217 = vor.u32 4788187, %v216
    %v218 = vand.u32 2147483647, %v217
    %v220 = vcvt.s32.f32 %v213
    %v221 = vmul.f32 %v220, %v218
    %v222 = vxor.u32 %v221, 2147483648
    %v223 = vsel %vm140, %v222, %v221
    %v224 = vsub.s32 4, %v200
    %v225 = vsel %vm140, %v224, %v200
    %v226 = vsel %vm139, %v33, %v223
    %v227 = vsel %vm139, 0, %v225
    %v228 = vcosq.f32.pop %v226
    %v229 = vsinq.f32.pop %v226
    %vm230 = vweird.f32 %v33
    %v231 = vadd.s32 %v227, 3
    %v232 = vand.u32 %v231, 3
    %vm233 = vcmp.lt.s32.totalorder %v232, 2
    %vm234 = vcmp.eq.s32.totalorder %v232, 0
    %v235 = vxor.u32 %v229, 2147483648
    %v236 = vsel %vm234, %v228, %v235
    %vm237 = vcmp.eq.s32.totalorder %v232, 2
    %v238 = vxor.u32 %v228, 2147483648
    %v239 = vsel %vm237, %v238, %v229
    %v240 = vsel %vm233, %v236, %v239
    %v241 = vsel %vm230, nan, %v240
    %v242 = vand.u32 2147483647, %v32
    %vm243 = vcmp.le.f32.partialorder %v242, 0.7853982
    %vm244 = vcmp.lt.s32.totalorder %v32, 0
    %v245 = vand.u32 %v32, 2139095040
    %v246 = vshrl.u32 %v245, 23
    %v247 = vsub.s32 %v246, 127
    %v248 = vand.u32 2147483647, %v32
    %v249 = vand.u32 %v248, 8388607
    %v250 = vor.u32 %v249, 8388608
    %v251 = vsub.s32 0, %v250
    %v252 = vadd.s32 %v247, 1
    %vm253 = vcmp.gt.s32.totalorder %v252, 0
    %v254 = vsel %vm253, %v252, 0
    %v255 = vshrl.u32 %v254, 5
    %v256 = vand.u32 %v254, 31
    %v257 = vsub.s32 32, %v256
    %v258 = vshrl.u32 683565275, %v257
    %v259 = vshll.u32 683565275, %v256
    %v260 = vshrl.u32 2475754826, %v257
    %v261 = vor.u32 %v259, %v260
    %v262 = vshll.u32 2475754826, %v256
    %v263 = vshrl.u32 2131351028, %v257
    %v264 = vor.u32 %v262, %v263
    %v265 = vshll.u32 2131351028, %v256
    %v266 = vshrl.u32 2102212464, %v257
    %v267 = vor.u32 %v265, %v266
    %v268 = vshll.u32 2102212464, %v256
    %v269 = vshrl.u32 920167782, %v257
    %v270 = vor.u32 %v268, %v269
    %v271 = vshll.u32 920167782, %v256
    %v272 = vshrl.u32 1326507024, %v257
    %v273 = vor.u32 %v271, %v272
    %vm274 = vcmp.lt.s32.totalorder %v255, 1
    %vm275 = vcmp.lt.s32.totalorder %v255, 2
    %vm276 = vcmp.lt.s32.totalorder %v255, 3
    %vm277 = vcmp.lt.s32.totalorder %v255, 4
    %v278 = vsel %vm274, %v258, %v261
    %v279 = vsel %vm277, %v267, 2102212464
    %v280 = vsel %vm276, %v264, %v279
    %v281 = vsel %vm275, %v278, %v280
    %v282 = vsel %vm274, %v261, %v264
    %v283 = vsel %vm277, %v270, 920167782
    %v284 = vsel %vm276, %v267, %v283
    %v285 = vsel %vm275, %v282, %v284
    %v286 = vsel %vm274, %v264, %v267
    %v287 = vsel %vm277, %v273, 1326507024
    %v288 = vsel %vm276, %v270, %v287
    %v289 = vsel %vm275, %v286, %v288
    %v290 = vshll.u32 %v250, 8
    %v291 = vmul.u32.u64.compose %v290, %v289
    %v292 = vextract.low.u32 %v291
    %v293 = vextract.high.u32 %v291
    %v294 = vmul.u32.u64.compose %v290, %v285
    %v295 = vextract.low.u32 %v294
    %v296 = vextract.high.u32 %v294
    %v297 = vmul.u32 %v290, %v281
    %v298 = vadd.s32 %v293, %v295
    %vm299 = vc.u32 %v293, %v295
    %v300 = vadd.s32 %v296, 1
    %v301 = vsel %vm299, %v300, %v296
    %v302 = vadd.s32 %v297, %v301
    %v303 = vadd.s32 %v302, 536870912
    %v304 = vshrl.u32 %v303, 30
    %v305 = vshll.u32 %v304, 30
    %v306 = vsub.s32 %v302, %v305
    %vm307 = vcmp.lt.s32.totalorder %v306, 0
    %v308 = vsub.s32 0, %v306
    %v309 = vsel %vm307, %v308, %v306
    %v310 = vclz %v309
    %v311 = vsub.s32 %v310, 2
    %vm312 = vcmp.gt.s32.totalorder 0, %v311
    %v313 = vsel %vm312, 0, %v311
    %v314 = vsub.s32 32, %v313
    %v315 = vshll.u32 %v306, %v313
    %v316 = vshrl.u32 %v298, %v314
    %v317 = vor.u32 %v315, %v316
    %v318 = vsub.s32 4294967266, %v313
    %v319 = vadd.s32 %v318, 127
    %v320 = vshll.u32 %v319, 23
    %v321 = vor.u32 4788187, %v320
    %v322 = vand.u32 2147483647, %v321
    %v324 = vcvt.s32.f32 %v317
    %v325 = vmul.f32 %v324, %v322
    %v326 = vxor.u32 %v325, 2147483648
    %v327 = vsel %vm244, %v326, %v325
    %v328 = vsub.s32 4, %v304
    %v329 = vsel %vm244, %v328, %v304
    %v330 = vsel %vm243, %v32, %v327
    %v331 = vsel %vm243, 0, %v329
    %v332 = vcosq.f32.pop %v330
    %v333 = vsinq.f32.pop %v330
    %vm334 = vweird.f32 %v32
    %v335 = vand.u32 %v331, 3
    %vm336 = vcmp.lt.s32.totalorder %v335, 2
    %vm337 = vcmp.eq.s32.totalorder %v335, 0
    %v338 = vxor.u32 %v333, 2147483648
    %v339 = vsel %vm337, %v332, %v338
    %vm340 = vcmp.eq.s32.totalorder %v335, 2
    %v341 = vxor.u32 %v332, 2147483648
    %v342 = vsel %vm340, %v341, %v333
    %v343 = vsel %vm336, %v339, %v342
    %v344 = vsel %vm334, nan, %v343
    %v345 = vand.u32 2147483647, %v33
    %vm346 = vcmp.le.f32.partialorder %v345, 0.7853982
    %vm347 = vcmp.lt.s32.totalorder %v33, 0
    %v348 = vand.u32 %v33, 2139095040
    %v349 = vshrl.u32 %v348, 23
    %v350 = vsub.s32 %v349, 127
    %v351 = vand.u32 2147483647, %v33
    %v352 = vand.u32 %v351, 8388607
    %v353 = vor.u32 %v352, 8388608
    %v354 = vsub.s32 0, %v353
    %v355 = vadd.s32 %v350, 1
    %vm356 = vcmp.gt.s32.totalorder %v355, 0
    %v357 = vsel %vm356, %v355, 0
    %v358 = vshrl.u32 %v357, 5
    %v359 = vand.u32 %v357, 31
    %v360 = vsub.s32 32, %v359
    %v361 = vshrl.u32 683565275, %v360
    %v362 = vshll.u32 683565275, %v359
    %v363 = vshrl.u32 2475754826, %v360
    %v364 = vor.u32 %v362, %v363
    %v365 = vshll.u32 2475754826, %v359
    %v366 = vshrl.u32 2131351028, %v360
    %v367 = vor.u32 %v365, %v366
    %v368 = vshll.u32 2131351028, %v359
    %v369 = vshrl.u32 2102212464, %v360
    %v370 = vor.u32 %v368, %v369
    %v371 = vshll.u32 2102212464, %v359
    %v372 = vshrl.u32 920167782, %v360
    %v373 = vor.u32 %v371, %v372
    %v374 = vshll.u32 920167782, %v359
    %v375 = vshrl.u32 1326507024, %v360
    %v376 = vor.u32 %v374, %v375
    %vm377 = vcmp.lt.s32.totalorder %v358, 1
    %vm378 = vcmp.lt.s32.totalorder %v358, 2
    %vm379 = vcmp.lt.s32.totalorder %v358, 3
    %vm380 = vcmp.lt.s32.totalorder %v358, 4
    %v381 = vsel %vm377, %v361, %v364
    %v382 = vsel %vm380, %v370, 2102212464
    %v383 = vsel %vm379, %v367, %v382
    %v384 = vsel %vm378, %v381, %v383
    %v385 = vsel %vm377, %v364, %v367
    %v386 = vsel %vm380, %v373, 920167782
    %v387 = vsel %vm379, %v370, %v386
    %v388 = vsel %vm378, %v385, %v387
    %v389 = vsel %vm377, %v367, %v370
    %v390 = vsel %vm380, %v376, 1326507024
    %v391 = vsel %vm379, %v373, %v390
    %v392 = vsel %vm378, %v389, %v391
    %v393 = vshll.u32 %v353, 8
    %v394 = vmul.u32.u64.compose %v393, %v392
    %v395 = vextract.low.u32 %v394
    %v396 = vextract.high.u32 %v394
    %v397 = vmul.u32.u64.compose %v393, %v388
    %v398 = vextract.low.u32 %v397
    %v399 = vextract.high.u32 %v397
    %v400 = vmul.u32 %v393, %v384
    %v401 = vadd.s32 %v396, %v398
    %vm402 = vc.u32 %v396, %v398
    %v403 = vadd.s32 %v399, 1
    %v404 = vsel %vm402, %v403, %v399
    %v405 = vadd.s32 %v400, %v404
    %v406 = vadd.s32 %v405, 536870912
    %v407 = vshrl.u32 %v406, 30
    %v408 = vshll.u32 %v407, 30
    %v409 = vsub.s32 %v405, %v408
    %vm410 = vcmp.lt.s32.totalorder %v409, 0
    %v411 = vsub.s32 0, %v409
    %v412 = vsel %vm410, %v411, %v409
    %v413 = vclz %v412
    %v414 = vsub.s32 %v413, 2
    %vm415 = vcmp.gt.s32.totalorder 0, %v414
    %v416 = vsel %vm415, 0, %v414
    %v417 = vsub.s32 32, %v416
    %v418 = vshll.u32 %v409, %v416
    %v419 = vshrl.u32 %v401, %v417
    %v420 = vor.u32 %v418, %v419
    %v421 = vsub.s32 4294967266, %v416
    %v422 = vadd.s32 %v421, 127
    %v423 = vshll.u32 %v422, 23
    %v424 = vor.u32 4788187, %v423
    %v425 = vand.u32 2147483647, %v424
    %v427 = vcvt.s32.f32 %v420
    %v428 = vmul.f32 %v427, %v425
    %v429 = vxor.u32 %v428, 2147483648
    %v430 = vsel %vm347, %v429, %v428
    %v431 = vsub.s32 4, %v407
    %v432 = vsel %vm347, %v431, %v407
    %v433 = vsel %vm346, %v33, %v430
    %v434 = vsel %vm346, 0, %v432
    %v435 = vcosq.f32.pop %v433
    %v436 = vsinq.f32.pop %v433
    %vm437 = vweird.f32 %v33
    %v438 = vand.u32 %v434, 3
    %vm439 = vcmp.lt.s32.totalorder %v438, 2
    %vm440 = vcmp.eq.s32.totalorder %v438, 0
    %v441 = vxor.u32 %v436, 2147483648
    %v442 = vsel %vm440, %v435, %v441
    %vm443 = vcmp.eq.s32.totalorder %v438, 2
    %v444 = vxor.u32 %v435, 2147483648
    %v445 = vsel %vm443, %v444, %v436
    %v446 = vsel %vm439, %v442, %v445
    %v447 = vsel %vm437, nan, %v446
    %v448 = vmul.f32 %v32, 2.0
    %v449 = vmul.f32 %v33, 2.0
    %v450 = vand.u32 2147483647, %v448
    %vm451 = vcmp.le.f32.partialorder %v450, 0.7853982
    %vm452 = vcmp.lt.s32.totalorder %v448, 0
    %v453 = vand.u32 %v448, 2139095040
    %v454 = vshrl.u32 %v453, 23
    %v455 = vsub.s32 %v454, 127
    %v456 = vand.u32 2147483647, %v448
    %v457 = vand.u32 %v456, 8388607
    %v458 = vor.u32 %v457, 8388608
    %v459 = vsub.s32 0, %v458
    %v460 = vadd.s32 %v455, 1
    %vm461 = vcmp.gt.s32.totalorder %v460, 0
    %v462 = vsel %vm461, %v460, 0
    %v463 = vshrl.u32 %v462, 5
    %v464 = vand.u32 %v462, 31
    %v465 = vsub.s32 32, %v464
    %v466 = vshrl.u32 683565275, %v465
    %v467 = vshll.u32 683565275, %v464
    %v468 = vshrl.u32 2475754826, %v465
    %v469 = vor.u32 %v467, %v468
    %v470 = vshll.u32 2475754826, %v464
    %v471 = vshrl.u32 2131351028, %v465
    %v472 = vor.u32 %v470, %v471
    %v473 = vshll.u32 2131351028, %v464
    %v474 = vshrl.u32 2102212464, %v465
    %v475 = vor.u32 %v473, %v474
    %v476 = vshll.u32 2102212464, %v464
    %v477 = vshrl.u32 920167782, %v465
    %v478 = vor.u32 %v476, %v477
    %v479 = vshll.u32 920167782, %v464
    %v480 = vshrl.u32 1326507024, %v465
    %v481 = vor.u32 %v479, %v480
    %vm482 = vcmp.lt.s32.totalorder %v463, 1
    %vm483 = vcmp.lt.s32.totalorder %v463, 2
    %vm484 = vcmp.lt.s32.totalorder %v463, 3
    %vm485 = vcmp.lt.s32.totalorder %v463, 4
    %v486 = vsel %vm482, %v466, %v469
    %v487 = vsel %vm485, %v475, 2102212464
    %v488 = vsel %vm484, %v472, %v487
    %v489 = vsel %vm483, %v486, %v488
    %v490 = vsel %vm482, %v469, %v472
    %v491 = vsel %vm485, %v478, 920167782
    %v492 = vsel %vm484, %v475, %v491
    %v493 = vsel %vm483, %v490, %v492
    %v494 = vsel %vm482, %v472, %v475
    %v495 = vsel %vm485, %v481, 1326507024
    %v496 = vsel %vm484, %v478, %v495
    %v497 = vsel %vm483, %v494, %v496
    %v498 = vshll.u32 %v458, 8
    %v499 = vmul.u32.u64.compose %v498, %v497
    %v500 = vextract.low.u32 %v499
    %v501 = vextract.high.u32 %v499
    %v502 = vmul.u32.u64.compose %v498, %v493
    %v503 = vextract.low.u32 %v502
    %v504 = vextract.high.u32 %v502
    %v505 = vmul.u32 %v498, %v489
    %v506 = vadd.s32 %v501, %v503
    %vm507 = vc.u32 %v501, %v503
    %v508 = vadd.s32 %v504, 1
    %v509 = vsel %vm507, %v508, %v504
    %v510 = vadd.s32 %v505, %v509
    %v511 = vadd.s32 %v510, 536870912
    %v512 = vshrl.u32 %v511, 30
    %v513 = vshll.u32 %v512, 30
    %v514 = vsub.s32 %v510, %v513
    %vm515 = vcmp.lt.s32.totalorder %v514, 0
    %v516 = vsub.s32 0, %v514
    %v517 = vsel %vm515, %v516, %v514
    %v518 = vclz %v517
    %v519 = vsub.s32 %v518, 2
    %vm520 = vcmp.gt.s32.totalorder 0, %v519
    %v521 = vsel %vm520, 0, %v519
    %v522 = vsub.s32 32, %v521
    %v523 = vshll.u32 %v514, %v521
    %v524 = vshrl.u32 %v506, %v522
    %v525 = vor.u32 %v523, %v524
    %v526 = vsub.s32 4294967266, %v521
    %v527 = vadd.s32 %v526, 127
    %v528 = vshll.u32 %v527, 23
    %v529 = vor.u32 4788187, %v528
    %v530 = vand.u32 2147483647, %v529
    %v532 = vcvt.s32.f32 %v525
    %v533 = vmul.f32 %v532, %v530
    %v534 = vxor.u32 %v533, 2147483648
    %v535 = vsel %vm452, %v534, %v533
    %v536 = vsub.s32 4, %v512
    %v537 = vsel %vm452, %v536, %v512
    %v538 = vsel %vm451, %v448, %v535
    %v539 = vsel %vm451, 0, %v537
    %v540 = vcosq.f32.pop %v538
    %v541 = vsinq.f32.pop %v538
    %vm542 = vweird.f32 %v448
    %v543 = vadd.s32 %v539, 3
    %v544 = vand.u32 %v543, 3
    %vm545 = vcmp.lt.s32.totalorder %v544, 2
    %vm546 = vcmp.eq.s32.totalorder %v544, 0
    %v547 = vxor.u32 %v541, 2147483648
    %v548 = vsel %vm546, %v540, %v547
    %vm549 = vcmp.eq.s32.totalorder %v544, 2
    %v550 = vxor.u32 %v540, 2147483648
    %v551 = vsel %vm549, %v550, %v541
    %v552 = vsel %vm545, %v548, %v551
    %v553 = vsel %vm542, nan, %v552
    %v554 = vand.u32 2147483647, %v449
    %vm555 = vcmp.le.f32.partialorder %v554, 0.7853982
    %vm556 = vcmp.lt.s32.totalorder %v449, 0
    %v557 = vand.u32 %v449, 2139095040
    %v558 = vshrl.u32 %v557, 23
    %v559 = vsub.s32 %v558, 127
    %v560 = vand.u32 2147483647, %v449
    %v561 = vand.u32 %v560, 8388607
    %v562 = vor.u32 %v561, 8388608
    %v563 = vsub.s32 0, %v562
    %v564 = vadd.s32 %v559, 1
    %vm565 = vcmp.gt.s32.totalorder %v564, 0
    %v566 = vsel %vm565, %v564, 0
    %v567 = vshrl.u32 %v566, 5
    %v568 = vand.u32 %v566, 31
    %v569 = vsub.s32 32, %v568
    %v570 = vshrl.u32 683565275, %v569
    %v571 = vshll.u32 683565275, %v568
    %v572 = vshrl.u32 2475754826, %v569
    %v573 = vor.u32 %v571, %v572
    %v574 = vshll.u32 2475754826, %v568
    %v575 = vshrl.u32 2131351028, %v569
    %v576 = vor.u32 %v574, %v575
    %v577 = vshll.u32 2131351028, %v568
    %v578 = vshrl.u32 2102212464, %v569
    %v579 = vor.u32 %v577, %v578
    %v580 = vshll.u32 2102212464, %v568
    %v581 = vshrl.u32 920167782, %v569
    %v582 = vor.u32 %v580, %v581
    %v583 = vshll.u32 920167782, %v568
    %v584 = vshrl.u32 1326507024, %v569
    %v585 = vor.u32 %v583, %v584
    %vm586 = vcmp.lt.s32.totalorder %v567, 1
    %vm587 = vcmp.lt.s32.totalorder %v567, 2
    %vm588 = vcmp.lt.s32.totalorder %v567, 3
    %vm589 = vcmp.lt.s32.totalorder %v567, 4
    %v590 = vsel %vm586, %v570, %v573
    %v591 = vsel %vm589, %v579, 2102212464
    %v592 = vsel %vm588, %v576, %v591
    %v593 = vsel %vm587, %v590, %v592
    %v594 = vsel %vm586, %v573, %v576
    %v595 = vsel %vm589, %v582, 920167782
    %v596 = vsel %vm588, %v579, %v595
    %v597 = vsel %vm587, %v594, %v596
    %v598 = vsel %vm586, %v576, %v579
    %v599 = vsel %vm589, %v585, 1326507024
    %v600 = vsel %vm588, %v582, %v599
    %v601 = vsel %vm587, %v598, %v600
    %v602 = vshll.u32 %v562, 8
    %v603 = vmul.u32.u64.compose %v602, %v601
    %v604 = vextract.low.u32 %v603
    %v605 = vextract.high.u32 %v603
    %v606 = vmul.u32.u64.compose %v602, %v597
    %v607 = vextract.low.u32 %v606
    %v608 = vextract.high.u32 %v606
    %v609 = vmul.u32 %v602, %v593
    %v610 = vadd.s32 %v605, %v607
    %vm611 = vc.u32 %v605, %v607
    %v612 = vadd.s32 %v608, 1
    %v613 = vsel %vm611, %v612, %v608
    %v614 = vadd.s32 %v609, %v613
    %v615 = vadd.s32 %v614, 536870912
    %v616 = vshrl.u32 %v615, 30
    %v617 = vshll.u32 %v616, 30
    %v618 = vsub.s32 %v614, %v617
    %vm619 = vcmp.lt.s32.totalorder %v618, 0
    %v620 = vsub.s32 0, %v618
    %v621 = vsel %vm619, %v620, %v618
    %v622 = vclz %v621
    %v623 = vsub.s32 %v622, 2
    %vm624 = vcmp.gt.s32.totalorder 0, %v623
    %v625 = vsel %vm624, 0, %v623
    %v626 = vsub.s32 32, %v625
    %v627 = vshll.u32 %v618, %v625
    %v628 = vshrl.u32 %v610, %v626
    %v629 = vor.u32 %v627, %v628
    %v630 = vsub.s32 4294967266, %v625
    %v631 = vadd.s32 %v630, 127
    %v632 = vshll.u32 %v631, 23
    %v633 = vor.u32 4788187, %v632
    %v634 = vand.u32 2147483647, %v633
    %v636 = vcvt.s32.f32 %v629
    %v637 = vmul.f32 %v636, %v634
    %v638 = vxor.u32 %v637, 2147483648
    %v639 = vsel %vm556, %v638, %v637
    %v640 = vsub.s32 4, %v616
    %v641 = vsel %vm556, %v640, %v616
    %v642 = vsel %vm555, %v449, %v639
    %v643 = vsel %vm555, 0, %v641
    %v644 = vcosq.f32.pop %v642
    %v645 = vsinq.f32.pop %v642
    %vm646 = vweird.f32 %v449
    %v647 = vadd.s32 %v643, 3
    %v648 = vand.u32 %v647, 3
    %vm649 = vcmp.lt.s32.totalorder %v648, 2
    %vm650 = vcmp.eq.s32.totalorder %v648, 0
    %v651 = vxor.u32 %v645, 2147483648
    %v652 = vsel %vm650, %v644, %v651
    %vm653 = vcmp.eq.s32.totalorder %v648, 2
    %v654 = vxor.u32 %v644, 2147483648
    %v655 = vsel %vm653, %v654, %v645
    %v656 = vsel %vm649, %v652, %v655
    %v657 = vsel %vm646, nan, %v656
    %v658 = vand.u32 2147483647, %v448
    %vm659 = vcmp.le.f32.partialorder %v658, 0.7853982
    %vm660 = vcmp.lt.s32.totalorder %v448, 0
    %v661 = vand.u32 %v448, 2139095040
    %v662 = vshrl.u32 %v661, 23
    %v663 = vsub.s32 %v662, 127
    %v664 = vand.u32 2147483647, %v448
    %v665 = vand.u32 %v664, 8388607
    %v666 = vor.u32 %v665, 8388608
    %v667 = vsub.s32 0, %v666
    %v668 = vadd.s32 %v663, 1
    %vm669 = vcmp.gt.s32.totalorder %v668, 0
    %v670 = vsel %vm669, %v668, 0
    %v671 = vshrl.u32 %v670, 5
    %v672 = vand.u32 %v670, 31
    %v673 = vsub.s32 32, %v672
    %v674 = vshrl.u32 683565275, %v673
    %v675 = vshll.u32 683565275, %v672
    %v676 = vshrl.u32 2475754826, %v673
    %v677 = vor.u32 %v675, %v676
    %v678 = vshll.u32 2475754826, %v672
    %v679 = vshrl.u32 2131351028, %v673
    %v680 = vor.u32 %v678, %v679
    %v681 = vshll.u32 2131351028, %v672
    %v682 = vshrl.u32 2102212464, %v673
    %v683 = vor.u32 %v681, %v682
    %v684 = vshll.u32 2102212464, %v672
    %v685 = vshrl.u32 920167782, %v673
    %v686 = vor.u32 %v684, %v685
    %v687 = vshll.u32 920167782, %v672
    %v688 = vshrl.u32 1326507024, %v673
    %v689 = vor.u32 %v687, %v688
    %vm690 = vcmp.lt.s32.totalorder %v671, 1
    %vm691 = vcmp.lt.s32.totalorder %v671, 2
    %vm692 = vcmp.lt.s32.totalorder %v671, 3
    %vm693 = vcmp.lt.s32.totalorder %v671, 4
    %v694 = vsel %vm690, %v674, %v677
    %v695 = vsel %vm693, %v683, 2102212464
    %v696 = vsel %vm692, %v680, %v695
    %v697 = vsel %vm691, %v694, %v696
    %v698 = vsel %vm690, %v677, %v680
    %v699 = vsel %vm693, %v686, 920167782
    %v700 = vsel %vm692, %v683, %v699
    %v701 = vsel %vm691, %v698, %v700
    %v702 = vsel %vm690, %v680, %v683
    %v703 = vsel %vm693, %v689, 1326507024
    %v704 = vsel %vm692, %v686, %v703
    %v705 = vsel %vm691, %v702, %v704
    %v706 = vshll.u32 %v666, 8
    %v707 = vmul.u32.u64.compose %v706, %v705
    %v708 = vextract.low.u32 %v707
    %v709 = vextract.high.u32 %v707
    %v710 = vmul.u32.u64.compose %v706, %v701
    %v711 = vextract.low.u32 %v710
    %v712 = vextract.high.u32 %v710
    %v713 = vmul.u32 %v706, %v697
    %v714 = vadd.s32 %v709, %v711
    %vm715 = vc.u32 %v709, %v711
    %v716 = vadd.s32 %v712, 1
    %v717 = vsel %vm715, %v716, %v712
    %v718 = vadd.s32 %v713, %v717
    %v719 = vadd.s32 %v718, 536870912
    %v720 = vshrl.u32 %v719, 30
    %v721 = vshll.u32 %v720, 30
    %v722 = vsub.s32 %v718, %v721
    %vm723 = vcmp.lt.s32.totalorder %v722, 0
    %v724 = vsub.s32 0, %v722
    %v725 = vsel %vm723, %v724, %v722
    %v726 = vclz %v725
    %v727 = vsub.s32 %v726, 2
    %vm728 = vcmp.gt.s32.totalorder 0, %v727
    %v729 = vsel %vm728, 0, %v727
    %v730 = vsub.s32 32, %v729
    %v731 = vshll.u32 %v722, %v729
    %v732 = vshrl.u32 %v714, %v730
    %v733 = vor.u32 %v731, %v732
    %v734 = vsub.s32 4294967266, %v729
    %v735 = vadd.s32 %v734, 127
    %v736 = vshll.u32 %v735, 23
    %v737 = vor.u32 4788187, %v736
    %v738 = vand.u32 2147483647, %v737
    %v740 = vcvt.s32.f32 %v733
    %v741 = vmul.f32 %v740, %v738
    %v742 = vxor.u32 %v741, 2147483648
    %v743 = vsel %vm660, %v742, %v741
    %v744 = vsub.s32 4, %v720
    %v745 = vsel %vm660, %v744, %v720
    %v746 = vsel %vm659, %v448, %v743
    %v747 = vsel %vm659, 0, %v745
    %v748 = vcosq.f32.pop %v746
    %v749 = vsinq.f32.pop %v746
    %vm750 = vweird.f32 %v448
    %v751 = vand.u32 %v747, 3
    %vm752 = vcmp.lt.s32.totalorder %v751, 2
    %vm753 = vcmp.eq.s32.totalorder %v751, 0
    %v754 = vxor.u32 %v749, 2147483648
    %v755 = vsel %vm753, %v748, %v754
    %vm756 = vcmp.eq.s32.totalorder %v751, 2
    %v757 = vxor.u32 %v748, 2147483648
    %v758 = vsel %vm756, %v757, %v749
    %v759 = vsel %vm752, %v755, %v758
    %v760 = vsel %vm750, nan, %v759
    %v761 = vand.u32 2147483647, %v449
    %vm762 = vcmp.le.f32.partialorder %v761, 0.7853982
    %vm763 = vcmp.lt.s32.totalorder %v449, 0
    %v764 = vand.u32 %v449, 2139095040
    %v765 = vshrl.u32 %v764, 23
    %v766 = vsub.s32 %v765, 127
    %v767 = vand.u32 2147483647, %v449
    %v768 = vand.u32 %v767, 8388607
    %v769 = vor.u32 %v768, 8388608
    %v770 = vsub.s32 0, %v769
    %v771 = vadd.s32 %v766, 1
    %vm772 = vcmp.gt.s32.totalorder %v771, 0
    %v773 = vsel %vm772, %v771, 0
    %v774 = vshrl.u32 %v773, 5
    %v775 = vand.u32 %v773, 31
    %v776 = vsub.s32 32, %v775
    %v777 = vshrl.u32 683565275, %v776
    %v778 = vshll.u32 683565275, %v775
    %v779 = vshrl.u32 2475754826, %v776
    %v780 = vor.u32 %v778, %v779
    %v781 = vshll.u32 2475754826, %v775
    %v782 = vshrl.u32 2131351028, %v776
    %v783 = vor.u32 %v781, %v782
    %v784 = vshll.u32 2131351028, %v775
    %v785 = vshrl.u32 2102212464, %v776
    %v786 = vor.u32 %v784, %v785
    %v787 = vshll.u32 2102212464, %v775
    %v788 = vshrl.u32 920167782, %v776
    %v789 = vor.u32 %v787, %v788
    %v790 = vshll.u32 920167782, %v775
    %v791 = vshrl.u32 1326507024, %v776
    %v792 = vor.u32 %v790, %v791
    %vm793 = vcmp.lt.s32.totalorder %v774, 1
    %vm794 = vcmp.lt.s32.totalorder %v774, 2
    %vm795 = vcmp.lt.s32.totalorder %v774, 3
    %vm796 = vcmp.lt.s32.totalorder %v774, 4
    %v797 = vsel %vm793, %v777, %v780
    %v798 = vsel %vm796, %v786, 2102212464
    %v799 = vsel %vm795, %v783, %v798
    %v800 = vsel %vm794, %v797, %v799
    %v801 = vsel %vm793, %v780, %v783
    %v802 = vsel %vm796, %v789, 920167782
    %v803 = vsel %vm795, %v786, %v802
    %v804 = vsel %vm794, %v801, %v803
    %v805 = vsel %vm793, %v783, %v786
    %v806 = vsel %vm796, %v792, 1326507024
    %v807 = vsel %vm795, %v789, %v806
    %v808 = vsel %vm794, %v805, %v807
    %v809 = vshll.u32 %v769, 8
    %v810 = vmul.u32.u64.compose %v809, %v808
    %v811 = vextract.low.u32 %v810
    %v812 = vextract.high.u32 %v810
    %v813 = vmul.u32.u64.compose %v809, %v804
    %v814 = vextract.low.u32 %v813
    %v815 = vextract.high.u32 %v813
    %v816 = vmul.u32 %v809, %v800
    %v817 = vadd.s32 %v812, %v814
    %vm818 = vc.u32 %v812, %v814
    %v819 = vadd.s32 %v815, 1
    %v820 = vsel %vm818, %v819, %v815
    %v821 = vadd.s32 %v816, %v820
    %v822 = vadd.s32 %v821, 536870912
    %v823 = vshrl.u32 %v822, 30
    %v824 = vshll.u32 %v823, 30
    %v825 = vsub.s32 %v821, %v824
    %vm826 = vcmp.lt.s32.totalorder %v825, 0
    %v827 = vsub.s32 0, %v825
    %v828 = vsel %vm826, %v827, %v825
    %v829 = vclz %v828
    %v830 = vsub.s32 %v829, 2
    %vm831 = vcmp.gt.s32.totalorder 0, %v830
    %v832 = vsel %vm831, 0, %v830
    %v833 = vsub.s32 32, %v832
    %v834 = vshll.u32 %v825, %v832
    %v835 = vshrl.u32 %v817, %v833
    %v836 = vor.u32 %v834, %v835
    %v837 = vsub.s32 4294967266, %v832
    %v838 = vadd.s32 %v837, 127
    %v839 = vshll.u32 %v838, 23
    %v840 = vor.u32 4788187, %v839
    %v841 = vand.u32 2147483647, %v840
    %v843 = vcvt.s32.f32 %v836
    %v844 = vmul.f32 %v843, %v841
    %v845 = vxor.u32 %v844, 2147483648
    %v846 = vsel %vm763, %v845, %v844
    %v847 = vsub.s32 4, %v823
    %v848 = vsel %vm763, %v847, %v823
    %v849 = vsel %vm762, %v449, %v846
    %v850 = vsel %vm762, 0, %v848
    %v851 = vcosq.f32.pop %v849
    %v852 = vsinq.f32.pop %v849
    %vm853 = vweird.f32 %v449
    %v854 = vand.u32 %v850, 3
    %vm855 = vcmp.lt.s32.totalorder %v854, 2
    %vm856 = vcmp.eq.s32.totalorder %v854, 0
    %v857 = vxor.u32 %v852, 2147483648
    %v858 = vsel %vm856, %v851, %v857
    %vm859 = vcmp.eq.s32.totalorder %v854, 2
    %v860 = vxor.u32 %v851, 2147483648
    %v861 = vsel %vm859, %v860, %v852
    %v862 = vsel %vm855, %v858, %v861
    %v863 = vsel %vm853, nan, %v862
    %v864 = vmul.f32 %v32, 4.0
    %v865 = vmul.f32 %v33, 4.0
    %v866 = vand.u32 2147483647, %v864
    %vm867 = vcmp.le.f32.partialorder %v866, 0.7853982
    %vm868 = vcmp.lt.s32.totalorder %v864, 0
    %v869 = vand.u32 %v864, 2139095040
    %v870 = vshrl.u32 %v869, 23
    %v871 = vsub.s32 %v870, 127
    %v872 = vand.u32 2147483647, %v864
    %v873 = vand.u32 %v872, 8388607
    %v874 = vor.u32 %v873, 8388608
    %v875 = vsub.s32 0, %v874
    %v876 = vadd.s32 %v871, 1
    %vm877 = vcmp.gt.s32.totalorder %v876, 0
    %v878 = vsel %vm877, %v876, 0
    %v879 = vshrl.u32 %v878, 5
    %v880 = vand.u32 %v878, 31
    %v881 = vsub.s32 32, %v880
    %v882 = vshrl.u32 683565275, %v881
    %v883 = vshll.u32 683565275, %v880
    %v884 = vshrl.u32 2475754826, %v881
    %v885 = vor.u32 %v883, %v884
    %v886 = vshll.u32 2475754826, %v880
    %v887 = vshrl.u32 2131351028, %v881
    %v888 = vor.u32 %v886, %v887
    %v889 = vshll.u32 2131351028, %v880
    %v890 = vshrl.u32 2102212464, %v881
    %v891 = vor.u32 %v889, %v890
    %v892 = vshll.u32 2102212464, %v880
    %v893 = vshrl.u32 920167782, %v881
    %v894 = vor.u32 %v892, %v893
    %v895 = vshll.u32 920167782, %v880
    %v896 = vshrl.u32 1326507024, %v881
    %v897 = vor.u32 %v895, %v896
    %vm898 = vcmp.lt.s32.totalorder %v879, 1
    %vm899 = vcmp.lt.s32.totalorder %v879, 2
    %vm900 = vcmp.lt.s32.totalorder %v879, 3
    %vm901 = vcmp.lt.s32.totalorder %v879, 4
    %v902 = vsel %vm898, %v882, %v885
    %v903 = vsel %vm901, %v891, 2102212464
    %v904 = vsel %vm900, %v888, %v903
    %v905 = vsel %vm899, %v902, %v904
    %v906 = vsel %vm898, %v885, %v888
    %v907 = vsel %vm901, %v894, 920167782
    %v908 = vsel %vm900, %v891, %v907
    %v909 = vsel %vm899, %v906, %v908
    %v910 = vsel %vm898, %v888, %v891
    %v911 = vsel %vm901, %v897, 1326507024
    %v912 = vsel %vm900, %v894, %v911
    %v913 = vsel %vm899, %v910, %v912
    %v914 = vshll.u32 %v874, 8
    %v915 = vmul.u32.u64.compose %v914, %v913
    %v916 = vextract.low.u32 %v915
    %v917 = vextract.high.u32 %v915
    %v918 = vmul.u32.u64.compose %v914, %v909
    %v919 = vextract.low.u32 %v918
    %v920 = vextract.high.u32 %v918
    %v921 = vmul.u32 %v914, %v905
    %v922 = vadd.s32 %v917, %v919
    %vm923 = vc.u32 %v917, %v919
    %v924 = vadd.s32 %v920, 1
    %v925 = vsel %vm923, %v924, %v920
    %v926 = vadd.s32 %v921, %v925
    %v927 = vadd.s32 %v926, 536870912
    %v928 = vshrl.u32 %v927, 30
    %v929 = vshll.u32 %v928, 30
    %v930 = vsub.s32 %v926, %v929
    %vm931 = vcmp.lt.s32.totalorder %v930, 0
    %v932 = vsub.s32 0, %v930
    %v933 = vsel %vm931, %v932, %v930
    %v934 = vclz %v933
    %v935 = vsub.s32 %v934, 2
    %vm936 = vcmp.gt.s32.totalorder 0, %v935
    %v937 = vsel %vm936, 0, %v935
    %v938 = vsub.s32 32, %v937
    %v939 = vshll.u32 %v930, %v937
    %v940 = vshrl.u32 %v922, %v938
    %v941 = vor.u32 %v939, %v940
    %v942 = vsub.s32 4294967266, %v937
    %v943 = vadd.s32 %v942, 127
    %v944 = vshll.u32 %v943, 23
    %v945 = vor.u32 4788187, %v944
    %v946 = vand.u32 2147483647, %v945
    %v948 = vcvt.s32.f32 %v941
    %v949 = vmul.f32 %v948, %v946
    %v950 = vxor.u32 %v949, 2147483648
    %v951 = vsel %vm868, %v950, %v949
    %v952 = vsub.s32 4, %v928
    %v953 = vsel %vm868, %v952, %v928
    %v954 = vsel %vm867, %v864, %v951
    %v955 = vsel %vm867, 0, %v953
    %v956 = vcosq.f32.pop %v954
    %v957 = vsinq.f32.pop %v954
    %vm958 = vweird.f32 %v864
    %v959 = vadd.s32 %v955, 3
    %v960 = vand.u32 %v959, 3
    %vm961 = vcmp.lt.s32.totalorder %v960, 2
    %vm962 = vcmp.eq.s32.totalorder %v960, 0
    %v963 = vxor.u32 %v957, 2147483648
    %v964 = vsel %vm962, %v956, %v963
    %vm965 = vcmp.eq.s32.totalorder %v960, 2
    %v966 = vxor.u32 %v956, 2147483648
    %v967 = vsel %vm965, %v966, %v957
    %v968 = vsel %vm961, %v964, %v967
    %v969 = vsel %vm958, nan, %v968
    %v970 = vand.u32 2147483647, %v865
    %vm971 = vcmp.le.f32.partialorder %v970, 0.7853982
    %vm972 = vcmp.lt.s32.totalorder %v865, 0
    %v973 = vand.u32 %v865, 2139095040
    %v974 = vshrl.u32 %v973, 23
    %v975 = vsub.s32 %v974, 127
    %v976 = vand.u32 2147483647, %v865
    %v977 = vand.u32 %v976, 8388607
    %v978 = vor.u32 %v977, 8388608
    %v979 = vsub.s32 0, %v978
    %v980 = vadd.s32 %v975, 1
    %vm981 = vcmp.gt.s32.totalorder %v980, 0
    %v982 = vsel %vm981, %v980, 0
    %v983 = vshrl.u32 %v982, 5
    %v984 = vand.u32 %v982, 31
    %v985 = vsub.s32 32, %v984
    %v986 = vshrl.u32 683565275, %v985
    %v987 = vshll.u32 683565275, %v984
    %v988 = vshrl.u32 2475754826, %v985
    %v989 = vor.u32 %v987, %v988
    %v990 = vshll.u32 2475754826, %v984
    %v991 = vshrl.u32 2131351028, %v985
    %v992 = vor.u32 %v990, %v991
    %v993 = vshll.u32 2131351028, %v984
    %v994 = vshrl.u32 2102212464, %v985
    %v995 = vor.u32 %v993, %v994
    %v996 = vshll.u32 2102212464, %v984
    %v997 = vshrl.u32 920167782, %v985
    %v998 = vor.u32 %v996, %v997
    %v999 = vshll.u32 920167782, %v984
    %v1000 = vshrl.u32 1326507024, %v985
    %v1001 = vor.u32 %v999, %v1000
    %vm1002 = vcmp.lt.s32.totalorder %v983, 1
    %vm1003 = vcmp.lt.s32.totalorder %v983, 2
    %vm1004 = vcmp.lt.s32.totalorder %v983, 3
    %vm1005 = vcmp.lt.s32.totalorder %v983, 4
    %v1006 = vsel %vm1002, %v986, %v989
    %v1007 = vsel %vm1005, %v995, 2102212464
    %v1008 = vsel %vm1004, %v992, %v1007
    %v1009 = vsel %vm1003, %v1006, %v1008
    %v1010 = vsel %vm1002, %v989, %v992
    %v1011 = vsel %vm1005, %v998, 920167782
    %v1012 = vsel %vm1004, %v995, %v1011
    %v1013 = vsel %vm1003, %v1010, %v1012
    %v1014 = vsel %vm1002, %v992, %v995
    %v1015 = vsel %vm1005, %v1001, 1326507024
    %v1016 = vsel %vm1004, %v998, %v1015
    %v1017 = vsel %vm1003, %v1014, %v1016
    %v1018 = vshll.u32 %v978, 8
    %v1019 = vmul.u32.u64.compose %v1018, %v1017
    %v1020 = vextract.low.u32 %v1019
    %v1021 = vextract.high.u32 %v1019
    %v1022 = vmul.u32.u64.compose %v1018, %v1013
    %v1023 = vextract.low.u32 %v1022
    %v1024 = vextract.high.u32 %v1022
    %v1025 = vmul.u32 %v1018, %v1009
    %v1026 = vadd.s32 %v1021, %v1023
    %vm1027 = vc.u32 %v1021, %v1023
    %v1028 = vadd.s32 %v1024, 1
    %v1029 = vsel %vm1027, %v1028, %v1024
    %v1030 = vadd.s32 %v1025, %v1029
    %v1031 = vadd.s32 %v1030, 536870912
    %v1032 = vshrl.u32 %v1031, 30
    %v1033 = vshll.u32 %v1032, 30
    %v1034 = vsub.s32 %v1030, %v1033
    %vm1035 = vcmp.lt.s32.totalorder %v1034, 0
    %v1036 = vsub.s32 0, %v1034
    %v1037 = vsel %vm1035, %v1036, %v1034
    %v1038 = vclz %v1037
    %v1039 = vsub.s32 %v1038, 2
    %vm1040 = vcmp.gt.s32.totalorder 0, %v1039
    %v1041 = vsel %vm1040, 0, %v1039
    %v1042 = vsub.s32 32, %v1041
    %v1043 = vshll.u32 %v1034, %v1041
    %v1044 = vshrl.u32 %v1026, %v1042
    %v1045 = vor.u32 %v1043, %v1044
    %v1046 = vsub.s32 4294967266, %v1041
    %v1047 = vadd.s32 %v1046, 127
    %v1048 = vshll.u32 %v1047, 23
    %v1049 = vor.u32 4788187, %v1048
    %v1050 = vand.u32 2147483647, %v1049
    %v1052 = vcvt.s32.f32 %v1045
    %v1053 = vmul.f32 %v1052, %v1050
    %v1054 = vxor.u32 %v1053, 2147483648
    %v1055 = vsel %vm972, %v1054, %v1053
    %v1056 = vsub.s32 4, %v1032
    %v1057 = vsel %vm972, %v1056, %v1032
    %v1058 = vsel %vm971, %v865, %v1055
    %v1059 = vsel %vm971, 0, %v1057
    %v1060 = vcosq.f32.pop %v1058
    %v1061 = vsinq.f32.pop %v1058
    %vm1062 = vweird.f32 %v865
    %v1063 = vadd.s32 %v1059, 3
    %v1064 = vand.u32 %v1063, 3
    %vm1065 = vcmp.lt.s32.totalorder %v1064, 2
    %vm1066 = vcmp.eq.s32.totalorder %v1064, 0
    %v1067 = vxor.u32 %v1061, 2147483648
    %v1068 = vsel %vm1066, %v1060, %v1067
    %vm1069 = vcmp.eq.s32.totalorder %v1064, 2
    %v1070 = vxor.u32 %v1060, 2147483648
    %v1071 = vsel %vm1069, %v1070, %v1061
    %v1072 = vsel %vm1065, %v1068, %v1071
    %v1073 = vsel %vm1062, nan, %v1072
    %v1074 = vand.u32 2147483647, %v864
    %vm1075 = vcmp.le.f32.partialorder %v1074, 0.7853982
    %vm1076 = vcmp.lt.s32.totalorder %v864, 0
    %v1077 = vand.u32 %v864, 2139095040
    %v1078 = vshrl.u32 %v1077, 23
    %v1079 = vsub.s32 %v1078, 127
    %v1080 = vand.u32 2147483647, %v864
    %v1081 = vand.u32 %v1080, 8388607
    %v1082 = vor.u32 %v1081, 8388608
    %v1083 = vsub.s32 0, %v1082
    %v1084 = vadd.s32 %v1079, 1
    %vm1085 = vcmp.gt.s32.totalorder %v1084, 0
    %v1086 = vsel %vm1085, %v1084, 0
    %v1087 = vshrl.u32 %v1086, 5
    %v1088 = vand.u32 %v1086, 31
    %v1089 = vsub.s32 32, %v1088
    %v1090 = vshrl.u32 683565275, %v1089
    %v1091 = vshll.u32 683565275, %v1088
    %v1092 = vshrl.u32 2475754826, %v1089
    %v1093 = vor.u32 %v1091, %v1092
    %v1094 = vshll.u32 2475754826, %v1088
    %v1095 = vshrl.u32 2131351028, %v1089
    %v1096 = vor.u32 %v1094, %v1095
    %v1097 = vshll.u32 2131351028, %v1088
    %v1098 = vshrl.u32 2102212464, %v1089
    %v1099 = vor.u32 %v1097, %v1098
    %v1100 = vshll.u32 2102212464, %v1088
    %v1101 = vshrl.u32 920167782, %v1089
    %v1102 = vor.u32 %v1100, %v1101
    %v1103 = vshll.u32 920167782, %v1088
    %v1104 = vshrl.u32 1326507024, %v1089
    %v1105 = vor.u32 %v1103, %v1104
    %vm1106 = vcmp.lt.s32.totalorder %v1087, 1
    %vm1107 = vcmp.lt.s32.totalorder %v1087, 2
    %vm1108 = vcmp.lt.s32.totalorder %v1087, 3
    %vm1109 = vcmp.lt.s32.totalorder %v1087, 4
    %v1110 = vsel %vm1106, %v1090, %v1093
    %v1111 = vsel %vm1109, %v1099, 2102212464
    %v1112 = vsel %vm1108, %v1096, %v1111
    %v1113 = vsel %vm1107, %v1110, %v1112
    %v1114 = vsel %vm1106, %v1093, %v1096
    %v1115 = vsel %vm1109, %v1102, 920167782
    %v1116 = vsel %vm1108, %v1099, %v1115
    %v1117 = vsel %vm1107, %v1114, %v1116
    %v1118 = vsel %vm1106, %v1096, %v1099
    %v1119 = vsel %vm1109, %v1105, 1326507024
    %v1120 = vsel %vm1108, %v1102, %v1119
    %v1121 = vsel %vm1107, %v1118, %v1120
    %v1122 = vshll.u32 %v1082, 8
    %v1123 = vmul.u32.u64.compose %v1122, %v1121
    %v1124 = vextract.low.u32 %v1123
    %v1125 = vextract.high.u32 %v1123
    %v1126 = vmul.u32.u64.compose %v1122, %v1117
    %v1127 = vextract.low.u32 %v1126
    %v1128 = vextract.high.u32 %v1126
    %v1129 = vmul.u32 %v1122, %v1113
    %v1130 = vadd.s32 %v1125, %v1127
    %vm1131 = vc.u32 %v1125, %v1127
    %v1132 = vadd.s32 %v1128, 1
    %v1133 = vsel %vm1131, %v1132, %v1128
    %v1134 = vadd.s32 %v1129, %v1133
    %v1135 = vadd.s32 %v1134, 536870912
    %v1136 = vshrl.u32 %v1135, 30
    %v1137 = vshll.u32 %v1136, 30
    %v1138 = vsub.s32 %v1134, %v1137
    %vm1139 = vcmp.lt.s32.totalorder %v1138, 0
    %v1140 = vsub.s32 0, %v1138
    %v1141 = vsel %vm1139, %v1140, %v1138
    %v1142 = vclz %v1141
    %v1143 = vsub.s32 %v1142, 2
    %vm1144 = vcmp.gt.s32.totalorder 0, %v1143
    %v1145 = vsel %vm1144, 0, %v1143
    %v1146 = vsub.s32 32, %v1145
    %v1147 = vshll.u32 %v1138, %v1145
    %v1148 = vshrl.u32 %v1130, %v1146
    %v1149 = vor.u32 %v1147, %v1148
    %v1150 = vsub.s32 4294967266, %v1145
    %v1151 = vadd.s32 %v1150, 127
    %v1152 = vshll.u32 %v1151, 23
    %v1153 = vor.u32 4788187, %v1152
    %v1154 = vand.u32 2147483647, %v1153
    %v1156 = vcvt.s32.f32 %v1149
    %v1157 = vmul.f32 %v1156, %v1154
    %v1158 = vxor.u32 %v1157, 2147483648
    %v1159 = vsel %vm1076, %v1158, %v1157
    %v1160 = vsub.s32 4, %v1136
    %v1161 = vsel %vm1076, %v1160, %v1136
    %v1162 = vsel %vm1075, %v864, %v1159
    %v1163 = vsel %vm1075, 0, %v1161
    %v1164 = vcosq.f32.pop %v1162
    %v1165 = vsinq.f32.pop %v1162
    %vm1166 = vweird.f32 %v864
    %v1167 = vand.u32 %v1163, 3
    %vm1168 = vcmp.lt.s32.totalorder %v1167, 2
    %vm1169 = vcmp.eq.s32.totalorder %v1167, 0
    %v1170 = vxor.u32 %v1165, 2147483648
    %v1171 = vsel %vm1169, %v1164, %v1170
    %vm1172 = vcmp.eq.s32.totalorder %v1167, 2
    %v1173 = vxor.u32 %v1164, 2147483648
    %v1174 = vsel %vm1172, %v1173, %v1165
    %v1175 = vsel %vm1168, %v1171, %v1174
    %v1176 = vsel %vm1166, nan, %v1175
    %v1177 = vand.u32 2147483647, %v865
    %vm1178 = vcmp.le.f32.partialorder %v1177, 0.7853982
    %vm1179 = vcmp.lt.s32.totalorder %v865, 0
    %v1180 = vand.u32 %v865, 2139095040
    %v1181 = vshrl.u32 %v1180, 23
    %v1182 = vsub.s32 %v1181, 127
    %v1183 = vand.u32 2147483647, %v865
    %v1184 = vand.u32 %v1183, 8388607
    %v1185 = vor.u32 %v1184, 8388608
    %v1186 = vsub.s32 0, %v1185
    %v1187 = vadd.s32 %v1182, 1
    %vm1188 = vcmp.gt.s32.totalorder %v1187, 0
    %v1189 = vsel %vm1188, %v1187, 0
    %v1190 = vshrl.u32 %v1189, 5
    %v1191 = vand.u32 %v1189, 31
    %v1192 = vsub.s32 32, %v1191
    %v1193 = vshrl.u32 683565275, %v1192
    %v1194 = vshll.u32 683565275, %v1191
    %v1195 = vshrl.u32 2475754826, %v1192
    %v1196 = vor.u32 %v1194, %v1195
    %v1197 = vshll.u32 2475754826, %v1191
    %v1198 = vshrl.u32 2131351028, %v1192
    %v1199 = vor.u32 %v1197, %v1198
    %v1200 = vshll.u32 2131351028, %v1191
    %v1201 = vshrl.u32 2102212464, %v1192
    %v1202 = vor.u32 %v1200, %v1201
    %v1203 = vshll.u32 2102212464, %v1191
    %v1204 = vshrl.u32 920167782, %v1192
    %v1205 = vor.u32 %v1203, %v1204
    %v1206 = vshll.u32 920167782, %v1191
    %v1207 = vshrl.u32 1326507024, %v1192
    %v1208 = vor.u32 %v1206, %v1207
    %vm1209 = vcmp.lt.s32.totalorder %v1190, 1
    %vm1210 = vcmp.lt.s32.totalorder %v1190, 2
    %vm1211 = vcmp.lt.s32.totalorder %v1190, 3
    %vm1212 = vcmp.lt.s32.totalorder %v1190, 4
    %v1213 = vsel %vm1209, %v1193, %v1196
    %v1214 = vsel %vm1212, %v1202, 2102212464
    %v1215 = vsel %vm1211, %v1199, %v1214
    %v1216 = vsel %vm1210, %v1213, %v1215
    %v1217 = vsel %vm1209, %v1196, %v1199
    %v1218 = vsel %vm1212, %v1205, 920167782
    %v1219 = vsel %vm1211, %v1202, %v1218
    %v1220 = vsel %vm1210, %v1217, %v1219
    %v1221 = vsel %vm1209, %v1199, %v1202
    %v1222 = vsel %vm1212, %v1208, 1326507024
    %v1223 = vsel %vm1211, %v1205, %v1222
    %v1224 = vsel %vm1210, %v1221, %v1223
    %v1225 = vshll.u32 %v1185, 8
    %v1226 = vmul.u32.u64.compose %v1225, %v1224
    %v1227 = vextract.low.u32 %v1226
    %v1228 = vextract.high.u32 %v1226
    %v1229 = vmul.u32.u64.compose %v1225, %v1220
    %v1230 = vextract.low.u32 %v1229
    %v1231 = vextract.high.u32 %v1229
    %v1232 = vmul.u32 %v1225, %v1216
    %v1233 = vadd.s32 %v1228, %v1230
    %vm1234 = vc.u32 %v1228, %v1230
    %v1235 = vadd.s32 %v1231, 1
    %v1236 = vsel %vm1234, %v1235, %v1231
    %v1237 = vadd.s32 %v1232, %v1236
    %v1238 = vadd.s32 %v1237, 536870912
    %v1239 = vshrl.u32 %v1238, 30
    %v1240 = vshll.u32 %v1239, 30
    %v1241 = vsub.s32 %v1237, %v1240
    %vm1242 = vcmp.lt.s32.totalorder %v1241, 0
    %v1243 = vsub.s32 0, %v1241
    %v1244 = vsel %vm1242, %v1243, %v1241
    %v1245 = vclz %v1244
    %v1246 = vsub.s32 %v1245, 2
    %vm1247 = vcmp.gt.s32.totalorder 0, %v1246
    %v1248 = vsel %vm1247, 0, %v1246
    %v1249 = vsub.s32 32, %v1248
    %v1250 = vshll.u32 %v1241, %v1248
    %v1251 = vshrl.u32 %v1233, %v1249
    %v1252 = vor.u32 %v1250, %v1251
    %v1253 = vsub.s32 4294967266, %v1248
    %v1254 = vadd.s32 %v1253, 127
    %v1255 = vshll.u32 %v1254, 23
    %v1256 = vor.u32 4788187, %v1255
    %v1257 = vand.u32 2147483647, %v1256
    %v1259 = vcvt.s32.f32 %v1252
    %v1260 = vmul.f32 %v1259, %v1257
    %v1261 = vxor.u32 %v1260, 2147483648
    %v1262 = vsel %vm1179, %v1261, %v1260
    %v1263 = vsub.s32 4, %v1239
    %v1264 = vsel %vm1179, %v1263, %v1239
    %v1265 = vsel %vm1178, %v865, %v1262
    %v1266 = vsel %vm1178, 0, %v1264
    %v1267 = vcosq.f32.pop %v1265
    %v1268 = vsinq.f32.pop %v1265
    %vm1269 = vweird.f32 %v865
    %v1270 = vand.u32 %v1266, 3
    %vm1271 = vcmp.lt.s32.totalorder %v1270, 2
    %vm1272 = vcmp.eq.s32.totalorder %v1270, 0
    %v1273 = vxor.u32 %v1268, 2147483648
    %v1274 = vsel %vm1272, %v1267, %v1273
    %vm1275 = vcmp.eq.s32.totalorder %v1270, 2
    %v1276 = vxor.u32 %v1267, 2147483648
    %v1277 = vsel %vm1275, %v1276, %v1268
    %v1278 = vsel %vm1271, %v1274, %v1277
    %v1279 = vsel %vm1269, nan, %v1278
    %v1280 = vmul.f32 %v32, 8.0
    %v1281 = vmul.f32 %v33, 8.0
    %v1282 = vand.u32 2147483647, %v1280
    %vm1283 = vcmp.le.f32.partialorder %v1282, 0.7853982
    %vm1284 = vcmp.lt.s32.totalorder %v1280, 0
    %v1285 = vand.u32 %v1280, 2139095040
    %v1286 = vshrl.u32 %v1285, 23
    %v1287 = vsub.s32 %v1286, 127
    %v1288 = vand.u32 2147483647, %v1280
    %v1289 = vand.u32 %v1288, 8388607
    %v1290 = vor.u32 %v1289, 8388608
    %v1291 = vsub.s32 0, %v1290
    %v1292 = vadd.s32 %v1287, 1
    %vm1293 = vcmp.gt.s32.totalorder %v1292, 0
    %v1294 = vsel %vm1293, %v1292, 0
    %v1295 = vshrl.u32 %v1294, 5
    %v1296 = vand.u32 %v1294, 31
    %v1297 = vsub.s32 32, %v1296
    %v1298 = vshrl.u32 683565275, %v1297
    %v1299 = vshll.u32 683565275, %v1296
    %v1300 = vshrl.u32 2475754826, %v1297
    %v1301 = vor.u32 %v1299, %v1300
    %v1302 = vshll.u32 2475754826, %v1296
    %v1303 = vshrl.u32 2131351028, %v1297
    %v1304 = vor.u32 %v1302, %v1303
    %v1305 = vshll.u32 2131351028, %v1296
    %v1306 = vshrl.u32 2102212464, %v1297
    %v1307 = vor.u32 %v1305, %v1306
    %v1308 = vshll.u32 2102212464, %v1296
    %v1309 = vshrl.u32 920167782, %v1297
    %v1310 = vor.u32 %v1308, %v1309
    %v1311 = vshll.u32 920167782, %v1296
    %v1312 = vshrl.u32 1326507024, %v1297
    %v1313 = vor.u32 %v1311, %v1312
    %vm1314 = vcmp.lt.s32.totalorder %v1295, 1
    %vm1315 = vcmp.lt.s32.totalorder %v1295, 2
    %vm1316 = vcmp.lt.s32.totalorder %v1295, 3
    %vm1317 = vcmp.lt.s32.totalorder %v1295, 4
    %v1318 = vsel %vm1314, %v1298, %v1301
    %v1319 = vsel %vm1317, %v1307, 2102212464
    %v1320 = vsel %vm1316, %v1304, %v1319
    %v1321 = vsel %vm1315, %v1318, %v1320
    %v1322 = vsel %vm1314, %v1301, %v1304
    %v1323 = vsel %vm1317, %v1310, 920167782
    %v1324 = vsel %vm1316, %v1307, %v1323
    %v1325 = vsel %vm1315, %v1322, %v1324
    %v1326 = vsel %vm1314, %v1304, %v1307
    %v1327 = vsel %vm1317, %v1313, 1326507024
    %v1328 = vsel %vm1316, %v1310, %v1327
    %v1329 = vsel %vm1315, %v1326, %v1328
    %v1330 = vshll.u32 %v1290, 8
    %v1331 = vmul.u32.u64.compose %v1330, %v1329
    %v1332 = vextract.low.u32 %v1331
    %v1333 = vextract.high.u32 %v1331
    %v1334 = vmul.u32.u64.compose %v1330, %v1325
    %v1335 = vextract.low.u32 %v1334
    %v1336 = vextract.high.u32 %v1334
    %v1337 = vmul.u32 %v1330, %v1321
    %v1338 = vadd.s32 %v1333, %v1335
    %vm1339 = vc.u32 %v1333, %v1335
    %v1340 = vadd.s32 %v1336, 1
    %v1341 = vsel %vm1339, %v1340, %v1336
    %v1342 = vadd.s32 %v1337, %v1341
    %v1343 = vadd.s32 %v1342, 536870912
    %v1344 = vshrl.u32 %v1343, 30
    %v1345 = vshll.u32 %v1344, 30
    %v1346 = vsub.s32 %v1342, %v1345
    %vm1347 = vcmp.lt.s32.totalorder %v1346, 0
    %v1348 = vsub.s32 0, %v1346
    %v1349 = vsel %vm1347, %v1348, %v1346
    %v1350 = vclz %v1349
    %v1351 = vsub.s32 %v1350, 2
    %vm1352 = vcmp.gt.s32.totalorder 0, %v1351
    %v1353 = vsel %vm1352, 0, %v1351
    %v1354 = vsub.s32 32, %v1353
    %v1355 = vshll.u32 %v1346, %v1353
    %v1356 = vshrl.u32 %v1338, %v1354
    %v1357 = vor.u32 %v1355, %v1356
    %v1358 = vsub.s32 4294967266, %v1353
    %v1359 = vadd.s32 %v1358, 127
    %v1360 = vshll.u32 %v1359, 23
    %v1361 = vor.u32 4788187, %v1360
    %v1362 = vand.u32 2147483647, %v1361
    %v1364 = vcvt.s32.f32 %v1357
    %v1365 = vmul.f32 %v1364, %v1362
    %v1366 = vxor.u32 %v1365, 2147483648
    %v1367 = vsel %vm1284, %v1366, %v1365
    %v1368 = vsub.s32 4, %v1344
    %v1369 = vsel %vm1284, %v1368, %v1344
    %v1370 = vsel %vm1283, %v1280, %v1367
    %v1371 = vsel %vm1283, 0, %v1369
    %v1372 = vcosq.f32.pop %v1370
    %v1373 = vsinq.f32.pop %v1370
    %vm1374 = vweird.f32 %v1280
    %v1375 = vadd.s32 %v1371, 3
    %v1376 = vand.u32 %v1375, 3
    %vm1377 = vcmp.lt.s32.totalorder %v1376, 2
    %vm1378 = vcmp.eq.s32.totalorder %v1376, 0
    %v1379 = vxor.u32 %v1373, 2147483648
    %v1380 = vsel %vm1378, %v1372, %v1379
    %vm1381 = vcmp.eq.s32.totalorder %v1376, 2
    %v1382 = vxor.u32 %v1372, 2147483648
    %v1383 = vsel %vm1381, %v1382, %v1373
    %v1384 = vsel %vm1377, %v1380, %v1383
    %v1385 = vsel %vm1374, nan, %v1384
    %v1386 = vand.u32 2147483647, %v1281
    %vm1387 = vcmp.le.f32.partialorder %v1386, 0.7853982
    %vm1388 = vcmp.lt.s32.totalorder %v1281, 0
    %v1389 = vand.u32 %v1281, 2139095040
    %v1390 = vshrl.u32 %v1389, 23
    %v1391 = vsub.s32 %v1390, 127
    %v1392 = vand.u32 2147483647, %v1281
    %v1393 = vand.u32 %v1392, 8388607
    %v1394 = vor.u32 %v1393, 8388608
    %v1395 = vsub.s32 0, %v1394
    %v1396 = vadd.s32 %v1391, 1
    %vm1397 = vcmp.gt.s32.totalorder %v1396, 0
    %v1398 = vsel %vm1397, %v1396, 0
    %v1399 = vshrl.u32 %v1398, 5
    %v1400 = vand.u32 %v1398, 31
    %v1401 = vsub.s32 32, %v1400
    %v1402 = vshrl.u32 683565275, %v1401
    %v1403 = vshll.u32 683565275, %v1400
    %v1404 = vshrl.u32 2475754826, %v1401
    %v1405 = vor.u32 %v1403, %v1404
    %v1406 = vshll.u32 2475754826, %v1400
    %v1407 = vshrl.u32 2131351028, %v1401
    %v1408 = vor.u32 %v1406, %v1407
    %v1409 = vshll.u32 2131351028, %v1400
    %v1410 = vshrl.u32 2102212464, %v1401
    %v1411 = vor.u32 %v1409, %v1410
    %v1412 = vshll.u32 2102212464, %v1400
    %v1413 = vshrl.u32 920167782, %v1401
    %v1414 = vor.u32 %v1412, %v1413
    %v1415 = vshll.u32 920167782, %v1400
    %v1416 = vshrl.u32 1326507024, %v1401
    %v1417 = vor.u32 %v1415, %v1416
    %vm1418 = vcmp.lt.s32.totalorder %v1399, 1
    %vm1419 = vcmp.lt.s32.totalorder %v1399, 2
    %vm1420 = vcmp.lt.s32.totalorder %v1399, 3
    %vm1421 = vcmp.lt.s32.totalorder %v1399, 4
    %v1422 = vsel %vm1418, %v1402, %v1405
    %v1423 = vsel %vm1421, %v1411, 2102212464
    %v1424 = vsel %vm1420, %v1408, %v1423
    %v1425 = vsel %vm1419, %v1422, %v1424
    %v1426 = vsel %vm1418, %v1405, %v1408
    %v1427 = vsel %vm1421, %v1414, 920167782
    %v1428 = vsel %vm1420, %v1411, %v1427
    %v1429 = vsel %vm1419, %v1426, %v1428
    %v1430 = vsel %vm1418, %v1408, %v1411
    %v1431 = vsel %vm1421, %v1417, 1326507024
    %v1432 = vsel %vm1420, %v1414, %v1431
    %v1433 = vsel %vm1419, %v1430, %v1432
    %v1434 = vshll.u32 %v1394, 8
    %v1435 = vmul.u32.u64.compose %v1434, %v1433
    %v1436 = vextract.low.u32 %v1435
    %v1437 = vextract.high.u32 %v1435
    %v1438 = vmul.u32.u64.compose %v1434, %v1429
    %v1439 = vextract.low.u32 %v1438
    %v1440 = vextract.high.u32 %v1438
    %v1441 = vmul.u32 %v1434, %v1425
    %v1442 = vadd.s32 %v1437, %v1439
    %vm1443 = vc.u32 %v1437, %v1439
    %v1444 = vadd.s32 %v1440, 1
    %v1445 = vsel %vm1443, %v1444, %v1440
    %v1446 = vadd.s32 %v1441, %v1445
    %v1447 = vadd.s32 %v1446, 536870912
    %v1448 = vshrl.u32 %v1447, 30
    %v1449 = vshll.u32 %v1448, 30
    %v1450 = vsub.s32 %v1446, %v1449
    %vm1451 = vcmp.lt.s32.totalorder %v1450, 0
    %v1452 = vsub.s32 0, %v1450
    %v1453 = vsel %vm1451, %v1452, %v1450
    %v1454 = vclz %v1453
    %v1455 = vsub.s32 %v1454, 2
    %vm1456 = vcmp.gt.s32.totalorder 0, %v1455
    %v1457 = vsel %vm1456, 0, %v1455
    %v1458 = vsub.s32 32, %v1457
    %v1459 = vshll.u32 %v1450, %v1457
    %v1460 = vshrl.u32 %v1442, %v1458
    %v1461 = vor.u32 %v1459, %v1460
    %v1462 = vsub.s32 4294967266, %v1457
    %v1463 = vadd.s32 %v1462, 127
    %v1464 = vshll.u32 %v1463, 23
    %v1465 = vor.u32 4788187, %v1464
    %v1466 = vand.u32 2147483647, %v1465
    %v1468 = vcvt.s32.f32 %v1461
    %v1469 = vmul.f32 %v1468, %v1466
    %v1470 = vxor.u32 %v1469, 2147483648
    %v1471 = vsel %vm1388, %v1470, %v1469
    %v1472 = vsub.s32 4, %v1448
    %v1473 = vsel %vm1388, %v1472, %v1448
    %v1474 = vsel %vm1387, %v1281, %v1471
    %v1475 = vsel %vm1387, 0, %v1473
    %v1476 = vcosq.f32.pop %v1474
    %v1477 = vsinq.f32.pop %v1474
    %vm1478 = vweird.f32 %v1281
    %v1479 = vadd.s32 %v1475, 3
    %v1480 = vand.u32 %v1479, 3
    %vm1481 = vcmp.lt.s32.totalorder %v1480, 2
    %vm1482 = vcmp.eq.s32.totalorder %v1480, 0
    %v1483 = vxor.u32 %v1477, 2147483648
    %v1484 = vsel %vm1482, %v1476, %v1483
    %vm1485 = vcmp.eq.s32.totalorder %v1480, 2
    %v1486 = vxor.u32 %v1476, 2147483648
    %v1487 = vsel %vm1485, %v1486, %v1477
    %v1488 = vsel %vm1481, %v1484, %v1487
    %v1489 = vsel %vm1478, nan, %v1488
    %v1490 = vand.u32 2147483647, %v1280
    %vm1491 = vcmp.le.f32.partialorder %v1490, 0.7853982
    %vm1492 = vcmp.lt.s32.totalorder %v1280, 0
    %v1493 = vand.u32 %v1280, 2139095040
    %v1494 = vshrl.u32 %v1493, 23
    %v1495 = vsub.s32 %v1494, 127
    %v1496 = vand.u32 2147483647, %v1280
    %v1497 = vand.u32 %v1496, 8388607
    %v1498 = vor.u32 %v1497, 8388608
    %v1499 = vsub.s32 0, %v1498
    %v1500 = vadd.s32 %v1495, 1
    %vm1501 = vcmp.gt.s32.totalorder %v1500, 0
    %v1502 = vsel %vm1501, %v1500, 0
    %v1503 = vshrl.u32 %v1502, 5
    %v1504 = vand.u32 %v1502, 31
    %v1505 = vsub.s32 32, %v1504
    %v1506 = vshrl.u32 683565275, %v1505
    %v1507 = vshll.u32 683565275, %v1504
    %v1508 = vshrl.u32 2475754826, %v1505
    %v1509 = vor.u32 %v1507, %v1508
    %v1510 = vshll.u32 2475754826, %v1504
    %v1511 = vshrl.u32 2131351028, %v1505
    %v1512 = vor.u32 %v1510, %v1511
    %v1513 = vshll.u32 2131351028, %v1504
    %v1514 = vshrl.u32 2102212464, %v1505
    %v1515 = vor.u32 %v1513, %v1514
    %v1516 = vshll.u32 2102212464, %v1504
    %v1517 = vshrl.u32 920167782, %v1505
    %v1518 = vor.u32 %v1516, %v1517
    %v1519 = vshll.u32 920167782, %v1504
    %v1520 = vshrl.u32 1326507024, %v1505
    %v1521 = vor.u32 %v1519, %v1520
    %vm1522 = vcmp.lt.s32.totalorder %v1503, 1
    %vm1523 = vcmp.lt.s32.totalorder %v1503, 2
    %vm1524 = vcmp.lt.s32.totalorder %v1503, 3
    %vm1525 = vcmp.lt.s32.totalorder %v1503, 4
    %v1526 = vsel %vm1522, %v1506, %v1509
    %v1527 = vsel %vm1525, %v1515, 2102212464
    %v1528 = vsel %vm1524, %v1512, %v1527
    %v1529 = vsel %vm1523, %v1526, %v1528
    %v1530 = vsel %vm1522, %v1509, %v1512
    %v1531 = vsel %vm1525, %v1518, 920167782
    %v1532 = vsel %vm1524, %v1515, %v1531
    %v1533 = vsel %vm1523, %v1530, %v1532
    %v1534 = vsel %vm1522, %v1512, %v1515
    %v1535 = vsel %vm1525, %v1521, 1326507024
    %v1536 = vsel %vm1524, %v1518, %v1535
    %v1537 = vsel %vm1523, %v1534, %v1536
    %v1538 = vshll.u32 %v1498, 8
    %v1539 = vmul.u32.u64.compose %v1538, %v1537
    %v1540 = vextract.low.u32 %v1539
    %v1541 = vextract.high.u32 %v1539
    %v1542 = vmul.u32.u64.compose %v1538, %v1533
    %v1543 = vextract.low.u32 %v1542
    %v1544 = vextract.high.u32 %v1542
    %v1545 = vmul.u32 %v1538, %v1529
    %v1546 = vadd.s32 %v1541, %v1543
    %vm1547 = vc.u32 %v1541, %v1543
    %v1548 = vadd.s32 %v1544, 1
    %v1549 = vsel %vm1547, %v1548, %v1544
    %v1550 = vadd.s32 %v1545, %v1549
    %v1551 = vadd.s32 %v1550, 536870912
    %v1552 = vshrl.u32 %v1551, 30
    %v1553 = vshll.u32 %v1552, 30
    %v1554 = vsub.s32 %v1550, %v1553
    %vm1555 = vcmp.lt.s32.totalorder %v1554, 0
    %v1556 = vsub.s32 0, %v1554
    %v1557 = vsel %vm1555, %v1556, %v1554
    %v1558 = vclz %v1557
    %v1559 = vsub.s32 %v1558, 2
    %vm1560 = vcmp.gt.s32.totalorder 0, %v1559
    %v1561 = vsel %vm1560, 0, %v1559
    %v1562 = vsub.s32 32, %v1561
    %v1563 = vshll.u32 %v1554, %v1561
    %v1564 = vshrl.u32 %v1546, %v1562
    %v1565 = vor.u32 %v1563, %v1564
    %v1566 = vsub.s32 4294967266, %v1561
    %v1567 = vadd.s32 %v1566, 127
    %v1568 = vshll.u32 %v1567, 23
    %v1569 = vor.u32 4788187, %v1568
    %v1570 = vand.u32 2147483647, %v1569
    %v1572 = vcvt.s32.f32 %v1565
    %v1573 = vmul.f32 %v1572, %v1570
    %v1574 = vxor.u32 %v1573, 2147483648
    %v1575 = vsel %vm1492, %v1574, %v1573
    %v1576 = vsub.s32 4, %v1552
    %v1577 = vsel %vm1492, %v1576, %v1552
    %v1578 = vsel %vm1491, %v1280, %v1575
    %v1579 = vsel %vm1491, 0, %v1577
    %v1580 = vcosq.f32.pop %v1578
    %v1581 = vsinq.f32.pop %v1578
    %vm1582 = vweird.f32 %v1280
    %v1583 = vand.u32 %v1579, 3
    %vm1584 = vcmp.lt.s32.totalorder %v1583, 2
    %vm1585 = vcmp.eq.s32.totalorder %v1583, 0
    %v1586 = vxor.u32 %v1581, 2147483648
    %v1587 = vsel %vm1585, %v1580, %v1586
    %vm1588 = vcmp.eq.s32.totalorder %v1583, 2
    %v1589 = vxor.u32 %v1580, 2147483648
    %v1590 = vsel %vm1588, %v1589, %v1581
    %v1591 = vsel %vm1584, %v1587, %v1590
    %v1592 = vsel %vm1582, nan, %v1591
    %v1593 = vand.u32 2147483647, %v1281
    %vm1594 = vcmp.le.f32.partialorder %v1593, 0.7853982
    %vm1595 = vcmp.lt.s32.totalorder %v1281, 0
    %v1596 = vand.u32 %v1281, 2139095040
    %v1597 = vshrl.u32 %v1596, 23
    %v1598 = vsub.s32 %v1597, 127
    %v1599 = vand.u32 2147483647, %v1281
    %v1600 = vand.u32 %v1599, 8388607
    %v1601 = vor.u32 %v1600, 8388608
    %v1602 = vsub.s32 0, %v1601
    %v1603 = vadd.s32 %v1598, 1
    %vm1604 = vcmp.gt.s32.totalorder %v1603, 0
    %v1605 = vsel %vm1604, %v1603, 0
    %v1606 = vshrl.u32 %v1605, 5
    %v1607 = vand.u32 %v1605, 31
    %v1608 = vsub.s32 32, %v1607
    %v1609 = vshrl.u32 683565275, %v1608
    %v1610 = vshll.u32 683565275, %v1607
    %v1611 = vshrl.u32 2475754826, %v1608
    %v1612 = vor.u32 %v1610, %v1611
    %v1613 = vshll.u32 2475754826, %v1607
    %v1614 = vshrl.u32 2131351028, %v1608
    %v1615 = vor.u32 %v1613, %v1614
    %v1616 = vshll.u32 2131351028, %v1607
    %v1617 = vshrl.u32 2102212464, %v1608
    %v1618 = vor.u32 %v1616, %v1617
    %v1619 = vshll.u32 2102212464, %v1607
    %v1620 = vshrl.u32 920167782, %v1608
    %v1621 = vor.u32 %v1619, %v1620
    %v1622 = vshll.u32 920167782, %v1607
    %v1623 = vshrl.u32 1326507024, %v1608
    %v1624 = vor.u32 %v1622, %v1623
    %vm1625 = vcmp.lt.s32.totalorder %v1606, 1
    %vm1626 = vcmp.lt.s32.totalorder %v1606, 2
    %vm1627 = vcmp.lt.s32.totalorder %v1606, 3
    %vm1628 = vcmp.lt.s32.totalorder %v1606, 4
    %v1629 = vsel %vm1625, %v1609, %v1612
    %v1630 = vsel %vm1628, %v1618, 2102212464
    %v1631 = vsel %vm1627, %v1615, %v1630
    %v1632 = vsel %vm1626, %v1629, %v1631
    %v1633 = vsel %vm1625, %v1612, %v1615
    %v1634 = vsel %vm1628, %v1621, 920167782
    %v1635 = vsel %vm1627, %v1618, %v1634
    %v1636 = vsel %vm1626, %v1633, %v1635
    %v1637 = vsel %vm1625, %v1615, %v1618
    %v1638 = vsel %vm1628, %v1624, 1326507024
    %v1639 = vsel %vm1627, %v1621, %v1638
    %v1640 = vsel %vm1626, %v1637, %v1639
    %v1641 = vshll.u32 %v1601, 8
    %v1642 = vmul.u32.u64.compose %v1641, %v1640
    %v1643 = vextract.low.u32 %v1642
    %v1644 = vextract.high.u32 %v1642
    %v1645 = vmul.u32.u64.compose %v1641, %v1636
    %v1646 = vextract.low.u32 %v1645
    %v1647 = vextract.high.u32 %v1645
    %v1648 = vmul.u32 %v1641, %v1632
    %v1649 = vadd.s32 %v1644, %v1646
    %vm1650 = vc.u32 %v1644, %v1646
    %v1651 = vadd.s32 %v1647, 1
    %v1652 = vsel %vm1650, %v1651, %v1647
    %v1653 = vadd.s32 %v1648, %v1652
    %v1654 = vadd.s32 %v1653, 536870912
    %v1655 = vshrl.u32 %v1654, 30
    %v1656 = vshll.u32 %v1655, 30
    %v1657 = vsub.s32 %v1653, %v1656
    %vm1658 = vcmp.lt.s32.totalorder %v1657, 0
    %v1659 = vsub.s32 0, %v1657
    %v1660 = vsel %vm1658, %v1659, %v1657
    %v1661 = vclz %v1660
    %v1662 = vsub.s32 %v1661, 2
    %vm1663 = vcmp.gt.s32.totalorder 0, %v1662
    %v1664 = vsel %vm1663, 0, %v1662
    %v1665 = vsub.s32 32, %v1664
    %v1666 = vshll.u32 %v1657, %v1664
    %v1667 = vshrl.u32 %v1649, %v1665
    %v1668 = vor.u32 %v1666, %v1667
    %v1669 = vsub.s32 4294967266, %v1664
    %v1670 = vadd.s32 %v1669, 127
    %v1671 = vshll.u32 %v1670, 23
    %v1672 = vor.u32 4788187, %v1671
    %v1673 = vand.u32 2147483647, %v1672
    %v1675 = vcvt.s32.f32 %v1668
    %v1676 = vmul.f32 %v1675, %v1673
    %v1677 = vxor.u32 %v1676, 2147483648
    %v1678 = vsel %vm1595, %v1677, %v1676
    %v1679 = vsub.s32 4, %v1655
    %v1680 = vsel %vm1595, %v1679, %v1655
    %v1681 = vsel %vm1594, %v1281, %v1678
    %v1682 = vsel %vm1594, 0, %v1680
    %v1683 = vcosq.f32.pop %v1681
    %v1684 = vsinq.f32.pop %v1681
    %vm1685 = vweird.f32 %v1281
    %v1686 = vand.u32 %v1682, 3
    %vm1687 = vcmp.lt.s32.totalorder %v1686, 2
    %vm1688 = vcmp.eq.s32.totalorder %v1686, 0
    %v1689 = vxor.u32 %v1684, 2147483648
    %v1690 = vsel %vm1688, %v1683, %v1689
    %vm1691 = vcmp.eq.s32.totalorder %v1686, 2
    %v1692 = vxor.u32 %v1683, 2147483648
    %v1693 = vsel %vm1691, %v1692, %v1684
    %v1694 = vsel %vm1687, %v1690, %v1693
    %v1695 = vsel %vm1685, nan, %v1694
    %v1696 = vmul.f32 %v32, 16.0
    %v1697 = vmul.f32 %v33, 16.0
    %v1698 = vand.u32 2147483647, %v1696
    %vm1699 = vcmp.le.f32.partialorder %v1698, 0.7853982
    %vm1700 = vcmp.lt.s32.totalorder %v1696, 0
    %v1701 = vand.u32 %v1696, 2139095040
    %v1702 = vshrl.u32 %v1701, 23
    %v1703 = vsub.s32 %v1702, 127
    %v1704 = vand.u32 2147483647, %v1696
    %v1705 = vand.u32 %v1704, 8388607
    %v1706 = vor.u32 %v1705, 8388608
    %v1707 = vsub.s32 0, %v1706
    %v1708 = vadd.s32 %v1703, 1
    %vm1709 = vcmp.gt.s32.totalorder %v1708, 0
    %v1710 = vsel %vm1709, %v1708, 0
    %v1711 = vshrl.u32 %v1710, 5
    %v1712 = vand.u32 %v1710, 31
    %v1713 = vsub.s32 32, %v1712
    %v1714 = vshrl.u32 683565275, %v1713
    %v1715 = vshll.u32 683565275, %v1712
    %v1716 = vshrl.u32 2475754826, %v1713
    %v1717 = vor.u32 %v1715, %v1716
    %v1718 = vshll.u32 2475754826, %v1712
    %v1719 = vshrl.u32 2131351028, %v1713
    %v1720 = vor.u32 %v1718, %v1719
    %v1721 = vshll.u32 2131351028, %v1712
    %v1722 = vshrl.u32 2102212464, %v1713
    %v1723 = vor.u32 %v1721, %v1722
    %v1724 = vshll.u32 2102212464, %v1712
    %v1725 = vshrl.u32 920167782, %v1713
    %v1726 = vor.u32 %v1724, %v1725
    %v1727 = vshll.u32 920167782, %v1712
    %v1728 = vshrl.u32 1326507024, %v1713
    %v1729 = vor.u32 %v1727, %v1728
    %vm1730 = vcmp.lt.s32.totalorder %v1711, 1
    %vm1731 = vcmp.lt.s32.totalorder %v1711, 2
    %vm1732 = vcmp.lt.s32.totalorder %v1711, 3
    %vm1733 = vcmp.lt.s32.totalorder %v1711, 4
    %v1734 = vsel %vm1730, %v1714, %v1717
    %v1735 = vsel %vm1733, %v1723, 2102212464
    %v1736 = vsel %vm1732, %v1720, %v1735
    %v1737 = vsel %vm1731, %v1734, %v1736
    %v1738 = vsel %vm1730, %v1717, %v1720
    %v1739 = vsel %vm1733, %v1726, 920167782
    %v1740 = vsel %vm1732, %v1723, %v1739
    %v1741 = vsel %vm1731, %v1738, %v1740
    %v1742 = vsel %vm1730, %v1720, %v1723
    %v1743 = vsel %vm1733, %v1729, 1326507024
    %v1744 = vsel %vm1732, %v1726, %v1743
    %v1745 = vsel %vm1731, %v1742, %v1744
    %v1746 = vshll.u32 %v1706, 8
    %v1747 = vmul.u32.u64.compose %v1746, %v1745
    %v1748 = vextract.low.u32 %v1747
    %v1749 = vextract.high.u32 %v1747
    %v1750 = vmul.u32.u64.compose %v1746, %v1741
    %v1751 = vextract.low.u32 %v1750
    %v1752 = vextract.high.u32 %v1750
    %v1753 = vmul.u32 %v1746, %v1737
    %v1754 = vadd.s32 %v1749, %v1751
    %vm1755 = vc.u32 %v1749, %v1751
    %v1756 = vadd.s32 %v1752, 1
    %v1757 = vsel %vm1755, %v1756, %v1752
    %v1758 = vadd.s32 %v1753, %v1757
    %v1759 = vadd.s32 %v1758, 536870912
    %v1760 = vshrl.u32 %v1759, 30
    %v1761 = vshll.u32 %v1760, 30
    %v1762 = vsub.s32 %v1758, %v1761
    %vm1763 = vcmp.lt.s32.totalorder %v1762, 0
    %v1764 = vsub.s32 0, %v1762
    %v1765 = vsel %vm1763, %v1764, %v1762
    %v1766 = vclz %v1765
    %v1767 = vsub.s32 %v1766, 2
    %vm1768 = vcmp.gt.s32.totalorder 0, %v1767
    %v1769 = vsel %vm1768, 0, %v1767
    %v1770 = vsub.s32 32, %v1769
    %v1771 = vshll.u32 %v1762, %v1769
    %v1772 = vshrl.u32 %v1754, %v1770
    %v1773 = vor.u32 %v1771, %v1772
    %v1774 = vsub.s32 4294967266, %v1769
    %v1775 = vadd.s32 %v1774, 127
    %v1776 = vshll.u32 %v1775, 23
    %v1777 = vor.u32 4788187, %v1776
    %v1778 = vand.u32 2147483647, %v1777
    %v1780 = vcvt.s32.f32 %v1773
    %v1781 = vmul.f32 %v1780, %v1778
    %v1782 = vxor.u32 %v1781, 2147483648
    %v1783 = vsel %vm1700, %v1782, %v1781
    %v1784 = vsub.s32 4, %v1760
    %v1785 = vsel %vm1700, %v1784, %v1760
    %v1786 = vsel %vm1699, %v1696, %v1783
    %v1787 = vsel %vm1699, 0, %v1785
    %v1788 = vcosq.f32.pop %v1786
    %v1789 = vsinq.f32.pop %v1786
    %vm1790 = vweird.f32 %v1696
    %v1791 = vadd.s32 %v1787, 3
    %v1792 = vand.u32 %v1791, 3
    %vm1793 = vcmp.lt.s32.totalorder %v1792, 2
    %vm1794 = vcmp.eq.s32.totalorder %v1792, 0
    %v1795 = vxor.u32 %v1789, 2147483648
    %v1796 = vsel %vm1794, %v1788, %v1795
    %vm1797 = vcmp.eq.s32.totalorder %v1792, 2
    %v1798 = vxor.u32 %v1788, 2147483648
    %v1799 = vsel %vm1797, %v1798, %v1789
    %v1800 = vsel %vm1793, %v1796, %v1799
    %v1801 = vsel %vm1790, nan, %v1800
    %v1802 = vand.u32 2147483647, %v1697
    %vm1803 = vcmp.le.f32.partialorder %v1802, 0.7853982
    %vm1804 = vcmp.lt.s32.totalorder %v1697, 0
    %v1805 = vand.u32 %v1697, 2139095040
    %v1806 = vshrl.u32 %v1805, 23
    %v1807 = vsub.s32 %v1806, 127
    %v1808 = vand.u32 2147483647, %v1697
    %v1809 = vand.u32 %v1808, 8388607
    %v1810 = vor.u32 %v1809, 8388608
    %v1811 = vsub.s32 0, %v1810
    %v1812 = vadd.s32 %v1807, 1
    %vm1813 = vcmp.gt.s32.totalorder %v1812, 0
    %v1814 = vsel %vm1813, %v1812, 0
    %v1815 = vshrl.u32 %v1814, 5
    %v1816 = vand.u32 %v1814, 31
    %v1817 = vsub.s32 32, %v1816
    %v1818 = vshrl.u32 683565275, %v1817
    %v1819 = vshll.u32 683565275, %v1816
    %v1820 = vshrl.u32 2475754826, %v1817
    %v1821 = vor.u32 %v1819, %v1820
    %v1822 = vshll.u32 2475754826, %v1816
    %v1823 = vshrl.u32 2131351028, %v1817
    %v1824 = vor.u32 %v1822, %v1823
    %v1825 = vshll.u32 2131351028, %v1816
    %v1826 = vshrl.u32 2102212464, %v1817
    %v1827 = vor.u32 %v1825, %v1826
    %v1828 = vshll.u32 2102212464, %v1816
    %v1829 = vshrl.u32 920167782, %v1817
    %v1830 = vor.u32 %v1828, %v1829
    %v1831 = vshll.u32 920167782, %v1816
    %v1832 = vshrl.u32 1326507024, %v1817
    %v1833 = vor.u32 %v1831, %v1832
    %vm1834 = vcmp.lt.s32.totalorder %v1815, 1
    %vm1835 = vcmp.lt.s32.totalorder %v1815, 2
    %vm1836 = vcmp.lt.s32.totalorder %v1815, 3
    %vm1837 = vcmp.lt.s32.totalorder %v1815, 4
    %v1838 = vsel %vm1834, %v1818, %v1821
    %v1839 = vsel %vm1837, %v1827, 2102212464
    %v1840 = vsel %vm1836, %v1824, %v1839
    %v1841 = vsel %vm1835, %v1838, %v1840
    %v1842 = vsel %vm1834, %v1821, %v1824
    %v1843 = vsel %vm1837, %v1830, 920167782
    %v1844 = vsel %vm1836, %v1827, %v1843
    %v1845 = vsel %vm1835, %v1842, %v1844
    %v1846 = vsel %vm1834, %v1824, %v1827
    %v1847 = vsel %vm1837, %v1833, 1326507024
    %v1848 = vsel %vm1836, %v1830, %v1847
    %v1849 = vsel %vm1835, %v1846, %v1848
    %v1850 = vshll.u32 %v1810, 8
    %v1851 = vmul.u32.u64.compose %v1850, %v1849
    %v1852 = vextract.low.u32 %v1851
    %v1853 = vextract.high.u32 %v1851
    %v1854 = vmul.u32.u64.compose %v1850, %v1845
    %v1855 = vextract.low.u32 %v1854
    %v1856 = vextract.high.u32 %v1854
    %v1857 = vmul.u32 %v1850, %v1841
    %v1858 = vadd.s32 %v1853, %v1855
    %vm1859 = vc.u32 %v1853, %v1855
    %v1860 = vadd.s32 %v1856, 1
    %v1861 = vsel %vm1859, %v1860, %v1856
    %v1862 = vadd.s32 %v1857, %v1861
    %v1863 = vadd.s32 %v1862, 536870912
    %v1864 = vshrl.u32 %v1863, 30
    %v1865 = vshll.u32 %v1864, 30
    %v1866 = vsub.s32 %v1862, %v1865
    %vm1867 = vcmp.lt.s32.totalorder %v1866, 0
    %v1868 = vsub.s32 0, %v1866
    %v1869 = vsel %vm1867, %v1868, %v1866
    %v1870 = vclz %v1869
    %v1871 = vsub.s32 %v1870, 2
    %vm1872 = vcmp.gt.s32.totalorder 0, %v1871
    %v1873 = vsel %vm1872, 0, %v1871
    %v1874 = vsub.s32 32, %v1873
    %v1875 = vshll.u32 %v1866, %v1873
    %v1876 = vshrl.u32 %v1858, %v1874
    %v1877 = vor.u32 %v1875, %v1876
    %v1878 = vsub.s32 4294967266, %v1873
    %v1879 = vadd.s32 %v1878, 127
    %v1880 = vshll.u32 %v1879, 23
    %v1881 = vor.u32 4788187, %v1880
    %v1882 = vand.u32 2147483647, %v1881
    %v1884 = vcvt.s32.f32 %v1877
    %v1885 = vmul.f32 %v1884, %v1882
    %v1886 = vxor.u32 %v1885, 2147483648
    %v1887 = vsel %vm1804, %v1886, %v1885
    %v1888 = vsub.s32 4, %v1864
    %v1889 = vsel %vm1804, %v1888, %v1864
    %v1890 = vsel %vm1803, %v1697, %v1887
    %v1891 = vsel %vm1803, 0, %v1889
    %v1892 = vcosq.f32.pop %v1890
    %v1893 = vsinq.f32.pop %v1890
    %vm1894 = vweird.f32 %v1697
    %v1895 = vadd.s32 %v1891, 3
    %v1896 = vand.u32 %v1895, 3
    %vm1897 = vcmp.lt.s32.totalorder %v1896, 2
    %vm1898 = vcmp.eq.s32.totalorder %v1896, 0
    %v1899 = vxor.u32 %v1893, 2147483648
    %v1900 = vsel %vm1898, %v1892, %v1899
    %vm1901 = vcmp.eq.s32.totalorder %v1896, 2
    %v1902 = vxor.u32 %v1892, 2147483648
    %v1903 = vsel %vm1901, %v1902, %v1893
    %v1904 = vsel %vm1897, %v1900, %v1903
    %v1905 = vsel %vm1894, nan, %v1904
    %v1906 = vand.u32 2147483647, %v1696
    %vm1907 = vcmp.le.f32.partialorder %v1906, 0.7853982
    %vm1908 = vcmp.lt.s32.totalorder %v1696, 0
    %v1909 = vand.u32 %v1696, 2139095040
    %v1910 = vshrl.u32 %v1909, 23
    %v1911 = vsub.s32 %v1910, 127
    %v1912 = vand.u32 2147483647, %v1696
    %v1913 = vand.u32 %v1912, 8388607
    %v1914 = vor.u32 %v1913, 8388608
    %v1915 = vsub.s32 0, %v1914
    %v1916 = vadd.s32 %v1911, 1
    %vm1917 = vcmp.gt.s32.totalorder %v1916, 0
    %v1918 = vsel %vm1917, %v1916, 0
    %v1919 = vshrl.u32 %v1918, 5
    %v1920 = vand.u32 %v1918, 31
    %v1921 = vsub.s32 32, %v1920
    %v1922 = vshrl.u32 683565275, %v1921
    %v1923 = vshll.u32 683565275, %v1920
    %v1924 = vshrl.u32 2475754826, %v1921
    %v1925 = vor.u32 %v1923, %v1924
    %v1926 = vshll.u32 2475754826, %v1920
    %v1927 = vshrl.u32 2131351028, %v1921
    %v1928 = vor.u32 %v1926, %v1927
    %v1929 = vshll.u32 2131351028, %v1920
    %v1930 = vshrl.u32 2102212464, %v1921
    %v1931 = vor.u32 %v1929, %v1930
    %v1932 = vshll.u32 2102212464, %v1920
    %v1933 = vshrl.u32 920167782, %v1921
    %v1934 = vor.u32 %v1932, %v1933
    %v1935 = vshll.u32 920167782, %v1920
    %v1936 = vshrl.u32 1326507024, %v1921
    %v1937 = vor.u32 %v1935, %v1936
    %vm1938 = vcmp.lt.s32.totalorder %v1919, 1
    %vm1939 = vcmp.lt.s32.totalorder %v1919, 2
    %vm1940 = vcmp.lt.s32.totalorder %v1919, 3
    %vm1941 = vcmp.lt.s32.totalorder %v1919, 4
    %v1942 = vsel %vm1938, %v1922, %v1925
    %v1943 = vsel %vm1941, %v1931, 2102212464
    %v1944 = vsel %vm1940, %v1928, %v1943
    %v1945 = vsel %vm1939, %v1942, %v1944
    %v1946 = vsel %vm1938, %v1925, %v1928
    %v1947 = vsel %vm1941, %v1934, 920167782
    %v1948 = vsel %vm1940, %v1931, %v1947
    %v1949 = vsel %vm1939, %v1946, %v1948
    %v1950 = vsel %vm1938, %v1928, %v1931
    %v1951 = vsel %vm1941, %v1937, 1326507024
    %v1952 = vsel %vm1940, %v1934, %v1951
    %v1953 = vsel %vm1939, %v1950, %v1952
    %v1954 = vshll.u32 %v1914, 8
    %v1955 = vmul.u32.u64.compose %v1954, %v1953
    %v1956 = vextract.low.u32 %v1955
    %v1957 = vextract.high.u32 %v1955
    %v1958 = vmul.u32.u64.compose %v1954, %v1949
    %v1959 = vextract.low.u32 %v1958
    %v1960 = vextract.high.u32 %v1958
    %v1961 = vmul.u32 %v1954, %v1945
    %v1962 = vadd.s32 %v1957, %v1959
    %vm1963 = vc.u32 %v1957, %v1959
    %v1964 = vadd.s32 %v1960, 1
    %v1965 = vsel %vm1963, %v1964, %v1960
    %v1966 = vadd.s32 %v1961, %v1965
    %v1967 = vadd.s32 %v1966, 536870912
    %v1968 = vshrl.u32 %v1967, 30
    %v1969 = vshll.u32 %v1968, 30
    %v1970 = vsub.s32 %v1966, %v1969
    %vm1971 = vcmp.lt.s32.totalorder %v1970, 0
    %v1972 = vsub.s32 0, %v1970
    %v1973 = vsel %vm1971, %v1972, %v1970
    %v1974 = vclz %v1973
    %v1975 = vsub.s32 %v1974, 2
    %vm1976 = vcmp.gt.s32.totalorder 0, %v1975
    %v1977 = vsel %vm1976, 0, %v1975
    %v1978 = vsub.s32 32, %v1977
    %v1979 = vshll.u32 %v1970, %v1977
    %v1980 = vshrl.u32 %v1962, %v1978
    %v1981 = vor.u32 %v1979, %v1980
    %v1982 = vsub.s32 4294967266, %v1977
    %v1983 = vadd.s32 %v1982, 127
    %v1984 = vshll.u32 %v1983, 23
    %v1985 = vor.u32 4788187, %v1984
    %v1986 = vand.u32 2147483647, %v1985
    %v1988 = vcvt.s32.f32 %v1981
    %v1989 = vmul.f32 %v1988, %v1986
    %v1990 = vxor.u32 %v1989, 2147483648
    %v1991 = vsel %vm1908, %v1990, %v1989
    %v1992 = vsub.s32 4, %v1968
    %v1993 = vsel %vm1908, %v1992, %v1968
    %v1994 = vsel %vm1907, %v1696, %v1991
    %v1995 = vsel %vm1907, 0, %v1993
    %v1996 = vcosq.f32.pop %v1994
    %v1997 = vsinq.f32.pop %v1994
    %vm1998 = vweird.f32 %v1696
    %v1999 = vand.u32 %v1995, 3
    %vm2000 = vcmp.lt.s32.totalorder %v1999, 2
    %vm2001 = vcmp.eq.s32.totalorder %v1999, 0
    %v2002 = vxor.u32 %v1997, 2147483648
    %v2003 = vsel %vm2001, %v1996, %v2002
    %vm2004 = vcmp.eq.s32.totalorder %v1999, 2
    %v2005 = vxor.u32 %v1996, 2147483648
    %v2006 = vsel %vm2004, %v2005, %v1997
    %v2007 = vsel %vm2000, %v2003, %v2006
    %v2008 = vsel %vm1998, nan, %v2007
    %v2009 = vand.u32 2147483647, %v1697
    %vm2010 = vcmp.le.f32.partialorder %v2009, 0.7853982
    %vm2011 = vcmp.lt.s32.totalorder %v1697, 0
    %v2012 = vand.u32 %v1697, 2139095040
    %v2013 = vshrl.u32 %v2012, 23
    %v2014 = vsub.s32 %v2013, 127
    %v2015 = vand.u32 2147483647, %v1697
    %v2016 = vand.u32 %v2015, 8388607
    %v2017 = vor.u32 %v2016, 8388608
    %v2018 = vsub.s32 0, %v2017
    %v2019 = vadd.s32 %v2014, 1
    %vm2020 = vcmp.gt.s32.totalorder %v2019, 0
    %v2021 = vsel %vm2020, %v2019, 0
    %v2022 = vshrl.u32 %v2021, 5
    %v2023 = vand.u32 %v2021, 31
    %v2024 = vsub.s32 32, %v2023
    %v2025 = vshrl.u32 683565275, %v2024
    %v2026 = vshll.u32 683565275, %v2023
    %v2027 = vshrl.u32 2475754826, %v2024
    %v2028 = vor.u32 %v2026, %v2027
    %v2029 = vshll.u32 2475754826, %v2023
    %v2030 = vshrl.u32 2131351028, %v2024
    %v2031 = vor.u32 %v2029, %v2030
    %v2032 = vshll.u32 2131351028, %v2023
    %v2033 = vshrl.u32 2102212464, %v2024
    %v2034 = vor.u32 %v2032, %v2033
    %v2035 = vshll.u32 2102212464, %v2023
    %v2036 = vshrl.u32 920167782, %v2024
    %v2037 = vor.u32 %v2035, %v2036
    %v2038 = vshll.u32 920167782, %v2023
    %v2039 = vshrl.u32 1326507024, %v2024
    %v2040 = vor.u32 %v2038, %v2039
    %vm2041 = vcmp.lt.s32.totalorder %v2022, 1
    %vm2042 = vcmp.lt.s32.totalorder %v2022, 2
    %vm2043 = vcmp.lt.s32.totalorder %v2022, 3
    %vm2044 = vcmp.lt.s32.totalorder %v2022, 4
    %v2045 = vsel %vm2041, %v2025, %v2028
    %v2046 = vsel %vm2044, %v2034, 2102212464
    %v2047 = vsel %vm2043, %v2031, %v2046
    %v2048 = vsel %vm2042, %v2045, %v2047
    %v2049 = vsel %vm2041, %v2028, %v2031
    %v2050 = vsel %vm2044, %v2037, 920167782
    %v2051 = vsel %vm2043, %v2034, %v2050
    %v2052 = vsel %vm2042, %v2049, %v2051
    %v2053 = vsel %vm2041, %v2031, %v2034
    %v2054 = vsel %vm2044, %v2040, 1326507024
    %v2055 = vsel %vm2043, %v2037, %v2054
    %v2056 = vsel %vm2042, %v2053, %v2055
    %v2057 = vshll.u32 %v2017, 8
    %v2058 = vmul.u32.u64.compose %v2057, %v2056
    %v2059 = vextract.low.u32 %v2058
    %v2060 = vextract.high.u32 %v2058
    %v2061 = vmul.u32.u64.compose %v2057, %v2052
    %v2062 = vextract.low.u32 %v2061
    %v2063 = vextract.high.u32 %v2061
    %v2064 = vmul.u32 %v2057, %v2048
    %v2065 = vadd.s32 %v2060, %v2062
    %vm2066 = vc.u32 %v2060, %v2062
    %v2067 = vadd.s32 %v2063, 1
    %v2068 = vsel %vm2066, %v2067, %v2063
    %v2069 = vadd.s32 %v2064, %v2068
    %v2070 = vadd.s32 %v2069, 536870912
    %v2071 = vshrl.u32 %v2070, 30
    %v2072 = vshll.u32 %v2071, 30
    %v2073 = vsub.s32 %v2069, %v2072
    %vm2074 = vcmp.lt.s32.totalorder %v2073, 0
    %v2075 = vsub.s32 0, %v2073
    %v2076 = vsel %vm2074, %v2075, %v2073
    %v2077 = vclz %v2076
    %v2078 = vsub.s32 %v2077, 2
    %vm2079 = vcmp.gt.s32.totalorder 0, %v2078
    %v2080 = vsel %vm2079, 0, %v2078
    %v2081 = vsub.s32 32, %v2080
    %v2082 = vshll.u32 %v2073, %v2080
    %v2083 = vshrl.u32 %v2065, %v2081
    %v2084 = vor.u32 %v2082, %v2083
    %v2085 = vsub.s32 4294967266, %v2080
    %v2086 = vadd.s32 %v2085, 127
    %v2087 = vshll.u32 %v2086, 23
    %v2088 = vor.u32 4788187, %v2087
    %v2089 = vand.u32 2147483647, %v2088
    %v2091 = vcvt.s32.f32 %v2084
    %v2092 = vmul.f32 %v2091, %v2089
    %v2093 = vxor.u32 %v2092, 2147483648
    %v2094 = vsel %vm2011, %v2093, %v2092
    %v2095 = vsub.s32 4, %v2071
    %v2096 = vsel %vm2011, %v2095, %v2071
    %v2097 = vsel %vm2010, %v1697, %v2094
    %v2098 = vsel %vm2010, 0, %v2096
    %v2099 = vcosq.f32.pop %v2097
    %v2100 = vsinq.f32.pop %v2097
    %vm2101 = vweird.f32 %v1697
    %v2102 = vand.u32 %v2098, 3
    %vm2103 = vcmp.lt.s32.totalorder %v2102, 2
    %vm2104 = vcmp.eq.s32.totalorder %v2102, 0
    %v2105 = vxor.u32 %v2100, 2147483648
    %v2106 = vsel %vm2104, %v2099, %v2105
    %vm2107 = vcmp.eq.s32.totalorder %v2102, 2
    %v2108 = vxor.u32 %v2099, 2147483648
    %v2109 = vsel %vm2107, %v2108, %v2100
    %v2110 = vsel %vm2103, %v2106, %v2109
    %v2111 = vsel %vm2101, nan, %v2110
    %v2112 = vmul.f32 %v32, 32.0
    %v2113 = vmul.f32 %v33, 32.0
    %v2114 = vand.u32 2147483647, %v2112
    %vm2115 = vcmp.le.f32.partialorder %v2114, 0.7853982
    %vm2116 = vcmp.lt.s32.totalorder %v2112, 0
    %v2117 = vand.u32 %v2112, 2139095040
    %v2118 = vshrl.u32 %v2117, 23
    %v2119 = vsub.s32 %v2118, 127
    %v2120 = vand.u32 2147483647, %v2112
    %v2121 = vand.u32 %v2120, 8388607
    %v2122 = vor.u32 %v2121, 8388608
    %v2123 = vsub.s32 0, %v2122
    %v2124 = vadd.s32 %v2119, 1
    %vm2125 = vcmp.gt.s32.totalorder %v2124, 0
    %v2126 = vsel %vm2125, %v2124, 0
    %v2127 = vshrl.u32 %v2126, 5
    %v2128 = vand.u32 %v2126, 31
    %v2129 = vsub.s32 32, %v2128
    %v2130 = vshrl.u32 683565275, %v2129
    %v2131 = vshll.u32 683565275, %v2128
    %v2132 = vshrl.u32 2475754826, %v2129
    %v2133 = vor.u32 %v2131, %v2132
    %v2134 = vshll.u32 2475754826, %v2128
    %v2135 = vshrl.u32 2131351028, %v2129
    %v2136 = vor.u32 %v2134, %v2135
    %v2137 = vshll.u32 2131351028, %v2128
    %v2138 = vshrl.u32 2102212464, %v2129
    %v2139 = vor.u32 %v2137, %v2138
    %v2140 = vshll.u32 2102212464, %v2128
    %v2141 = vshrl.u32 920167782, %v2129
    %v2142 = vor.u32 %v2140, %v2141
    %v2143 = vshll.u32 920167782, %v2128
    %v2144 = vshrl.u32 1326507024, %v2129
    %v2145 = vor.u32 %v2143, %v2144
    %vm2146 = vcmp.lt.s32.totalorder %v2127, 1
    %vm2147 = vcmp.lt.s32.totalorder %v2127, 2
    %vm2148 = vcmp.lt.s32.totalorder %v2127, 3
    %vm2149 = vcmp.lt.s32.totalorder %v2127, 4
    %v2150 = vsel %vm2146, %v2130, %v2133
    %v2151 = vsel %vm2149, %v2139, 2102212464
    %v2152 = vsel %vm2148, %v2136, %v2151
    %v2153 = vsel %vm2147, %v2150, %v2152
    %v2154 = vsel %vm2146, %v2133, %v2136
    %v2155 = vsel %vm2149, %v2142, 920167782
    %v2156 = vsel %vm2148, %v2139, %v2155
    %v2157 = vsel %vm2147, %v2154, %v2156
    %v2158 = vsel %vm2146, %v2136, %v2139
    %v2159 = vsel %vm2149, %v2145, 1326507024
    %v2160 = vsel %vm2148, %v2142, %v2159
    %v2161 = vsel %vm2147, %v2158, %v2160
    %v2162 = vshll.u32 %v2122, 8
    %v2163 = vmul.u32.u64.compose %v2162, %v2161
    %v2164 = vextract.low.u32 %v2163
    %v2165 = vextract.high.u32 %v2163
    %v2166 = vmul.u32.u64.compose %v2162, %v2157
    %v2167 = vextract.low.u32 %v2166
    %v2168 = vextract.high.u32 %v2166
    %v2169 = vmul.u32 %v2162, %v2153
    %v2170 = vadd.s32 %v2165, %v2167
    %vm2171 = vc.u32 %v2165, %v2167
    %v2172 = vadd.s32 %v2168, 1
    %v2173 = vsel %vm2171, %v2172, %v2168
    %v2174 = vadd.s32 %v2169, %v2173
    %v2175 = vadd.s32 %v2174, 536870912
    %v2176 = vshrl.u32 %v2175, 30
    %v2177 = vshll.u32 %v2176, 30
    %v2178 = vsub.s32 %v2174, %v2177
    %vm2179 = vcmp.lt.s32.totalorder %v2178, 0
    %v2180 = vsub.s32 0, %v2178
    %v2181 = vsel %vm2179, %v2180, %v2178
    %v2182 = vclz %v2181
    %v2183 = vsub.s32 %v2182, 2
    %vm2184 = vcmp.gt.s32.totalorder 0, %v2183
    %v2185 = vsel %vm2184, 0, %v2183
    %v2186 = vsub.s32 32, %v2185
    %v2187 = vshll.u32 %v2178, %v2185
    %v2188 = vshrl.u32 %v2170, %v2186
    %v2189 = vor.u32 %v2187, %v2188
    %v2190 = vsub.s32 4294967266, %v2185
    %v2191 = vadd.s32 %v2190, 127
    %v2192 = vshll.u32 %v2191, 23
    %v2193 = vor.u32 4788187, %v2192
    %v2194 = vand.u32 2147483647, %v2193
    %v2196 = vcvt.s32.f32 %v2189
    %v2197 = vmul.f32 %v2196, %v2194
    %v2198 = vxor.u32 %v2197, 2147483648
    %v2199 = vsel %vm2116, %v2198, %v2197
    %v2200 = vsub.s32 4, %v2176
    %v2201 = vsel %vm2116, %v2200, %v2176
    %v2202 = vsel %vm2115, %v2112, %v2199
    %v2203 = vsel %vm2115, 0, %v2201
    %v2204 = vcosq.f32.pop %v2202
    %v2205 = vsinq.f32.pop %v2202
    %vm2206 = vweird.f32 %v2112
    %v2207 = vadd.s32 %v2203, 3
    %v2208 = vand.u32 %v2207, 3
    %vm2209 = vcmp.lt.s32.totalorder %v2208, 2
    %vm2210 = vcmp.eq.s32.totalorder %v2208, 0
    %v2211 = vxor.u32 %v2205, 2147483648
    %v2212 = vsel %vm2210, %v2204, %v2211
    %vm2213 = vcmp.eq.s32.totalorder %v2208, 2
    %v2214 = vxor.u32 %v2204, 2147483648
    %v2215 = vsel %vm2213, %v2214, %v2205
    %v2216 = vsel %vm2209, %v2212, %v2215
    %v2217 = vsel %vm2206, nan, %v2216
    %v2218 = vand.u32 2147483647, %v2113
    %vm2219 = vcmp.le.f32.partialorder %v2218, 0.7853982
    %vm2220 = vcmp.lt.s32.totalorder %v2113, 0
    %v2221 = vand.u32 %v2113, 2139095040
    %v2222 = vshrl.u32 %v2221, 23
    %v2223 = vsub.s32 %v2222, 127
    %v2224 = vand.u32 2147483647, %v2113
    %v2225 = vand.u32 %v2224, 8388607
    %v2226 = vor.u32 %v2225, 8388608
    %v2227 = vsub.s32 0, %v2226
    %v2228 = vadd.s32 %v2223, 1
    %vm2229 = vcmp.gt.s32.totalorder %v2228, 0
    %v2230 = vsel %vm2229, %v2228, 0
    %v2231 = vshrl.u32 %v2230, 5
    %v2232 = vand.u32 %v2230, 31
    %v2233 = vsub.s32 32, %v2232
    %v2234 = vshrl.u32 683565275, %v2233
    %v2235 = vshll.u32 683565275, %v2232
    %v2236 = vshrl.u32 2475754826, %v2233
    %v2237 = vor.u32 %v2235, %v2236
    %v2238 = vshll.u32 2475754826, %v2232
    %v2239 = vshrl.u32 2131351028, %v2233
    %v2240 = vor.u32 %v2238, %v2239
    %v2241 = vshll.u32 2131351028, %v2232
    %v2242 = vshrl.u32 2102212464, %v2233
    %v2243 = vor.u32 %v2241, %v2242
    %v2244 = vshll.u32 2102212464, %v2232
    %v2245 = vshrl.u32 920167782, %v2233
    %v2246 = vor.u32 %v2244, %v2245
    %v2247 = vshll.u32 920167782, %v2232
    %v2248 = vshrl.u32 1326507024, %v2233
    %v2249 = vor.u32 %v2247, %v2248
    %vm2250 = vcmp.lt.s32.totalorder %v2231, 1
    %vm2251 = vcmp.lt.s32.totalorder %v2231, 2
    %vm2252 = vcmp.lt.s32.totalorder %v2231, 3
    %vm2253 = vcmp.lt.s32.totalorder %v2231, 4
    %v2254 = vsel %vm2250, %v2234, %v2237
    %v2255 = vsel %vm2253, %v2243, 2102212464
    %v2256 = vsel %vm2252, %v2240, %v2255
    %v2257 = vsel %vm2251, %v2254, %v2256
    %v2258 = vsel %vm2250, %v2237, %v2240
    %v2259 = vsel %vm2253, %v2246, 920167782
    %v2260 = vsel %vm2252, %v2243, %v2259
    %v2261 = vsel %vm2251, %v2258, %v2260
    %v2262 = vsel %vm2250, %v2240, %v2243
    %v2263 = vsel %vm2253, %v2249, 1326507024
    %v2264 = vsel %vm2252, %v2246, %v2263
    %v2265 = vsel %vm2251, %v2262, %v2264
    %v2266 = vshll.u32 %v2226, 8
    %v2267 = vmul.u32.u64.compose %v2266, %v2265
    %v2268 = vextract.low.u32 %v2267
    %v2269 = vextract.high.u32 %v2267
    %v2270 = vmul.u32.u64.compose %v2266, %v2261
    %v2271 = vextract.low.u32 %v2270
    %v2272 = vextract.high.u32 %v2270
    %v2273 = vmul.u32 %v2266, %v2257
    %v2274 = vadd.s32 %v2269, %v2271
    %vm2275 = vc.u32 %v2269, %v2271
    %v2276 = vadd.s32 %v2272, 1
    %v2277 = vsel %vm2275, %v2276, %v2272
    %v2278 = vadd.s32 %v2273, %v2277
    %v2279 = vadd.s32 %v2278, 536870912
    %v2280 = vshrl.u32 %v2279, 30
    %v2281 = vshll.u32 %v2280, 30
    %v2282 = vsub.s32 %v2278, %v2281
    %vm2283 = vcmp.lt.s32.totalorder %v2282, 0
    %v2284 = vsub.s32 0, %v2282
    %v2285 = vsel %vm2283, %v2284, %v2282
    %v2286 = vclz %v2285
    %v2287 = vsub.s32 %v2286, 2
    %vm2288 = vcmp.gt.s32.totalorder 0, %v2287
    %v2289 = vsel %vm2288, 0, %v2287
    %v2290 = vsub.s32 32, %v2289
    %v2291 = vshll.u32 %v2282, %v2289
    %v2292 = vshrl.u32 %v2274, %v2290
    %v2293 = vor.u32 %v2291, %v2292
    %v2294 = vsub.s32 4294967266, %v2289
    %v2295 = vadd.s32 %v2294, 127
    %v2296 = vshll.u32 %v2295, 23
    %v2297 = vor.u32 4788187, %v2296
    %v2298 = vand.u32 2147483647, %v2297
    %v2300 = vcvt.s32.f32 %v2293
    %v2301 = vmul.f32 %v2300, %v2298
    %v2302 = vxor.u32 %v2301, 2147483648
    %v2303 = vsel %vm2220, %v2302, %v2301
    %v2304 = vsub.s32 4, %v2280
    %v2305 = vsel %vm2220, %v2304, %v2280
    %v2306 = vsel %vm2219, %v2113, %v2303
    %v2307 = vsel %vm2219, 0, %v2305
    %v2308 = vcosq.f32.pop %v2306
    %v2309 = vsinq.f32.pop %v2306
    %vm2310 = vweird.f32 %v2113
    %v2311 = vadd.s32 %v2307, 3
    %v2312 = vand.u32 %v2311, 3
    %vm2313 = vcmp.lt.s32.totalorder %v2312, 2
    %vm2314 = vcmp.eq.s32.totalorder %v2312, 0
    %v2315 = vxor.u32 %v2309, 2147483648
    %v2316 = vsel %vm2314, %v2308, %v2315
    %vm2317 = vcmp.eq.s32.totalorder %v2312, 2
    %v2318 = vxor.u32 %v2308, 2147483648
    %v2319 = vsel %vm2317, %v2318, %v2309
    %v2320 = vsel %vm2313, %v2316, %v2319
    %v2321 = vsel %vm2310, nan, %v2320
    %v2322 = vand.u32 2147483647, %v2112
    %vm2323 = vcmp.le.f32.partialorder %v2322, 0.7853982
    %vm2324 = vcmp.lt.s32.totalorder %v2112, 0
    %v2325 = vand.u32 %v2112, 2139095040
    %v2326 = vshrl.u32 %v2325, 23
    %v2327 = vsub.s32 %v2326, 127
    %v2328 = vand.u32 2147483647, %v2112
    %v2329 = vand.u32 %v2328, 8388607
    %v2330 = vor.u32 %v2329, 8388608
    %v2331 = vsub.s32 0, %v2330
    %v2332 = vadd.s32 %v2327, 1
    %vm2333 = vcmp.gt.s32.totalorder %v2332, 0
    %v2334 = vsel %vm2333, %v2332, 0
    %v2335 = vshrl.u32 %v2334, 5
    %v2336 = vand.u32 %v2334, 31
    %v2337 = vsub.s32 32, %v2336
    %v2338 = vshrl.u32 683565275, %v2337
    %v2339 = vshll.u32 683565275, %v2336
    %v2340 = vshrl.u32 2475754826, %v2337
    %v2341 = vor.u32 %v2339, %v2340
    %v2342 = vshll.u32 2475754826, %v2336
    %v2343 = vshrl.u32 2131351028, %v2337
    %v2344 = vor.u32 %v2342, %v2343
    %v2345 = vshll.u32 2131351028, %v2336
    %v2346 = vshrl.u32 2102212464, %v2337
    %v2347 = vor.u32 %v2345, %v2346
    %v2348 = vshll.u32 2102212464, %v2336
    %v2349 = vshrl.u32 920167782, %v2337
    %v2350 = vor.u32 %v2348, %v2349
    %v2351 = vshll.u32 920167782, %v2336
    %v2352 = vshrl.u32 1326507024, %v2337
    %v2353 = vor.u32 %v2351, %v2352
    %vm2354 = vcmp.lt.s32.totalorder %v2335, 1
    %vm2355 = vcmp.lt.s32.totalorder %v2335, 2
    %vm2356 = vcmp.lt.s32.totalorder %v2335, 3
    %vm2357 = vcmp.lt.s32.totalorder %v2335, 4
    %v2358 = vsel %vm2354, %v2338, %v2341
    %v2359 = vsel %vm2357, %v2347, 2102212464
    %v2360 = vsel %vm2356, %v2344, %v2359
    %v2361 = vsel %vm2355, %v2358, %v2360
    %v2362 = vsel %vm2354, %v2341, %v2344
    %v2363 = vsel %vm2357, %v2350, 920167782
    %v2364 = vsel %vm2356, %v2347, %v2363
    %v2365 = vsel %vm2355, %v2362, %v2364
    %v2366 = vsel %vm2354, %v2344, %v2347
    %v2367 = vsel %vm2357, %v2353, 1326507024
    %v2368 = vsel %vm2356, %v2350, %v2367
    %v2369 = vsel %vm2355, %v2366, %v2368
    %v2370 = vshll.u32 %v2330, 8
    %v2371 = vmul.u32.u64.compose %v2370, %v2369
    %v2372 = vextract.low.u32 %v2371
    %v2373 = vextract.high.u32 %v2371
    %v2374 = vmul.u32.u64.compose %v2370, %v2365
    %v2375 = vextract.low.u32 %v2374
    %v2376 = vextract.high.u32 %v2374
    %v2377 = vmul.u32 %v2370, %v2361
    %v2378 = vadd.s32 %v2373, %v2375
    %vm2379 = vc.u32 %v2373, %v2375
    %v2380 = vadd.s32 %v2376, 1
    %v2381 = vsel %vm2379, %v2380, %v2376
    %v2382 = vadd.s32 %v2377, %v2381
    %v2383 = vadd.s32 %v2382, 536870912
    %v2384 = vshrl.u32 %v2383, 30
    %v2385 = vshll.u32 %v2384, 30
    %v2386 = vsub.s32 %v2382, %v2385
    %vm2387 = vcmp.lt.s32.totalorder %v2386, 0
    %v2388 = vsub.s32 0, %v2386
    %v2389 = vsel %vm2387, %v2388, %v2386
    %v2390 = vclz %v2389
    %v2391 = vsub.s32 %v2390, 2
    %vm2392 = vcmp.gt.s32.totalorder 0, %v2391
    %v2393 = vsel %vm2392, 0, %v2391
    %v2394 = vsub.s32 32, %v2393
    %v2395 = vshll.u32 %v2386, %v2393
    %v2396 = vshrl.u32 %v2378, %v2394
    %v2397 = vor.u32 %v2395, %v2396
    %v2398 = vsub.s32 4294967266, %v2393
    %v2399 = vadd.s32 %v2398, 127
    %v2400 = vshll.u32 %v2399, 23
    %v2401 = vor.u32 4788187, %v2400
    %v2402 = vand.u32 2147483647, %v2401
    %v2404 = vcvt.s32.f32 %v2397
    %v2405 = vmul.f32 %v2404, %v2402
    %v2406 = vxor.u32 %v2405, 2147483648
    %v2407 = vsel %vm2324, %v2406, %v2405
    %v2408 = vsub.s32 4, %v2384
    %v2409 = vsel %vm2324, %v2408, %v2384
    %v2410 = vsel %vm2323, %v2112, %v2407
    %v2411 = vsel %vm2323, 0, %v2409
    %v2412 = vcosq.f32.pop %v2410
    %v2413 = vsinq.f32.pop %v2410
    %vm2414 = vweird.f32 %v2112
    %v2415 = vand.u32 %v2411, 3
    %vm2416 = vcmp.lt.s32.totalorder %v2415, 2
    %vm2417 = vcmp.eq.s32.totalorder %v2415, 0
    %v2418 = vxor.u32 %v2413, 2147483648
    %v2419 = vsel %vm2417, %v2412, %v2418
    %vm2420 = vcmp.eq.s32.totalorder %v2415, 2
    %v2421 = vxor.u32 %v2412, 2147483648
    %v2422 = vsel %vm2420, %v2421, %v2413
    %v2423 = vsel %vm2416, %v2419, %v2422
    %v2424 = vsel %vm2414, nan, %v2423
    %v2425 = vand.u32 2147483647, %v2113
    %vm2426 = vcmp.le.f32.partialorder %v2425, 0.7853982
    %vm2427 = vcmp.lt.s32.totalorder %v2113, 0
    %v2428 = vand.u32 %v2113, 2139095040
    %v2429 = vshrl.u32 %v2428, 23
    %v2430 = vsub.s32 %v2429, 127
    %v2431 = vand.u32 2147483647, %v2113
    %v2432 = vand.u32 %v2431, 8388607
    %v2433 = vor.u32 %v2432, 8388608
    %v2434 = vsub.s32 0, %v2433
    %v2435 = vadd.s32 %v2430, 1
    %vm2436 = vcmp.gt.s32.totalorder %v2435, 0
    %v2437 = vsel %vm2436, %v2435, 0
    %v2438 = vshrl.u32 %v2437, 5
    %v2439 = vand.u32 %v2437, 31
    %v2440 = vsub.s32 32, %v2439
    %v2441 = vshrl.u32 683565275, %v2440
    %v2442 = vshll.u32 683565275, %v2439
    %v2443 = vshrl.u32 2475754826, %v2440
    %v2444 = vor.u32 %v2442, %v2443
    %v2445 = vshll.u32 2475754826, %v2439
    %v2446 = vshrl.u32 2131351028, %v2440
    %v2447 = vor.u32 %v2445, %v2446
    %v2448 = vshll.u32 2131351028, %v2439
    %v2449 = vshrl.u32 2102212464, %v2440
    %v2450 = vor.u32 %v2448, %v2449
    %v2451 = vshll.u32 2102212464, %v2439
    %v2452 = vshrl.u32 920167782, %v2440
    %v2453 = vor.u32 %v2451, %v2452
    %v2454 = vshll.u32 920167782, %v2439
    %v2455 = vshrl.u32 1326507024, %v2440
    %v2456 = vor.u32 %v2454, %v2455
    %vm2457 = vcmp.lt.s32.totalorder %v2438, 1
    %vm2458 = vcmp.lt.s32.totalorder %v2438, 2
    %vm2459 = vcmp.lt.s32.totalorder %v2438, 3
    %vm2460 = vcmp.lt.s32.totalorder %v2438, 4
    %v2461 = vsel %vm2457, %v2441, %v2444
    %v2462 = vsel %vm2460, %v2450, 2102212464
    %v2463 = vsel %vm2459, %v2447, %v2462
    %v2464 = vsel %vm2458, %v2461, %v2463
    %v2465 = vsel %vm2457, %v2444, %v2447
    %v2466 = vsel %vm2460, %v2453, 920167782
    %v2467 = vsel %vm2459, %v2450, %v2466
    %v2468 = vsel %vm2458, %v2465, %v2467
    %v2469 = vsel %vm2457, %v2447, %v2450
    %v2470 = vsel %vm2460, %v2456, 1326507024
    %v2471 = vsel %vm2459, %v2453, %v2470
    %v2472 = vsel %vm2458, %v2469, %v2471
    %v2473 = vshll.u32 %v2433, 8
    %v2474 = vmul.u32.u64.compose %v2473, %v2472
    %v2475 = vextract.low.u32 %v2474
    %v2476 = vextract.high.u32 %v2474
    %v2477 = vmul.u32.u64.compose %v2473, %v2468
    %v2478 = vextract.low.u32 %v2477
    %v2479 = vextract.high.u32 %v2477
    %v2480 = vmul.u32 %v2473, %v2464
    %v2481 = vadd.s32 %v2476, %v2478
    %vm2482 = vc.u32 %v2476, %v2478
    %v2483 = vadd.s32 %v2479, 1
    %v2484 = vsel %vm2482, %v2483, %v2479
    %v2485 = vadd.s32 %v2480, %v2484
    %v2486 = vadd.s32 %v2485, 536870912
    %v2487 = vshrl.u32 %v2486, 30
    %v2488 = vshll.u32 %v2487, 30
    %v2489 = vsub.s32 %v2485, %v2488
    %vm2490 = vcmp.lt.s32.totalorder %v2489, 0
    %v2491 = vsub.s32 0, %v2489
    %v2492 = vsel %vm2490, %v2491, %v2489
    %v2493 = vclz %v2492
    %v2494 = vsub.s32 %v2493, 2
    %vm2495 = vcmp.gt.s32.totalorder 0, %v2494
    %v2496 = vsel %vm2495, 0, %v2494
    %v2497 = vsub.s32 32, %v2496
    %v2498 = vshll.u32 %v2489, %v2496
    %v2499 = vshrl.u32 %v2481, %v2497
    %v2500 = vor.u32 %v2498, %v2499
    %v2501 = vsub.s32 4294967266, %v2496
    %v2502 = vadd.s32 %v2501, 127
    %v2503 = vshll.u32 %v2502, 23
    %v2504 = vor.u32 4788187, %v2503
    %v2505 = vand.u32 2147483647, %v2504
    %v2507 = vcvt.s32.f32 %v2500
    %v2508 = vmul.f32 %v2507, %v2505
    %v2509 = vxor.u32 %v2508, 2147483648
    %v2510 = vsel %vm2427, %v2509, %v2508
    %v2511 = vsub.s32 4, %v2487
    %v2512 = vsel %vm2427, %v2511, %v2487
    %v2513 = vsel %vm2426, %v2113, %v2510
    %v2514 = vsel %vm2426, 0, %v2512
    %v2515 = vcosq.f32.pop %v2513
    %v2516 = vsinq.f32.pop %v2513
    %vm2517 = vweird.f32 %v2113
    %v2518 = vand.u32 %v2514, 3
    %vm2519 = vcmp.lt.s32.totalorder %v2518, 2
    %vm2520 = vcmp.eq.s32.totalorder %v2518, 0
    %v2521 = vxor.u32 %v2516, 2147483648
    %v2522 = vsel %vm2520, %v2515, %v2521
    %vm2523 = vcmp.eq.s32.totalorder %v2518, 2
    %v2524 = vxor.u32 %v2515, 2147483648
    %v2525 = vsel %vm2523, %v2524, %v2516
    %v2526 = vsel %vm2519, %v2522, %v2525
    %v2527 = vsel %vm2517, nan, %v2526
    %v2528 = vmul.f32 %v32, 64.0
    %v2529 = vmul.f32 %v33, 64.0
    %v2530 = vand.u32 2147483647, %v2528
    %vm2531 = vcmp.le.f32.partialorder %v2530, 0.7853982
    %vm2532 = vcmp.lt.s32.totalorder %v2528, 0
    %v2533 = vand.u32 %v2528, 2139095040
    %v2534 = vshrl.u32 %v2533, 23
    %v2535 = vsub.s32 %v2534, 127
    %v2536 = vand.u32 2147483647, %v2528
    %v2537 = vand.u32 %v2536, 8388607
    %v2538 = vor.u32 %v2537, 8388608
    %v2539 = vsub.s32 0, %v2538
    %v2540 = vadd.s32 %v2535, 1
    %vm2541 = vcmp.gt.s32.totalorder %v2540, 0
    %v2542 = vsel %vm2541, %v2540, 0
    %v2543 = vshrl.u32 %v2542, 5
    %v2544 = vand.u32 %v2542, 31
    %v2545 = vsub.s32 32, %v2544
    %v2546 = vshrl.u32 683565275, %v2545
    %v2547 = vshll.u32 683565275, %v2544
    %v2548 = vshrl.u32 2475754826, %v2545
    %v2549 = vor.u32 %v2547, %v2548
    %v2550 = vshll.u32 2475754826, %v2544
    %v2551 = vshrl.u32 2131351028, %v2545
    %v2552 = vor.u32 %v2550, %v2551
    %v2553 = vshll.u32 2131351028, %v2544
    %v2554 = vshrl.u32 2102212464, %v2545
    %v2555 = vor.u32 %v2553, %v2554
    %v2556 = vshll.u32 2102212464, %v2544
    %v2557 = vshrl.u32 920167782, %v2545
    %v2558 = vor.u32 %v2556, %v2557
    %v2559 = vshll.u32 920167782, %v2544
    %v2560 = vshrl.u32 1326507024, %v2545
    %v2561 = vor.u32 %v2559, %v2560
    %vm2562 = vcmp.lt.s32.totalorder %v2543, 1
    %vm2563 = vcmp.lt.s32.totalorder %v2543, 2
    %vm2564 = vcmp.lt.s32.totalorder %v2543, 3
    %vm2565 = vcmp.lt.s32.totalorder %v2543, 4
    %v2566 = vsel %vm2562, %v2546, %v2549
    %v2567 = vsel %vm2565, %v2555, 2102212464
    %v2568 = vsel %vm2564, %v2552, %v2567
    %v2569 = vsel %vm2563, %v2566, %v2568
    %v2570 = vsel %vm2562, %v2549, %v2552
    %v2571 = vsel %vm2565, %v2558, 920167782
    %v2572 = vsel %vm2564, %v2555, %v2571
    %v2573 = vsel %vm2563, %v2570, %v2572
    %v2574 = vsel %vm2562, %v2552, %v2555
    %v2575 = vsel %vm2565, %v2561, 1326507024
    %v2576 = vsel %vm2564, %v2558, %v2575
    %v2577 = vsel %vm2563, %v2574, %v2576
    %v2578 = vshll.u32 %v2538, 8
    %v2579 = vmul.u32.u64.compose %v2578, %v2577
    %v2580 = vextract.low.u32 %v2579
    %v2581 = vextract.high.u32 %v2579
    %v2582 = vmul.u32.u64.compose %v2578, %v2573
    %v2583 = vextract.low.u32 %v2582
    %v2584 = vextract.high.u32 %v2582
    %v2585 = vmul.u32 %v2578, %v2569
    %v2586 = vadd.s32 %v2581, %v2583
    %vm2587 = vc.u32 %v2581, %v2583
    %v2588 = vadd.s32 %v2584, 1
    %v2589 = vsel %vm2587, %v2588, %v2584
    %v2590 = vadd.s32 %v2585, %v2589
    %v2591 = vadd.s32 %v2590, 536870912
    %v2592 = vshrl.u32 %v2591, 30
    %v2593 = vshll.u32 %v2592, 30
    %v2594 = vsub.s32 %v2590, %v2593
    %vm2595 = vcmp.lt.s32.totalorder %v2594, 0
    %v2596 = vsub.s32 0, %v2594
    %v2597 = vsel %vm2595, %v2596, %v2594
    %v2598 = vclz %v2597
    %v2599 = vsub.s32 %v2598, 2
    %vm2600 = vcmp.gt.s32.totalorder 0, %v2599
    %v2601 = vsel %vm2600, 0, %v2599
    %v2602 = vsub.s32 32, %v2601
    %v2603 = vshll.u32 %v2594, %v2601
    %v2604 = vshrl.u32 %v2586, %v2602
    %v2605 = vor.u32 %v2603, %v2604
    %v2606 = vsub.s32 4294967266, %v2601
    %v2607 = vadd.s32 %v2606, 127
    %v2608 = vshll.u32 %v2607, 23
    %v2609 = vor.u32 4788187, %v2608
    %v2610 = vand.u32 2147483647, %v2609
    %v2612 = vcvt.s32.f32 %v2605
    %v2613 = vmul.f32 %v2612, %v2610
    %v2614 = vxor.u32 %v2613, 2147483648
    %v2615 = vsel %vm2532, %v2614, %v2613
    %v2616 = vsub.s32 4, %v2592
    %v2617 = vsel %vm2532, %v2616, %v2592
    %v2618 = vsel %vm2531, %v2528, %v2615
    %v2619 = vsel %vm2531, 0, %v2617
    %v2620 = vcosq.f32.pop %v2618
    %v2621 = vsinq.f32.pop %v2618
    %vm2622 = vweird.f32 %v2528
    %v2623 = vadd.s32 %v2619, 3
    %v2624 = vand.u32 %v2623, 3
    %vm2625 = vcmp.lt.s32.totalorder %v2624, 2
    %vm2626 = vcmp.eq.s32.totalorder %v2624, 0
    %v2627 = vxor.u32 %v2621, 2147483648
    %v2628 = vsel %vm2626, %v2620, %v2627
    %vm2629 = vcmp.eq.s32.totalorder %v2624, 2
    %v2630 = vxor.u32 %v2620, 2147483648
    %v2631 = vsel %vm2629, %v2630, %v2621
    %v2632 = vsel %vm2625, %v2628, %v2631
    %v2633 = vsel %vm2622, nan, %v2632
    %v2634 = vand.u32 2147483647, %v2529
    %vm2635 = vcmp.le.f32.partialorder %v2634, 0.7853982
    %vm2636 = vcmp.lt.s32.totalorder %v2529, 0
    %v2637 = vand.u32 %v2529, 2139095040
    %v2638 = vshrl.u32 %v2637, 23
    %v2639 = vsub.s32 %v2638, 127
    %v2640 = vand.u32 2147483647, %v2529
    %v2641 = vand.u32 %v2640, 8388607
    %v2642 = vor.u32 %v2641, 8388608
    %v2643 = vsub.s32 0, %v2642
    %v2644 = vadd.s32 %v2639, 1
    %vm2645 = vcmp.gt.s32.totalorder %v2644, 0
    %v2646 = vsel %vm2645, %v2644, 0
    %v2647 = vshrl.u32 %v2646, 5
    %v2648 = vand.u32 %v2646, 31
    %v2649 = vsub.s32 32, %v2648
    %v2650 = vshrl.u32 683565275, %v2649
    %v2651 = vshll.u32 683565275, %v2648
    %v2652 = vshrl.u32 2475754826, %v2649
    %v2653 = vor.u32 %v2651, %v2652
    %v2654 = vshll.u32 2475754826, %v2648
    %v2655 = vshrl.u32 2131351028, %v2649
    %v2656 = vor.u32 %v2654, %v2655
    %v2657 = vshll.u32 2131351028, %v2648
    %v2658 = vshrl.u32 2102212464, %v2649
    %v2659 = vor.u32 %v2657, %v2658
    %v2660 = vshll.u32 2102212464, %v2648
    %v2661 = vshrl.u32 920167782, %v2649
    %v2662 = vor.u32 %v2660, %v2661
    %v2663 = vshll.u32 920167782, %v2648
    %v2664 = vshrl.u32 1326507024, %v2649
    %v2665 = vor.u32 %v2663, %v2664
    %vm2666 = vcmp.lt.s32.totalorder %v2647, 1
    %vm2667 = vcmp.lt.s32.totalorder %v2647, 2
    %vm2668 = vcmp.lt.s32.totalorder %v2647, 3
    %vm2669 = vcmp.lt.s32.totalorder %v2647, 4
    %v2670 = vsel %vm2666, %v2650, %v2653
    %v2671 = vsel %vm2669, %v2659, 2102212464
    %v2672 = vsel %vm2668, %v2656, %v2671
    %v2673 = vsel %vm2667, %v2670, %v2672
    %v2674 = vsel %vm2666, %v2653, %v2656
    %v2675 = vsel %vm2669, %v2662, 920167782
    %v2676 = vsel %vm2668, %v2659, %v2675
    %v2677 = vsel %vm2667, %v2674, %v2676
    %v2678 = vsel %vm2666, %v2656, %v2659
    %v2679 = vsel %vm2669, %v2665, 1326507024
    %v2680 = vsel %vm2668, %v2662, %v2679
    %v2681 = vsel %vm2667, %v2678, %v2680
    %v2682 = vshll.u32 %v2642, 8
    %v2683 = vmul.u32.u64.compose %v2682, %v2681
    %v2684 = vextract.low.u32 %v2683
    %v2685 = vextract.high.u32 %v2683
    %v2686 = vmul.u32.u64.compose %v2682, %v2677
    %v2687 = vextract.low.u32 %v2686
    %v2688 = vextract.high.u32 %v2686
    %v2689 = vmul.u32 %v2682, %v2673
    %v2690 = vadd.s32 %v2685, %v2687
    %vm2691 = vc.u32 %v2685, %v2687
    %v2692 = vadd.s32 %v2688, 1
    %v2693 = vsel %vm2691, %v2692, %v2688
    %v2694 = vadd.s32 %v2689, %v2693
    %v2695 = vadd.s32 %v2694, 536870912
    %v2696 = vshrl.u32 %v2695, 30
    %v2697 = vshll.u32 %v2696, 30
    %v2698 = vsub.s32 %v2694, %v2697
    %vm2699 = vcmp.lt.s32.totalorder %v2698, 0
    %v2700 = vsub.s32 0, %v2698
    %v2701 = vsel %vm2699, %v2700, %v2698
    %v2702 = vclz %v2701
    %v2703 = vsub.s32 %v2702, 2
    %vm2704 = vcmp.gt.s32.totalorder 0, %v2703
    %v2705 = vsel %vm2704, 0, %v2703
    %v2706 = vsub.s32 32, %v2705
    %v2707 = vshll.u32 %v2698, %v2705
    %v2708 = vshrl.u32 %v2690, %v2706
    %v2709 = vor.u32 %v2707, %v2708
    %v2710 = vsub.s32 4294967266, %v2705
    %v2711 = vadd.s32 %v2710, 127
    %v2712 = vshll.u32 %v2711, 23
    %v2713 = vor.u32 4788187, %v2712
    %v2714 = vand.u32 2147483647, %v2713
    %v2716 = vcvt.s32.f32 %v2709
    %v2717 = vmul.f32 %v2716, %v2714
    %v2718 = vxor.u32 %v2717, 2147483648
    %v2719 = vsel %vm2636, %v2718, %v2717
    %v2720 = vsub.s32 4, %v2696
    %v2721 = vsel %vm2636, %v2720, %v2696
    %v2722 = vsel %vm2635, %v2529, %v2719
    %v2723 = vsel %vm2635, 0, %v2721
    %v2724 = vcosq.f32.pop %v2722
    %v2725 = vsinq.f32.pop %v2722
    %vm2726 = vweird.f32 %v2529
    %v2727 = vadd.s32 %v2723, 3
    %v2728 = vand.u32 %v2727, 3
    %vm2729 = vcmp.lt.s32.totalorder %v2728, 2
    %vm2730 = vcmp.eq.s32.totalorder %v2728, 0
    %v2731 = vxor.u32 %v2725, 2147483648
    %v2732 = vsel %vm2730, %v2724, %v2731
    %vm2733 = vcmp.eq.s32.totalorder %v2728, 2
    %v2734 = vxor.u32 %v2724, 2147483648
    %v2735 = vsel %vm2733, %v2734, %v2725
    %v2736 = vsel %vm2729, %v2732, %v2735
    %v2737 = vsel %vm2726, nan, %v2736
    %v2738 = vand.u32 2147483647, %v2528
    %vm2739 = vcmp.le.f32.partialorder %v2738, 0.7853982
    %vm2740 = vcmp.lt.s32.totalorder %v2528, 0
    %v2741 = vand.u32 %v2528, 2139095040
    %v2742 = vshrl.u32 %v2741, 23
    %v2743 = vsub.s32 %v2742, 127
    %v2744 = vand.u32 2147483647, %v2528
    %v2745 = vand.u32 %v2744, 8388607
    %v2746 = vor.u32 %v2745, 8388608
    %v2747 = vsub.s32 0, %v2746
    %v2748 = vadd.s32 %v2743, 1
    %vm2749 = vcmp.gt.s32.totalorder %v2748, 0
    %v2750 = vsel %vm2749, %v2748, 0
    %v2751 = vshrl.u32 %v2750, 5
    %v2752 = vand.u32 %v2750, 31
    %v2753 = vsub.s32 32, %v2752
    %v2754 = vshrl.u32 683565275, %v2753
    %v2755 = vshll.u32 683565275, %v2752
    %v2756 = vshrl.u32 2475754826, %v2753
    %v2757 = vor.u32 %v2755, %v2756
    %v2758 = vshll.u32 2475754826, %v2752
    %v2759 = vshrl.u32 2131351028, %v2753
    %v2760 = vor.u32 %v2758, %v2759
    %v2761 = vshll.u32 2131351028, %v2752
    %v2762 = vshrl.u32 2102212464, %v2753
    %v2763 = vor.u32 %v2761, %v2762
    %v2764 = vshll.u32 2102212464, %v2752
    %v2765 = vshrl.u32 920167782, %v2753
    %v2766 = vor.u32 %v2764, %v2765
    %v2767 = vshll.u32 920167782, %v2752
    %v2768 = vshrl.u32 1326507024, %v2753
    %v2769 = vor.u32 %v2767, %v2768
    %vm2770 = vcmp.lt.s32.totalorder %v2751, 1
    %vm2771 = vcmp.lt.s32.totalorder %v2751, 2
    %vm2772 = vcmp.lt.s32.totalorder %v2751, 3
    %vm2773 = vcmp.lt.s32.totalorder %v2751, 4
    %v2774 = vsel %vm2770, %v2754, %v2757
    %v2775 = vsel %vm2773, %v2763, 2102212464
    %v2776 = vsel %vm2772, %v2760, %v2775
    %v2777 = vsel %vm2771, %v2774, %v2776
    %v2778 = vsel %vm2770, %v2757, %v2760
    %v2779 = vsel %vm2773, %v2766, 920167782
    %v2780 = vsel %vm2772, %v2763, %v2779
    %v2781 = vsel %vm2771, %v2778, %v2780
    %v2782 = vsel %vm2770, %v2760, %v2763
    %v2783 = vsel %vm2773, %v2769, 1326507024
    %v2784 = vsel %vm2772, %v2766, %v2783
    %v2785 = vsel %vm2771, %v2782, %v2784
    %v2786 = vshll.u32 %v2746, 8
    %v2787 = vmul.u32.u64.compose %v2786, %v2785
    %v2788 = vextract.low.u32 %v2787
    %v2789 = vextract.high.u32 %v2787
    %v2790 = vmul.u32.u64.compose %v2786, %v2781
    %v2791 = vextract.low.u32 %v2790
    %v2792 = vextract.high.u32 %v2790
    %v2793 = vmul.u32 %v2786, %v2777
    %v2794 = vadd.s32 %v2789, %v2791
    %vm2795 = vc.u32 %v2789, %v2791
    %v2796 = vadd.s32 %v2792, 1
    %v2797 = vsel %vm2795, %v2796, %v2792
    %v2798 = vadd.s32 %v2793, %v2797
    %v2799 = vadd.s32 %v2798, 536870912
    %v2800 = vshrl.u32 %v2799, 30
    %v2801 = vshll.u32 %v2800, 30
    %v2802 = vsub.s32 %v2798, %v2801
    %vm2803 = vcmp.lt.s32.totalorder %v2802, 0
    %v2804 = vsub.s32 0, %v2802
    %v2805 = vsel %vm2803, %v2804, %v2802
    %v2806 = vclz %v2805
    %v2807 = vsub.s32 %v2806, 2
    %vm2808 = vcmp.gt.s32.totalorder 0, %v2807
    %v2809 = vsel %vm2808, 0, %v2807
    %v2810 = vsub.s32 32, %v2809
    %v2811 = vshll.u32 %v2802, %v2809
    %v2812 = vshrl.u32 %v2794, %v2810
    %v2813 = vor.u32 %v2811, %v2812
    %v2814 = vsub.s32 4294967266, %v2809
    %v2815 = vadd.s32 %v2814, 127
    %v2816 = vshll.u32 %v2815, 23
    %v2817 = vor.u32 4788187, %v2816
    %v2818 = vand.u32 2147483647, %v2817
    %v2820 = vcvt.s32.f32 %v2813
    %v2821 = vmul.f32 %v2820, %v2818
    %v2822 = vxor.u32 %v2821, 2147483648
    %v2823 = vsel %vm2740, %v2822, %v2821
    %v2824 = vsub.s32 4, %v2800
    %v2825 = vsel %vm2740, %v2824, %v2800
    %v2826 = vsel %vm2739, %v2528, %v2823
    %v2827 = vsel %vm2739, 0, %v2825
    %v2828 = vcosq.f32.pop %v2826
    %v2829 = vsinq.f32.pop %v2826
    %vm2830 = vweird.f32 %v2528
    %v2831 = vand.u32 %v2827, 3
    %vm2832 = vcmp.lt.s32.totalorder %v2831, 2
    %vm2833 = vcmp.eq.s32.totalorder %v2831, 0
    %v2834 = vxor.u32 %v2829, 2147483648
    %v2835 = vsel %vm2833, %v2828, %v2834
    %vm2836 = vcmp.eq.s32.totalorder %v2831, 2
    %v2837 = vxor.u32 %v2828, 2147483648
    %v2838 = vsel %vm2836, %v2837, %v2829
    %v2839 = vsel %vm2832, %v2835, %v2838
    %v2840 = vsel %vm2830, nan, %v2839
    %v2841 = vand.u32 2147483647, %v2529
    %vm2842 = vcmp.le.f32.partialorder %v2841, 0.7853982
    %vm2843 = vcmp.lt.s32.totalorder %v2529, 0
    %v2844 = vand.u32 %v2529, 2139095040
    %v2845 = vshrl.u32 %v2844, 23
    %v2846 = vsub.s32 %v2845, 127
    %v2847 = vand.u32 2147483647, %v2529
    %v2848 = vand.u32 %v2847, 8388607
    %v2849 = vor.u32 %v2848, 8388608
    %v2850 = vsub.s32 0, %v2849
    %v2851 = vadd.s32 %v2846, 1
    %vm2852 = vcmp.gt.s32.totalorder %v2851, 0
    %v2853 = vsel %vm2852, %v2851, 0
    %v2854 = vshrl.u32 %v2853, 5
    %v2855 = vand.u32 %v2853, 31
    %v2856 = vsub.s32 32, %v2855
    %v2857 = vshrl.u32 683565275, %v2856
    %v2858 = vshll.u32 683565275, %v2855
    %v2859 = vshrl.u32 2475754826, %v2856
    %v2860 = vor.u32 %v2858, %v2859
    %v2861 = vshll.u32 2475754826, %v2855
    %v2862 = vshrl.u32 2131351028, %v2856
    %v2863 = vor.u32 %v2861, %v2862
    %v2864 = vshll.u32 2131351028, %v2855
    %v2865 = vshrl.u32 2102212464, %v2856
    %v2866 = vor.u32 %v2864, %v2865
    %v2867 = vshll.u32 2102212464, %v2855
    %v2868 = vshrl.u32 920167782, %v2856
    %v2869 = vor.u32 %v2867, %v2868
    %v2870 = vshll.u32 920167782, %v2855
    %v2871 = vshrl.u32 1326507024, %v2856
    %v2872 = vor.u32 %v2870, %v2871
    %vm2873 = vcmp.lt.s32.totalorder %v2854, 1
    %vm2874 = vcmp.lt.s32.totalorder %v2854, 2
    %vm2875 = vcmp.lt.s32.totalorder %v2854, 3
    %vm2876 = vcmp.lt.s32.totalorder %v2854, 4
    %v2877 = vsel %vm2873, %v2857, %v2860
    %v2878 = vsel %vm2876, %v2866, 2102212464
    %v2879 = vsel %vm2875, %v2863, %v2878
    %v2880 = vsel %vm2874, %v2877, %v2879
    %v2881 = vsel %vm2873, %v2860, %v2863
    %v2882 = vsel %vm2876, %v2869, 920167782
    %v2883 = vsel %vm2875, %v2866, %v2882
    %v2884 = vsel %vm2874, %v2881, %v2883
    %v2885 = vsel %vm2873, %v2863, %v2866
    %v2886 = vsel %vm2876, %v2872, 1326507024
    %v2887 = vsel %vm2875, %v2869, %v2886
    %v2888 = vsel %vm2874, %v2885, %v2887
    %v2889 = vshll.u32 %v2849, 8
    %v2890 = vmul.u32.u64.compose %v2889, %v2888
    %v2891 = vextract.low.u32 %v2890
    %v2892 = vextract.high.u32 %v2890
    %v2893 = vmul.u32.u64.compose %v2889, %v2884
    %v2894 = vextract.low.u32 %v2893
    %v2895 = vextract.high.u32 %v2893
    %v2896 = vmul.u32 %v2889, %v2880
    %v2897 = vadd.s32 %v2892, %v2894
    %vm2898 = vc.u32 %v2892, %v2894
    %v2899 = vadd.s32 %v2895, 1
    %v2900 = vsel %vm2898, %v2899, %v2895
    %v2901 = vadd.s32 %v2896, %v2900
    %v2902 = vadd.s32 %v2901, 536870912
    %v2903 = vshrl.u32 %v2902, 30
    %v2904 = vshll.u32 %v2903, 30
    %v2905 = vsub.s32 %v2901, %v2904
    %vm2906 = vcmp.lt.s32.totalorder %v2905, 0
    %v2907 = vsub.s32 0, %v2905
    %v2908 = vsel %vm2906, %v2907, %v2905
    %v2909 = vclz %v2908
    %v2910 = vsub.s32 %v2909, 2
    %vm2911 = vcmp.gt.s32.totalorder 0, %v2910
    %v2912 = vsel %vm2911, 0, %v2910
    %v2913 = vsub.s32 32, %v2912
    %v2914 = vshll.u32 %v2905, %v2912
    %v2915 = vshrl.u32 %v2897, %v2913
    %v2916 = vor.u32 %v2914, %v2915
    %v2917 = vsub.s32 4294967266, %v2912
    %v2918 = vadd.s32 %v2917, 127
    %v2919 = vshll.u32 %v2918, 23
    %v2920 = vor.u32 4788187, %v2919
    %v2921 = vand.u32 2147483647, %v2920
    %v2923 = vcvt.s32.f32 %v2916
    %v2924 = vmul.f32 %v2923, %v2921
    %v2925 = vxor.u32 %v2924, 2147483648
    %v2926 = vsel %vm2843, %v2925, %v2924
    %v2927 = vsub.s32 4, %v2903
    %v2928 = vsel %vm2843, %v2927, %v2903
    %v2929 = vsel %vm2842, %v2529, %v2926
    %v2930 = vsel %vm2842, 0, %v2928
    %v2931 = vcosq.f32.pop %v2929
    %v2932 = vsinq.f32.pop %v2929
    %vm2933 = vweird.f32 %v2529
    %v2934 = vand.u32 %v2930, 3
    %vm2935 = vcmp.lt.s32.totalorder %v2934, 2
    %vm2936 = vcmp.eq.s32.totalorder %v2934, 0
    %v2937 = vxor.u32 %v2932, 2147483648
    %v2938 = vsel %vm2936, %v2931, %v2937
    %vm2939 = vcmp.eq.s32.totalorder %v2934, 2
    %v2940 = vxor.u32 %v2931, 2147483648
    %v2941 = vsel %vm2939, %v2940, %v2932
    %v2942 = vsel %vm2935, %v2938, %v2941
    %v2943 = vsel %vm2933, nan, %v2942
    %v2944 = vmul.f32 %v32, 128.0
    %v2945 = vmul.f32 %v33, 128.0
    %v2946 = vand.u32 2147483647, %v2944
    %vm2947 = vcmp.le.f32.partialorder %v2946, 0.7853982
    %vm2948 = vcmp.lt.s32.totalorder %v2944, 0
    %v2949 = vand.u32 %v2944, 2139095040
    %v2950 = vshrl.u32 %v2949, 23
    %v2951 = vsub.s32 %v2950, 127
    %v2952 = vand.u32 2147483647, %v2944
    %v2953 = vand.u32 %v2952, 8388607
    %v2954 = vor.u32 %v2953, 8388608
    %v2955 = vsub.s32 0, %v2954
    %v2956 = vadd.s32 %v2951, 1
    %vm2957 = vcmp.gt.s32.totalorder %v2956, 0
    %v2958 = vsel %vm2957, %v2956, 0
    %v2959 = vshrl.u32 %v2958, 5
    %v2960 = vand.u32 %v2958, 31
    %v2961 = vsub.s32 32, %v2960
    %v2962 = vshrl.u32 683565275, %v2961
    %v2963 = vshll.u32 683565275, %v2960
    %v2964 = vshrl.u32 2475754826, %v2961
    %v2965 = vor.u32 %v2963, %v2964
    %v2966 = vshll.u32 2475754826, %v2960
    %v2967 = vshrl.u32 2131351028, %v2961
    %v2968 = vor.u32 %v2966, %v2967
    %v2969 = vshll.u32 2131351028, %v2960
    %v2970 = vshrl.u32 2102212464, %v2961
    %v2971 = vor.u32 %v2969, %v2970
    %v2972 = vshll.u32 2102212464, %v2960
    %v2973 = vshrl.u32 920167782, %v2961
    %v2974 = vor.u32 %v2972, %v2973
    %v2975 = vshll.u32 920167782, %v2960
    %v2976 = vshrl.u32 1326507024, %v2961
    %v2977 = vor.u32 %v2975, %v2976
    %vm2978 = vcmp.lt.s32.totalorder %v2959, 1
    %vm2979 = vcmp.lt.s32.totalorder %v2959, 2
    %vm2980 = vcmp.lt.s32.totalorder %v2959, 3
    %vm2981 = vcmp.lt.s32.totalorder %v2959, 4
    %v2982 = vsel %vm2978, %v2962, %v2965
    %v2983 = vsel %vm2981, %v2971, 2102212464
    %v2984 = vsel %vm2980, %v2968, %v2983
    %v2985 = vsel %vm2979, %v2982, %v2984
    %v2986 = vsel %vm2978, %v2965, %v2968
    %v2987 = vsel %vm2981, %v2974, 920167782
    %v2988 = vsel %vm2980, %v2971, %v2987
    %v2989 = vsel %vm2979, %v2986, %v2988
    %v2990 = vsel %vm2978, %v2968, %v2971
    %v2991 = vsel %vm2981, %v2977, 1326507024
    %v2992 = vsel %vm2980, %v2974, %v2991
    %v2993 = vsel %vm2979, %v2990, %v2992
    %v2994 = vshll.u32 %v2954, 8
    %v2995 = vmul.u32.u64.compose %v2994, %v2993
    %v2996 = vextract.low.u32 %v2995
    %v2997 = vextract.high.u32 %v2995
    %v2998 = vmul.u32.u64.compose %v2994, %v2989
    %v2999 = vextract.low.u32 %v2998
    %v3000 = vextract.high.u32 %v2998
    %v3001 = vmul.u32 %v2994, %v2985
    %v3002 = vadd.s32 %v2997, %v2999
    %vm3003 = vc.u32 %v2997, %v2999
    %v3004 = vadd.s32 %v3000, 1
    %v3005 = vsel %vm3003, %v3004, %v3000
    %v3006 = vadd.s32 %v3001, %v3005
    %v3007 = vadd.s32 %v3006, 536870912
    %v3008 = vshrl.u32 %v3007, 30
    %v3009 = vshll.u32 %v3008, 30
    %v3010 = vsub.s32 %v3006, %v3009
    %vm3011 = vcmp.lt.s32.totalorder %v3010, 0
    %v3012 = vsub.s32 0, %v3010
    %v3013 = vsel %vm3011, %v3012, %v3010
    %v3014 = vclz %v3013
    %v3015 = vsub.s32 %v3014, 2
    %vm3016 = vcmp.gt.s32.totalorder 0, %v3015
    %v3017 = vsel %vm3016, 0, %v3015
    %v3018 = vsub.s32 32, %v3017
    %v3019 = vshll.u32 %v3010, %v3017
    %v3020 = vshrl.u32 %v3002, %v3018
    %v3021 = vor.u32 %v3019, %v3020
    %v3022 = vsub.s32 4294967266, %v3017
    %v3023 = vadd.s32 %v3022, 127
    %v3024 = vshll.u32 %v3023, 23
    %v3025 = vor.u32 4788187, %v3024
    %v3026 = vand.u32 2147483647, %v3025
    %v3028 = vcvt.s32.f32 %v3021
    %v3029 = vmul.f32 %v3028, %v3026
    %v3030 = vxor.u32 %v3029, 2147483648
    %v3031 = vsel %vm2948, %v3030, %v3029
    %v3032 = vsub.s32 4, %v3008
    %v3033 = vsel %vm2948, %v3032, %v3008
    %v3034 = vsel %vm2947, %v2944, %v3031
    %v3035 = vsel %vm2947, 0, %v3033
    %v3036 = vcosq.f32.pop %v3034
    %v3037 = vsinq.f32.pop %v3034
    %vm3038 = vweird.f32 %v2944
    %v3039 = vadd.s32 %v3035, 3
    %v3040 = vand.u32 %v3039, 3
    %vm3041 = vcmp.lt.s32.totalorder %v3040, 2
    %vm3042 = vcmp.eq.s32.totalorder %v3040, 0
    %v3043 = vxor.u32 %v3037, 2147483648
    %v3044 = vsel %vm3042, %v3036, %v3043
    %vm3045 = vcmp.eq.s32.totalorder %v3040, 2
    %v3046 = vxor.u32 %v3036, 2147483648
    %v3047 = vsel %vm3045, %v3046, %v3037
    %v3048 = vsel %vm3041, %v3044, %v3047
    %v3049 = vsel %vm3038, nan, %v3048
    %v3050 = vand.u32 2147483647, %v2945
    %vm3051 = vcmp.le.f32.partialorder %v3050, 0.7853982
    %vm3052 = vcmp.lt.s32.totalorder %v2945, 0
    %v3053 = vand.u32 %v2945, 2139095040
    %v3054 = vshrl.u32 %v3053, 23
    %v3055 = vsub.s32 %v3054, 127
    %v3056 = vand.u32 2147483647, %v2945
    %v3057 = vand.u32 %v3056, 8388607
    %v3058 = vor.u32 %v3057, 8388608
    %v3059 = vsub.s32 0, %v3058
    %v3060 = vadd.s32 %v3055, 1
    %vm3061 = vcmp.gt.s32.totalorder %v3060, 0
    %v3062 = vsel %vm3061, %v3060, 0
    %v3063 = vshrl.u32 %v3062, 5
    %v3064 = vand.u32 %v3062, 31
    %v3065 = vsub.s32 32, %v3064
    %v3066 = vshrl.u32 683565275, %v3065
    %v3067 = vshll.u32 683565275, %v3064
    %v3068 = vshrl.u32 2475754826, %v3065
    %v3069 = vor.u32 %v3067, %v3068
    %v3070 = vshll.u32 2475754826, %v3064
    %v3071 = vshrl.u32 2131351028, %v3065
    %v3072 = vor.u32 %v3070, %v3071
    %v3073 = vshll.u32 2131351028, %v3064
    %v3074 = vshrl.u32 2102212464, %v3065
    %v3075 = vor.u32 %v3073, %v3074
    %v3076 = vshll.u32 2102212464, %v3064
    %v3077 = vshrl.u32 920167782, %v3065
    %v3078 = vor.u32 %v3076, %v3077
    %v3079 = vshll.u32 920167782, %v3064
    %v3080 = vshrl.u32 1326507024, %v3065
    %v3081 = vor.u32 %v3079, %v3080
    %vm3082 = vcmp.lt.s32.totalorder %v3063, 1
    %vm3083 = vcmp.lt.s32.totalorder %v3063, 2
    %vm3084 = vcmp.lt.s32.totalorder %v3063, 3
    %vm3085 = vcmp.lt.s32.totalorder %v3063, 4
    %v3086 = vsel %vm3082, %v3066, %v3069
    %v3087 = vsel %vm3085, %v3075, 2102212464
    %v3088 = vsel %vm3084, %v3072, %v3087
    %v3089 = vsel %vm3083, %v3086, %v3088
    %v3090 = vsel %vm3082, %v3069, %v3072
    %v3091 = vsel %vm3085, %v3078, 920167782
    %v3092 = vsel %vm3084, %v3075, %v3091
    %v3093 = vsel %vm3083, %v3090, %v3092
    %v3094 = vsel %vm3082, %v3072, %v3075
    %v3095 = vsel %vm3085, %v3081, 1326507024
    %v3096 = vsel %vm3084, %v3078, %v3095
    %v3097 = vsel %vm3083, %v3094, %v3096
    %v3098 = vshll.u32 %v3058, 8
    %v3099 = vmul.u32.u64.compose %v3098, %v3097
    %v3100 = vextract.low.u32 %v3099
    %v3101 = vextract.high.u32 %v3099
    %v3102 = vmul.u32.u64.compose %v3098, %v3093
    %v3103 = vextract.low.u32 %v3102
    %v3104 = vextract.high.u32 %v3102
    %v3105 = vmul.u32 %v3098, %v3089
    %v3106 = vadd.s32 %v3101, %v3103
    %vm3107 = vc.u32 %v3101, %v3103
    %v3108 = vadd.s32 %v3104, 1
    %v3109 = vsel %vm3107, %v3108, %v3104
    %v3110 = vadd.s32 %v3105, %v3109
    %v3111 = vadd.s32 %v3110, 536870912
    %v3112 = vshrl.u32 %v3111, 30
    %v3113 = vshll.u32 %v3112, 30
    %v3114 = vsub.s32 %v3110, %v3113
    %vm3115 = vcmp.lt.s32.totalorder %v3114, 0
    %v3116 = vsub.s32 0, %v3114
    %v3117 = vsel %vm3115, %v3116, %v3114
    %v3118 = vclz %v3117
    %v3119 = vsub.s32 %v3118, 2
    %vm3120 = vcmp.gt.s32.totalorder 0, %v3119
    %v3121 = vsel %vm3120, 0, %v3119
    %v3122 = vsub.s32 32, %v3121
    %v3123 = vshll.u32 %v3114, %v3121
    %v3124 = vshrl.u32 %v3106, %v3122
    %v3125 = vor.u32 %v3123, %v3124
    %v3126 = vsub.s32 4294967266, %v3121
    %v3127 = vadd.s32 %v3126, 127
    %v3128 = vshll.u32 %v3127, 23
    %v3129 = vor.u32 4788187, %v3128
    %v3130 = vand.u32 2147483647, %v3129
    %v3132 = vcvt.s32.f32 %v3125
    %v3133 = vmul.f32 %v3132, %v3130
    %v3134 = vxor.u32 %v3133, 2147483648
    %v3135 = vsel %vm3052, %v3134, %v3133
    %v3136 = vsub.s32 4, %v3112
    %v3137 = vsel %vm3052, %v3136, %v3112
    %v3138 = vsel %vm3051, %v2945, %v3135
    %v3139 = vsel %vm3051, 0, %v3137
    %v3140 = vcosq.f32.pop %v3138
    %v3141 = vsinq.f32.pop %v3138
    %vm3142 = vweird.f32 %v2945
    %v3143 = vadd.s32 %v3139, 3
    %v3144 = vand.u32 %v3143, 3
    %vm3145 = vcmp.lt.s32.totalorder %v3144, 2
    %vm3146 = vcmp.eq.s32.totalorder %v3144, 0
    %v3147 = vxor.u32 %v3141, 2147483648
    %v3148 = vsel %vm3146, %v3140, %v3147
    %vm3149 = vcmp.eq.s32.totalorder %v3144, 2
    %v3150 = vxor.u32 %v3140, 2147483648
    %v3151 = vsel %vm3149, %v3150, %v3141
    %v3152 = vsel %vm3145, %v3148, %v3151
    %v3153 = vsel %vm3142, nan, %v3152
    %v3154 = vand.u32 2147483647, %v2944
    %vm3155 = vcmp.le.f32.partialorder %v3154, 0.7853982
    %vm3156 = vcmp.lt.s32.totalorder %v2944, 0
    %v3157 = vand.u32 %v2944, 2139095040
    %v3158 = vshrl.u32 %v3157, 23
    %v3159 = vsub.s32 %v3158, 127
    %v3160 = vand.u32 2147483647, %v2944
    %v3161 = vand.u32 %v3160, 8388607
    %v3162 = vor.u32 %v3161, 8388608
    %v3163 = vsub.s32 0, %v3162
    %v3164 = vadd.s32 %v3159, 1
    %vm3165 = vcmp.gt.s32.totalorder %v3164, 0
    %v3166 = vsel %vm3165, %v3164, 0
    %v3167 = vshrl.u32 %v3166, 5
    %v3168 = vand.u32 %v3166, 31
    %v3169 = vsub.s32 32, %v3168
    %v3170 = vshrl.u32 683565275, %v3169
    %v3171 = vshll.u32 683565275, %v3168
    %v3172 = vshrl.u32 2475754826, %v3169
    %v3173 = vor.u32 %v3171, %v3172
    %v3174 = vshll.u32 2475754826, %v3168
    %v3175 = vshrl.u32 2131351028, %v3169
    %v3176 = vor.u32 %v3174, %v3175
    %v3177 = vshll.u32 2131351028, %v3168
    %v3178 = vshrl.u32 2102212464, %v3169
    %v3179 = vor.u32 %v3177, %v3178
    %v3180 = vshll.u32 2102212464, %v3168
    %v3181 = vshrl.u32 920167782, %v3169
    %v3182 = vor.u32 %v3180, %v3181
    %v3183 = vshll.u32 920167782, %v3168
    %v3184 = vshrl.u32 1326507024, %v3169
    %v3185 = vor.u32 %v3183, %v3184
    %vm3186 = vcmp.lt.s32.totalorder %v3167, 1
    %vm3187 = vcmp.lt.s32.totalorder %v3167, 2
    %vm3188 = vcmp.lt.s32.totalorder %v3167, 3
    %vm3189 = vcmp.lt.s32.totalorder %v3167, 4
    %v3190 = vsel %vm3186, %v3170, %v3173
    %v3191 = vsel %vm3189, %v3179, 2102212464
    %v3192 = vsel %vm3188, %v3176, %v3191
    %v3193 = vsel %vm3187, %v3190, %v3192
    %v3194 = vsel %vm3186, %v3173, %v3176
    %v3195 = vsel %vm3189, %v3182, 920167782
    %v3196 = vsel %vm3188, %v3179, %v3195
    %v3197 = vsel %vm3187, %v3194, %v3196
    %v3198 = vsel %vm3186, %v3176, %v3179
    %v3199 = vsel %vm3189, %v3185, 1326507024
    %v3200 = vsel %vm3188, %v3182, %v3199
    %v3201 = vsel %vm3187, %v3198, %v3200
    %v3202 = vshll.u32 %v3162, 8
    %v3203 = vmul.u32.u64.compose %v3202, %v3201
    %v3204 = vextract.low.u32 %v3203
    %v3205 = vextract.high.u32 %v3203
    %v3206 = vmul.u32.u64.compose %v3202, %v3197
    %v3207 = vextract.low.u32 %v3206
    %v3208 = vextract.high.u32 %v3206
    %v3209 = vmul.u32 %v3202, %v3193
    %v3210 = vadd.s32 %v3205, %v3207
    %vm3211 = vc.u32 %v3205, %v3207
    %v3212 = vadd.s32 %v3208, 1
    %v3213 = vsel %vm3211, %v3212, %v3208
    %v3214 = vadd.s32 %v3209, %v3213
    %v3215 = vadd.s32 %v3214, 536870912
    %v3216 = vshrl.u32 %v3215, 30
    %v3217 = vshll.u32 %v3216, 30
    %v3218 = vsub.s32 %v3214, %v3217
    %vm3219 = vcmp.lt.s32.totalorder %v3218, 0
    %v3220 = vsub.s32 0, %v3218
    %v3221 = vsel %vm3219, %v3220, %v3218
    %v3222 = vclz %v3221
    %v3223 = vsub.s32 %v3222, 2
    %vm3224 = vcmp.gt.s32.totalorder 0, %v3223
    %v3225 = vsel %vm3224, 0, %v3223
    %v3226 = vsub.s32 32, %v3225
    %v3227 = vshll.u32 %v3218, %v3225
    %v3228 = vshrl.u32 %v3210, %v3226
    %v3229 = vor.u32 %v3227, %v3228
    %v3230 = vsub.s32 4294967266, %v3225
    %v3231 = vadd.s32 %v3230, 127
    %v3232 = vshll.u32 %v3231, 23
    %v3233 = vor.u32 4788187, %v3232
    %v3234 = vand.u32 2147483647, %v3233
    %v3236 = vcvt.s32.f32 %v3229
    %v3237 = vmul.f32 %v3236, %v3234
    %v3238 = vxor.u32 %v3237, 2147483648
    %v3239 = vsel %vm3156, %v3238, %v3237
    %v3240 = vsub.s32 4, %v3216
    %v3241 = vsel %vm3156, %v3240, %v3216
    %v3242 = vsel %vm3155, %v2944, %v3239
    %v3243 = vsel %vm3155, 0, %v3241
    %v3244 = vcosq.f32.pop %v3242
    %v3245 = vsinq.f32.pop %v3242
    %vm3246 = vweird.f32 %v2944
    %v3247 = vand.u32 %v3243, 3
    %vm3248 = vcmp.lt.s32.totalorder %v3247, 2
    %vm3249 = vcmp.eq.s32.totalorder %v3247, 0
    %v3250 = vxor.u32 %v3245, 2147483648
    %v3251 = vsel %vm3249, %v3244, %v3250
    %vm3252 = vcmp.eq.s32.totalorder %v3247, 2
    %v3253 = vxor.u32 %v3244, 2147483648
    %v3254 = vsel %vm3252, %v3253, %v3245
    %v3255 = vsel %vm3248, %v3251, %v3254
    %v3256 = vsel %vm3246, nan, %v3255
    %v3257 = vand.u32 2147483647, %v2945
    %vm3258 = vcmp.le.f32.partialorder %v3257, 0.7853982
    %vm3259 = vcmp.lt.s32.totalorder %v2945, 0
    %v3260 = vand.u32 %v2945, 2139095040
    %v3261 = vshrl.u32 %v3260, 23
    %v3262 = vsub.s32 %v3261, 127
    %v3263 = vand.u32 2147483647, %v2945
    %v3264 = vand.u32 %v3263, 8388607
    %v3265 = vor.u32 %v3264, 8388608
    %v3266 = vsub.s32 0, %v3265
    %v3267 = vadd.s32 %v3262, 1
    %vm3268 = vcmp.gt.s32.totalorder %v3267, 0
    %v3269 = vsel %vm3268, %v3267, 0
    %v3270 = vshrl.u32 %v3269, 5
    %v3271 = vand.u32 %v3269, 31
    %v3272 = vsub.s32 32, %v3271
    %v3273 = vshrl.u32 683565275, %v3272
    %v3274 = vshll.u32 683565275, %v3271
    %v3275 = vshrl.u32 2475754826, %v3272
    %v3276 = vor.u32 %v3274, %v3275
    %v3277 = vshll.u32 2475754826, %v3271
    %v3278 = vshrl.u32 2131351028, %v3272
    %v3279 = vor.u32 %v3277, %v3278
    %v3280 = vshll.u32 2131351028, %v3271
    %v3281 = vshrl.u32 2102212464, %v3272
    %v3282 = vor.u32 %v3280, %v3281
    %v3283 = vshll.u32 2102212464, %v3271
    %v3284 = vshrl.u32 920167782, %v3272
    %v3285 = vor.u32 %v3283, %v3284
    %v3286 = vshll.u32 920167782, %v3271
    %v3287 = vshrl.u32 1326507024, %v3272
    %v3288 = vor.u32 %v3286, %v3287
    %vm3289 = vcmp.lt.s32.totalorder %v3270, 1
    %vm3290 = vcmp.lt.s32.totalorder %v3270, 2
    %vm3291 = vcmp.lt.s32.totalorder %v3270, 3
    %vm3292 = vcmp.lt.s32.totalorder %v3270, 4
    %v3293 = vsel %vm3289, %v3273, %v3276
    %v3294 = vsel %vm3292, %v3282, 2102212464
    %v3295 = vsel %vm3291, %v3279, %v3294
    %v3296 = vsel %vm3290, %v3293, %v3295
    %v3297 = vsel %vm3289, %v3276, %v3279
    %v3298 = vsel %vm3292, %v3285, 920167782
    %v3299 = vsel %vm3291, %v3282, %v3298
    %v3300 = vsel %vm3290, %v3297, %v3299
    %v3301 = vsel %vm3289, %v3279, %v3282
    %v3302 = vsel %vm3292, %v3288, 1326507024
    %v3303 = vsel %vm3291, %v3285, %v3302
    %v3304 = vsel %vm3290, %v3301, %v3303
    %v3305 = vshll.u32 %v3265, 8
    %v3306 = vmul.u32.u64.compose %v3305, %v3304
    %v3307 = vextract.low.u32 %v3306
    %v3308 = vextract.high.u32 %v3306
    %v3309 = vmul.u32.u64.compose %v3305, %v3300
    %v3310 = vextract.low.u32 %v3309
    %v3311 = vextract.high.u32 %v3309
    %v3312 = vmul.u32 %v3305, %v3296
    %v3313 = vadd.s32 %v3308, %v3310
    %vm3314 = vc.u32 %v3308, %v3310
    %v3315 = vadd.s32 %v3311, 1
    %v3316 = vsel %vm3314, %v3315, %v3311
    %v3317 = vadd.s32 %v3312, %v3316
    %v3318 = vadd.s32 %v3317, 536870912
    %v3319 = vshrl.u32 %v3318, 30
    %v3320 = vshll.u32 %v3319, 30
    %v3321 = vsub.s32 %v3317, %v3320
    %vm3322 = vcmp.lt.s32.totalorder %v3321, 0
    %v3323 = vsub.s32 0, %v3321
    %v3324 = vsel %vm3322, %v3323, %v3321
    %v3325 = vclz %v3324
    %v3326 = vsub.s32 %v3325, 2
    %vm3327 = vcmp.gt.s32.totalorder 0, %v3326
    %v3328 = vsel %vm3327, 0, %v3326
    %v3329 = vsub.s32 32, %v3328
    %v3330 = vshll.u32 %v3321, %v3328
    %v3331 = vshrl.u32 %v3313, %v3329
    %v3332 = vor.u32 %v3330, %v3331
    %v3333 = vsub.s32 4294967266, %v3328
    %v3334 = vadd.s32 %v3333, 127
    %v3335 = vshll.u32 %v3334, 23
    %v3336 = vor.u32 4788187, %v3335
    %v3337 = vand.u32 2147483647, %v3336
    %v3339 = vcvt.s32.f32 %v3332
    %v3340 = vmul.f32 %v3339, %v3337
    %v3341 = vxor.u32 %v3340, 2147483648
    %v3342 = vsel %vm3259, %v3341, %v3340
    %v3343 = vsub.s32 4, %v3319
    %v3344 = vsel %vm3259, %v3343, %v3319
    %v3345 = vsel %vm3258, %v2945, %v3342
    %v3346 = vsel %vm3258, 0, %v3344
    %v3347 = vcosq.f32.pop %v3345
    %v3348 = vsinq.f32.pop %v3345
    %vm3349 = vweird.f32 %v2945
    %v3350 = vand.u32 %v3346, 3
    %vm3351 = vcmp.lt.s32.totalorder %v3350, 2
    %vm3352 = vcmp.eq.s32.totalorder %v3350, 0
    %v3353 = vxor.u32 %v3348, 2147483648
    %v3354 = vsel %vm3352, %v3347, %v3353
    %vm3355 = vcmp.eq.s32.totalorder %v3350, 2
    %v3356 = vxor.u32 %v3347, 2147483648
    %v3357 = vsel %vm3355, %v3356, %v3348
    %v3358 = vsel %vm3351, %v3354, %v3357
    %v3359 = vsel %vm3349, nan, %v3358
    %v3360 = vmul.f32 %v32, 256.0
    %v3361 = vmul.f32 %v33, 256.0
    %v3362 = vand.u32 2147483647, %v3360
    %vm3363 = vcmp.le.f32.partialorder %v3362, 0.7853982
    %vm3364 = vcmp.lt.s32.totalorder %v3360, 0
    %v3365 = vand.u32 %v3360, 2139095040
    %v3366 = vshrl.u32 %v3365, 23
    %v3367 = vsub.s32 %v3366, 127
    %v3368 = vand.u32 2147483647, %v3360
    %v3369 = vand.u32 %v3368, 8388607
    %v3370 = vor.u32 %v3369, 8388608
    %v3371 = vsub.s32 0, %v3370
    %v3372 = vadd.s32 %v3367, 1
    %vm3373 = vcmp.gt.s32.totalorder %v3372, 0
    %v3374 = vsel %vm3373, %v3372, 0
    %v3375 = vshrl.u32 %v3374, 5
    %v3376 = vand.u32 %v3374, 31
    %v3377 = vsub.s32 32, %v3376
    %v3378 = vshrl.u32 683565275, %v3377
    %v3379 = vshll.u32 683565275, %v3376
    %v3380 = vshrl.u32 2475754826, %v3377
    %v3381 = vor.u32 %v3379, %v3380
    %v3382 = vshll.u32 2475754826, %v3376
    %v3383 = vshrl.u32 2131351028, %v3377
    %v3384 = vor.u32 %v3382, %v3383
    %v3385 = vshll.u32 2131351028, %v3376
    %v3386 = vshrl.u32 2102212464, %v3377
    %v3387 = vor.u32 %v3385, %v3386
    %v3388 = vshll.u32 2102212464, %v3376
    %v3389 = vshrl.u32 920167782, %v3377
    %v3390 = vor.u32 %v3388, %v3389
    %v3391 = vshll.u32 920167782, %v3376
    %v3392 = vshrl.u32 1326507024, %v3377
    %v3393 = vor.u32 %v3391, %v3392
    %vm3394 = vcmp.lt.s32.totalorder %v3375, 1
    %vm3395 = vcmp.lt.s32.totalorder %v3375, 2
    %vm3396 = vcmp.lt.s32.totalorder %v3375, 3
    %vm3397 = vcmp.lt.s32.totalorder %v3375, 4
    %v3398 = vsel %vm3394, %v3378, %v3381
    %v3399 = vsel %vm3397, %v3387, 2102212464
    %v3400 = vsel %vm3396, %v3384, %v3399
    %v3401 = vsel %vm3395, %v3398, %v3400
    %v3402 = vsel %vm3394, %v3381, %v3384
    %v3403 = vsel %vm3397, %v3390, 920167782
    %v3404 = vsel %vm3396, %v3387, %v3403
    %v3405 = vsel %vm3395, %v3402, %v3404
    %v3406 = vsel %vm3394, %v3384, %v3387
    %v3407 = vsel %vm3397, %v3393, 1326507024
    %v3408 = vsel %vm3396, %v3390, %v3407
    %v3409 = vsel %vm3395, %v3406, %v3408
    %v3410 = vshll.u32 %v3370, 8
    %v3411 = vmul.u32.u64.compose %v3410, %v3409
    %v3412 = vextract.low.u32 %v3411
    %v3413 = vextract.high.u32 %v3411
    %v3414 = vmul.u32.u64.compose %v3410, %v3405
    %v3415 = vextract.low.u32 %v3414
    %v3416 = vextract.high.u32 %v3414
    %v3417 = vmul.u32 %v3410, %v3401
    %v3418 = vadd.s32 %v3413, %v3415
    %vm3419 = vc.u32 %v3413, %v3415
    %v3420 = vadd.s32 %v3416, 1
    %v3421 = vsel %vm3419, %v3420, %v3416
    %v3422 = vadd.s32 %v3417, %v3421
    %v3423 = vadd.s32 %v3422, 536870912
    %v3424 = vshrl.u32 %v3423, 30
    %v3425 = vshll.u32 %v3424, 30
    %v3426 = vsub.s32 %v3422, %v3425
    %vm3427 = vcmp.lt.s32.totalorder %v3426, 0
    %v3428 = vsub.s32 0, %v3426
    %v3429 = vsel %vm3427, %v3428, %v3426
    %v3430 = vclz %v3429
    %v3431 = vsub.s32 %v3430, 2
    %vm3432 = vcmp.gt.s32.totalorder 0, %v3431
    %v3433 = vsel %vm3432, 0, %v3431
    %v3434 = vsub.s32 32, %v3433
    %v3435 = vshll.u32 %v3426, %v3433
    %v3436 = vshrl.u32 %v3418, %v3434
    %v3437 = vor.u32 %v3435, %v3436
    %v3438 = vsub.s32 4294967266, %v3433
    %v3439 = vadd.s32 %v3438, 127
    %v3440 = vshll.u32 %v3439, 23
    %v3441 = vor.u32 4788187, %v3440
    %v3442 = vand.u32 2147483647, %v3441
    %v3444 = vcvt.s32.f32 %v3437
    %v3445 = vmul.f32 %v3444, %v3442
    %v3446 = vxor.u32 %v3445, 2147483648
    %v3447 = vsel %vm3364, %v3446, %v3445
    %v3448 = vsub.s32 4, %v3424
    %v3449 = vsel %vm3364, %v3448, %v3424
    %v3450 = vsel %vm3363, %v3360, %v3447
    %v3451 = vsel %vm3363, 0, %v3449
    %v3452 = vcosq.f32.pop %v3450
    %v3453 = vsinq.f32.pop %v3450
    %vm3454 = vweird.f32 %v3360
    %v3455 = vadd.s32 %v3451, 3
    %v3456 = vand.u32 %v3455, 3
    %vm3457 = vcmp.lt.s32.totalorder %v3456, 2
    %vm3458 = vcmp.eq.s32.totalorder %v3456, 0
    %v3459 = vxor.u32 %v3453, 2147483648
    %v3460 = vsel %vm3458, %v3452, %v3459
    %vm3461 = vcmp.eq.s32.totalorder %v3456, 2
    %v3462 = vxor.u32 %v3452, 2147483648
    %v3463 = vsel %vm3461, %v3462, %v3453
    %v3464 = vsel %vm3457, %v3460, %v3463
    %v3465 = vsel %vm3454, nan, %v3464
    %v3466 = vand.u32 2147483647, %v3361
    %vm3467 = vcmp.le.f32.partialorder %v3466, 0.7853982
    %vm3468 = vcmp.lt.s32.totalorder %v3361, 0
    %v3469 = vand.u32 %v3361, 2139095040
    %v3470 = vshrl.u32 %v3469, 23
    %v3471 = vsub.s32 %v3470, 127
    %v3472 = vand.u32 2147483647, %v3361
    %v3473 = vand.u32 %v3472, 8388607
    %v3474 = vor.u32 %v3473, 8388608
    %v3475 = vsub.s32 0, %v3474
    %v3476 = vadd.s32 %v3471, 1
    %vm3477 = vcmp.gt.s32.totalorder %v3476, 0
    %v3478 = vsel %vm3477, %v3476, 0
    %v3479 = vshrl.u32 %v3478, 5
    %v3480 = vand.u32 %v3478, 31
    %v3481 = vsub.s32 32, %v3480
    %v3482 = vshrl.u32 683565275, %v3481
    %v3483 = vshll.u32 683565275, %v3480
    %v3484 = vshrl.u32 2475754826, %v3481
    %v3485 = vor.u32 %v3483, %v3484
    %v3486 = vshll.u32 2475754826, %v3480
    %v3487 = vshrl.u32 2131351028, %v3481
    %v3488 = vor.u32 %v3486, %v3487
    %v3489 = vshll.u32 2131351028, %v3480
    %v3490 = vshrl.u32 2102212464, %v3481
    %v3491 = vor.u32 %v3489, %v3490
    %v3492 = vshll.u32 2102212464, %v3480
    %v3493 = vshrl.u32 920167782, %v3481
    %v3494 = vor.u32 %v3492, %v3493
    %v3495 = vshll.u32 920167782, %v3480
    %v3496 = vshrl.u32 1326507024, %v3481
    %v3497 = vor.u32 %v3495, %v3496
    %vm3498 = vcmp.lt.s32.totalorder %v3479, 1
    %vm3499 = vcmp.lt.s32.totalorder %v3479, 2
    %vm3500 = vcmp.lt.s32.totalorder %v3479, 3
    %vm3501 = vcmp.lt.s32.totalorder %v3479, 4
    %v3502 = vsel %vm3498, %v3482, %v3485
    %v3503 = vsel %vm3501, %v3491, 2102212464
    %v3504 = vsel %vm3500, %v3488, %v3503
    %v3505 = vsel %vm3499, %v3502, %v3504
    %v3506 = vsel %vm3498, %v3485, %v3488
    %v3507 = vsel %vm3501, %v3494, 920167782
    %v3508 = vsel %vm3500, %v3491, %v3507
    %v3509 = vsel %vm3499, %v3506, %v3508
    %v3510 = vsel %vm3498, %v3488, %v3491
    %v3511 = vsel %vm3501, %v3497, 1326507024
    %v3512 = vsel %vm3500, %v3494, %v3511
    %v3513 = vsel %vm3499, %v3510, %v3512
    %v3514 = vshll.u32 %v3474, 8
    %v3515 = vmul.u32.u64.compose %v3514, %v3513
    %v3516 = vextract.low.u32 %v3515
    %v3517 = vextract.high.u32 %v3515
    %v3518 = vmul.u32.u64.compose %v3514, %v3509
    %v3519 = vextract.low.u32 %v3518
    %v3520 = vextract.high.u32 %v3518
    %v3521 = vmul.u32 %v3514, %v3505
    %v3522 = vadd.s32 %v3517, %v3519
    %vm3523 = vc.u32 %v3517, %v3519
    %v3524 = vadd.s32 %v3520, 1
    %v3525 = vsel %vm3523, %v3524, %v3520
    %v3526 = vadd.s32 %v3521, %v3525
    %v3527 = vadd.s32 %v3526, 536870912
    %v3528 = vshrl.u32 %v3527, 30
    %v3529 = vshll.u32 %v3528, 30
    %v3530 = vsub.s32 %v3526, %v3529
    %vm3531 = vcmp.lt.s32.totalorder %v3530, 0
    %v3532 = vsub.s32 0, %v3530
    %v3533 = vsel %vm3531, %v3532, %v3530
    %v3534 = vclz %v3533
    %v3535 = vsub.s32 %v3534, 2
    %vm3536 = vcmp.gt.s32.totalorder 0, %v3535
    %v3537 = vsel %vm3536, 0, %v3535
    %v3538 = vsub.s32 32, %v3537
    %v3539 = vshll.u32 %v3530, %v3537
    %v3540 = vshrl.u32 %v3522, %v3538
    %v3541 = vor.u32 %v3539, %v3540
    %v3542 = vsub.s32 4294967266, %v3537
    %v3543 = vadd.s32 %v3542, 127
    %v3544 = vshll.u32 %v3543, 23
    %v3545 = vor.u32 4788187, %v3544
    %v3546 = vand.u32 2147483647, %v3545
    %v3548 = vcvt.s32.f32 %v3541
    %v3549 = vmul.f32 %v3548, %v3546
    %v3550 = vxor.u32 %v3549, 2147483648
    %v3551 = vsel %vm3468, %v3550, %v3549
    %v3552 = vsub.s32 4, %v3528
    %v3553 = vsel %vm3468, %v3552, %v3528
    %v3554 = vsel %vm3467, %v3361, %v3551
    %v3555 = vsel %vm3467, 0, %v3553
    %v3556 = vcosq.f32.pop %v3554
    %v3557 = vsinq.f32.pop %v3554
    %vm3558 = vweird.f32 %v3361
    %v3559 = vadd.s32 %v3555, 3
    %v3560 = vand.u32 %v3559, 3
    %vm3561 = vcmp.lt.s32.totalorder %v3560, 2
    %vm3562 = vcmp.eq.s32.totalorder %v3560, 0
    %v3563 = vxor.u32 %v3557, 2147483648
    %v3564 = vsel %vm3562, %v3556, %v3563
    %vm3565 = vcmp.eq.s32.totalorder %v3560, 2
    %v3566 = vxor.u32 %v3556, 2147483648
    %v3567 = vsel %vm3565, %v3566, %v3557
    %v3568 = vsel %vm3561, %v3564, %v3567
    %v3569 = vsel %vm3558, nan, %v3568
    %v3570 = vand.u32 2147483647, %v3360
    %vm3571 = vcmp.le.f32.partialorder %v3570, 0.7853982
    %vm3572 = vcmp.lt.s32.totalorder %v3360, 0
    %v3573 = vand.u32 %v3360, 2139095040
    %v3574 = vshrl.u32 %v3573, 23
    %v3575 = vsub.s32 %v3574, 127
    %v3576 = vand.u32 2147483647, %v3360
    %v3577 = vand.u32 %v3576, 8388607
    %v3578 = vor.u32 %v3577, 8388608
    %v3579 = vsub.s32 0, %v3578
    %v3580 = vadd.s32 %v3575, 1
    %vm3581 = vcmp.gt.s32.totalorder %v3580, 0
    %v3582 = vsel %vm3581, %v3580, 0
    %v3583 = vshrl.u32 %v3582, 5
    %v3584 = vand.u32 %v3582, 31
    %v3585 = vsub.s32 32, %v3584
    %v3586 = vshrl.u32 683565275, %v3585
    %v3587 = vshll.u32 683565275, %v3584
    %v3588 = vshrl.u32 2475754826, %v3585
    %v3589 = vor.u32 %v3587, %v3588
    %v3590 = vshll.u32 2475754826, %v3584
    %v3591 = vshrl.u32 2131351028, %v3585
    %v3592 = vor.u32 %v3590, %v3591
    %v3593 = vshll.u32 2131351028, %v3584
    %v3594 = vshrl.u32 2102212464, %v3585
    %v3595 = vor.u32 %v3593, %v3594
    %v3596 = vshll.u32 2102212464, %v3584
    %v3597 = vshrl.u32 920167782, %v3585
    %v3598 = vor.u32 %v3596, %v3597
    %v3599 = vshll.u32 920167782, %v3584
    %v3600 = vshrl.u32 1326507024, %v3585
    %v3601 = vor.u32 %v3599, %v3600
    %vm3602 = vcmp.lt.s32.totalorder %v3583, 1
    %vm3603 = vcmp.lt.s32.totalorder %v3583, 2
    %vm3604 = vcmp.lt.s32.totalorder %v3583, 3
    %vm3605 = vcmp.lt.s32.totalorder %v3583, 4
    %v3606 = vsel %vm3602, %v3586, %v3589
    %v3607 = vsel %vm3605, %v3595, 2102212464
    %v3608 = vsel %vm3604, %v3592, %v3607
    %v3609 = vsel %vm3603, %v3606, %v3608
    %v3610 = vsel %vm3602, %v3589, %v3592
    %v3611 = vsel %vm3605, %v3598, 920167782
    %v3612 = vsel %vm3604, %v3595, %v3611
    %v3613 = vsel %vm3603, %v3610, %v3612
    %v3614 = vsel %vm3602, %v3592, %v3595
    %v3615 = vsel %vm3605, %v3601, 1326507024
    %v3616 = vsel %vm3604, %v3598, %v3615
    %v3617 = vsel %vm3603, %v3614, %v3616
    %v3618 = vshll.u32 %v3578, 8
    %v3619 = vmul.u32.u64.compose %v3618, %v3617
    %v3620 = vextract.low.u32 %v3619
    %v3621 = vextract.high.u32 %v3619
    %v3622 = vmul.u32.u64.compose %v3618, %v3613
    %v3623 = vextract.low.u32 %v3622
    %v3624 = vextract.high.u32 %v3622
    %v3625 = vmul.u32 %v3618, %v3609
    %v3626 = vadd.s32 %v3621, %v3623
    %vm3627 = vc.u32 %v3621, %v3623
    %v3628 = vadd.s32 %v3624, 1
    %v3629 = vsel %vm3627, %v3628, %v3624
    %v3630 = vadd.s32 %v3625, %v3629
    %v3631 = vadd.s32 %v3630, 536870912
    %v3632 = vshrl.u32 %v3631, 30
    %v3633 = vshll.u32 %v3632, 30
    %v3634 = vsub.s32 %v3630, %v3633
    %vm3635 = vcmp.lt.s32.totalorder %v3634, 0
    %v3636 = vsub.s32 0, %v3634
    %v3637 = vsel %vm3635, %v3636, %v3634
    %v3638 = vclz %v3637
    %v3639 = vsub.s32 %v3638, 2
    %vm3640 = vcmp.gt.s32.totalorder 0, %v3639
    %v3641 = vsel %vm3640, 0, %v3639
    %v3642 = vsub.s32 32, %v3641
    %v3643 = vshll.u32 %v3634, %v3641
    %v3644 = vshrl.u32 %v3626, %v3642
    %v3645 = vor.u32 %v3643, %v3644
    %v3646 = vsub.s32 4294967266, %v3641
    %v3647 = vadd.s32 %v3646, 127
    %v3648 = vshll.u32 %v3647, 23
    %v3649 = vor.u32 4788187, %v3648
    %v3650 = vand.u32 2147483647, %v3649
    %v3652 = vcvt.s32.f32 %v3645
    %v3653 = vmul.f32 %v3652, %v3650
    %v3654 = vxor.u32 %v3653, 2147483648
    %v3655 = vsel %vm3572, %v3654, %v3653
    %v3656 = vsub.s32 4, %v3632
    %v3657 = vsel %vm3572, %v3656, %v3632
    %v3658 = vsel %vm3571, %v3360, %v3655
    %v3659 = vsel %vm3571, 0, %v3657
    %v3660 = vcosq.f32.pop %v3658
    %v3661 = vsinq.f32.pop %v3658
    %vm3662 = vweird.f32 %v3360
    %v3663 = vand.u32 %v3659, 3
    %vm3664 = vcmp.lt.s32.totalorder %v3663, 2
    %vm3665 = vcmp.eq.s32.totalorder %v3663, 0
    %v3666 = vxor.u32 %v3661, 2147483648
    %v3667 = vsel %vm3665, %v3660, %v3666
    %vm3668 = vcmp.eq.s32.totalorder %v3663, 2
    %v3669 = vxor.u32 %v3660, 2147483648
    %v3670 = vsel %vm3668, %v3669, %v3661
    %v3671 = vsel %vm3664, %v3667, %v3670
    %v3672 = vsel %vm3662, nan, %v3671
    %v3673 = vand.u32 2147483647, %v3361
    %vm3674 = vcmp.le.f32.partialorder %v3673, 0.7853982
    %vm3675 = vcmp.lt.s32.totalorder %v3361, 0
    %v3676 = vand.u32 %v3361, 2139095040
    %v3677 = vshrl.u32 %v3676, 23
    %v3678 = vsub.s32 %v3677, 127
    %v3679 = vand.u32 2147483647, %v3361
    %v3680 = vand.u32 %v3679, 8388607
    %v3681 = vor.u32 %v3680, 8388608
    %v3682 = vsub.s32 0, %v3681
    %v3683 = vadd.s32 %v3678, 1
    %vm3684 = vcmp.gt.s32.totalorder %v3683, 0
    %v3685 = vsel %vm3684, %v3683, 0
    %v3686 = vshrl.u32 %v3685, 5
    %v3687 = vand.u32 %v3685, 31
    %v3688 = vsub.s32 32, %v3687
    %v3689 = vshrl.u32 683565275, %v3688
    %v3690 = vshll.u32 683565275, %v3687
    %v3691 = vshrl.u32 2475754826, %v3688
    %v3692 = vor.u32 %v3690, %v3691
    %v3693 = vshll.u32 2475754826, %v3687
    %v3694 = vshrl.u32 2131351028, %v3688
    %v3695 = vor.u32 %v3693, %v3694
    %v3696 = vshll.u32 2131351028, %v3687
    %v3697 = vshrl.u32 2102212464, %v3688
    %v3698 = vor.u32 %v3696, %v3697
    %v3699 = vshll.u32 2102212464, %v3687
    %v3700 = vshrl.u32 920167782, %v3688
    %v3701 = vor.u32 %v3699, %v3700
    %v3702 = vshll.u32 920167782, %v3687
    %v3703 = vshrl.u32 1326507024, %v3688
    %v3704 = vor.u32 %v3702, %v3703
    %vm3705 = vcmp.lt.s32.totalorder %v3686, 1
    %vm3706 = vcmp.lt.s32.totalorder %v3686, 2
    %vm3707 = vcmp.lt.s32.totalorder %v3686, 3
    %vm3708 = vcmp.lt.s32.totalorder %v3686, 4
    %v3709 = vsel %vm3705, %v3689, %v3692
    %v3710 = vsel %vm3708, %v3698, 2102212464
    %v3711 = vsel %vm3707, %v3695, %v3710
    %v3712 = vsel %vm3706, %v3709, %v3711
    %v3713 = vsel %vm3705, %v3692, %v3695
    %v3714 = vsel %vm3708, %v3701, 920167782
    %v3715 = vsel %vm3707, %v3698, %v3714
    %v3716 = vsel %vm3706, %v3713, %v3715
    %v3717 = vsel %vm3705, %v3695, %v3698
    %v3718 = vsel %vm3708, %v3704, 1326507024
    %v3719 = vsel %vm3707, %v3701, %v3718
    %v3720 = vsel %vm3706, %v3717, %v3719
    %v3721 = vshll.u32 %v3681, 8
    %v3722 = vmul.u32.u64.compose %v3721, %v3720
    %v3723 = vextract.low.u32 %v3722
    %v3724 = vextract.high.u32 %v3722
    %v3725 = vmul.u32.u64.compose %v3721, %v3716
    %v3726 = vextract.low.u32 %v3725
    %v3727 = vextract.high.u32 %v3725
    %v3728 = vmul.u32 %v3721, %v3712
    %v3729 = vadd.s32 %v3724, %v3726
    %vm3730 = vc.u32 %v3724, %v3726
    %v3731 = vadd.s32 %v3727, 1
    %v3732 = vsel %vm3730, %v3731, %v3727
    %v3733 = vadd.s32 %v3728, %v3732
    %v3734 = vadd.s32 %v3733, 536870912
    %v3735 = vshrl.u32 %v3734, 30
    %v3736 = vshll.u32 %v3735, 30
    %v3737 = vsub.s32 %v3733, %v3736
    %vm3738 = vcmp.lt.s32.totalorder %v3737, 0
    %v3739 = vsub.s32 0, %v3737
    %v3740 = vsel %vm3738, %v3739, %v3737
    %v3741 = vclz %v3740
    %v3742 = vsub.s32 %v3741, 2
    %vm3743 = vcmp.gt.s32.totalorder 0, %v3742
    %v3744 = vsel %vm3743, 0, %v3742
    %v3745 = vsub.s32 32, %v3744
    %v3746 = vshll.u32 %v3737, %v3744
    %v3747 = vshrl.u32 %v3729, %v3745
    %v3748 = vor.u32 %v3746, %v3747
    %v3749 = vsub.s32 4294967266, %v3744
    %v3750 = vadd.s32 %v3749, 127
    %v3751 = vshll.u32 %v3750, 23
    %v3752 = vor.u32 4788187, %v3751
    %v3753 = vand.u32 2147483647, %v3752
    %v3755 = vcvt.s32.f32 %v3748
    %v3756 = vmul.f32 %v3755, %v3753
    %v3757 = vxor.u32 %v3756, 2147483648
    %v3758 = vsel %vm3675, %v3757, %v3756
    %v3759 = vsub.s32 4, %v3735
    %v3760 = vsel %vm3675, %v3759, %v3735
    %v3761 = vsel %vm3674, %v3361, %v3758
    %v3762 = vsel %vm3674, 0, %v3760
    %v3763 = vcosq.f32.pop %v3761
    %v3764 = vsinq.f32.pop %v3761
    %vm3765 = vweird.f32 %v3361
    %v3766 = vand.u32 %v3762, 3
    %vm3767 = vcmp.lt.s32.totalorder %v3766, 2
    %vm3768 = vcmp.eq.s32.totalorder %v3766, 0
    %v3769 = vxor.u32 %v3764, 2147483648
    %v3770 = vsel %vm3768, %v3763, %v3769
    %vm3771 = vcmp.eq.s32.totalorder %v3766, 2
    %v3772 = vxor.u32 %v3763, 2147483648
    %v3773 = vsel %vm3771, %v3772, %v3764
    %v3774 = vsel %vm3767, %v3770, %v3773
    %v3775 = vsel %vm3765, nan, %v3774
    %v3776 = vmul.f32 %v32, 512.0
    %v3777 = vmul.f32 %v33, 512.0
    %v3778 = vand.u32 2147483647, %v3776
    %vm3779 = vcmp.le.f32.partialorder %v3778, 0.7853982
    %vm3780 = vcmp.lt.s32.totalorder %v3776, 0
    %v3781 = vand.u32 %v3776, 2139095040
    %v3782 = vshrl.u32 %v3781, 23
    %v3783 = vsub.s32 %v3782, 127
    %v3784 = vand.u32 2147483647, %v3776
    %v3785 = vand.u32 %v3784, 8388607
    %v3786 = vor.u32 %v3785, 8388608
    %v3787 = vsub.s32 0, %v3786
    %v3788 = vadd.s32 %v3783, 1
    %vm3789 = vcmp.gt.s32.totalorder %v3788, 0
    %v3790 = vsel %vm3789, %v3788, 0
    %v3791 = vshrl.u32 %v3790, 5
    %v3792 = vand.u32 %v3790, 31
    %v3793 = vsub.s32 32, %v3792
    %v3794 = vshrl.u32 683565275, %v3793
    %v3795 = vshll.u32 683565275, %v3792
    %v3796 = vshrl.u32 2475754826, %v3793
    %v3797 = vor.u32 %v3795, %v3796
    %v3798 = vshll.u32 2475754826, %v3792
    %v3799 = vshrl.u32 2131351028, %v3793
    %v3800 = vor.u32 %v3798, %v3799
    %v3801 = vshll.u32 2131351028, %v3792
    %v3802 = vshrl.u32 2102212464, %v3793
    %v3803 = vor.u32 %v3801, %v3802
    %v3804 = vshll.u32 2102212464, %v3792
    %v3805 = vshrl.u32 920167782, %v3793
    %v3806 = vor.u32 %v3804, %v3805
    %v3807 = vshll.u32 920167782, %v3792
    %v3808 = vshrl.u32 1326507024, %v3793
    %v3809 = vor.u32 %v3807, %v3808
    %vm3810 = vcmp.lt.s32.totalorder %v3791, 1
    %vm3811 = vcmp.lt.s32.totalorder %v3791, 2
    %vm3812 = vcmp.lt.s32.totalorder %v3791, 3
    %vm3813 = vcmp.lt.s32.totalorder %v3791, 4
    %v3814 = vsel %vm3810, %v3794, %v3797
    %v3815 = vsel %vm3813, %v3803, 2102212464
    %v3816 = vsel %vm3812, %v3800, %v3815
    %v3817 = vsel %vm3811, %v3814, %v3816
    %v3818 = vsel %vm3810, %v3797, %v3800
    %v3819 = vsel %vm3813, %v3806, 920167782
    %v3820 = vsel %vm3812, %v3803, %v3819
    %v3821 = vsel %vm3811, %v3818, %v3820
    %v3822 = vsel %vm3810, %v3800, %v3803
    %v3823 = vsel %vm3813, %v3809, 1326507024
    %v3824 = vsel %vm3812, %v3806, %v3823
    %v3825 = vsel %vm3811, %v3822, %v3824
    %v3826 = vshll.u32 %v3786, 8
    %v3827 = vmul.u32.u64.compose %v3826, %v3825
    %v3828 = vextract.low.u32 %v3827
    %v3829 = vextract.high.u32 %v3827
    %v3830 = vmul.u32.u64.compose %v3826, %v3821
    %v3831 = vextract.low.u32 %v3830
    %v3832 = vextract.high.u32 %v3830
    %v3833 = vmul.u32 %v3826, %v3817
    %v3834 = vadd.s32 %v3829, %v3831
    %vm3835 = vc.u32 %v3829, %v3831
    %v3836 = vadd.s32 %v3832, 1
    %v3837 = vsel %vm3835, %v3836, %v3832
    %v3838 = vadd.s32 %v3833, %v3837
    %v3839 = vadd.s32 %v3838, 536870912
    %v3840 = vshrl.u32 %v3839, 30
    %v3841 = vshll.u32 %v3840, 30
    %v3842 = vsub.s32 %v3838, %v3841
    %vm3843 = vcmp.lt.s32.totalorder %v3842, 0
    %v3844 = vsub.s32 0, %v3842
    %v3845 = vsel %vm3843, %v3844, %v3842
    %v3846 = vclz %v3845
    %v3847 = vsub.s32 %v3846, 2
    %vm3848 = vcmp.gt.s32.totalorder 0, %v3847
    %v3849 = vsel %vm3848, 0, %v3847
    %v3850 = vsub.s32 32, %v3849
    %v3851 = vshll.u32 %v3842, %v3849
    %v3852 = vshrl.u32 %v3834, %v3850
    %v3853 = vor.u32 %v3851, %v3852
    %v3854 = vsub.s32 4294967266, %v3849
    %v3855 = vadd.s32 %v3854, 127
    %v3856 = vshll.u32 %v3855, 23
    %v3857 = vor.u32 4788187, %v3856
    %v3858 = vand.u32 2147483647, %v3857
    %v3860 = vcvt.s32.f32 %v3853
    %v3861 = vmul.f32 %v3860, %v3858
    %v3862 = vxor.u32 %v3861, 2147483648
    %v3863 = vsel %vm3780, %v3862, %v3861
    %v3864 = vsub.s32 4, %v3840
    %v3865 = vsel %vm3780, %v3864, %v3840
    %v3866 = vsel %vm3779, %v3776, %v3863
    %v3867 = vsel %vm3779, 0, %v3865
    %v3868 = vcosq.f32.pop %v3866
    %v3869 = vsinq.f32.pop %v3866
    %vm3870 = vweird.f32 %v3776
    %v3871 = vadd.s32 %v3867, 3
    %v3872 = vand.u32 %v3871, 3
    %vm3873 = vcmp.lt.s32.totalorder %v3872, 2
    %vm3874 = vcmp.eq.s32.totalorder %v3872, 0
    %v3875 = vxor.u32 %v3869, 2147483648
    %v3876 = vsel %vm3874, %v3868, %v3875
    %vm3877 = vcmp.eq.s32.totalorder %v3872, 2
    %v3878 = vxor.u32 %v3868, 2147483648
    %v3879 = vsel %vm3877, %v3878, %v3869
    %v3880 = vsel %vm3873, %v3876, %v3879
    %v3881 = vsel %vm3870, nan, %v3880
    %v3882 = vand.u32 2147483647, %v3777
    %vm3883 = vcmp.le.f32.partialorder %v3882, 0.7853982
    %vm3884 = vcmp.lt.s32.totalorder %v3777, 0
    %v3885 = vand.u32 %v3777, 2139095040
    %v3886 = vshrl.u32 %v3885, 23
    %v3887 = vsub.s32 %v3886, 127
    %v3888 = vand.u32 2147483647, %v3777
    %v3889 = vand.u32 %v3888, 8388607
    %v3890 = vor.u32 %v3889, 8388608
    %v3891 = vsub.s32 0, %v3890
    %v3892 = vadd.s32 %v3887, 1
    %vm3893 = vcmp.gt.s32.totalorder %v3892, 0
    %v3894 = vsel %vm3893, %v3892, 0
    %v3895 = vshrl.u32 %v3894, 5
    %v3896 = vand.u32 %v3894, 31
    %v3897 = vsub.s32 32, %v3896
    %v3898 = vshrl.u32 683565275, %v3897
    %v3899 = vshll.u32 683565275, %v3896
    %v3900 = vshrl.u32 2475754826, %v3897
    %v3901 = vor.u32 %v3899, %v3900
    %v3902 = vshll.u32 2475754826, %v3896
    %v3903 = vshrl.u32 2131351028, %v3897
    %v3904 = vor.u32 %v3902, %v3903
    %v3905 = vshll.u32 2131351028, %v3896
    %v3906 = vshrl.u32 2102212464, %v3897
    %v3907 = vor.u32 %v3905, %v3906
    %v3908 = vshll.u32 2102212464, %v3896
    %v3909 = vshrl.u32 920167782, %v3897
    %v3910 = vor.u32 %v3908, %v3909
    %v3911 = vshll.u32 920167782, %v3896
    %v3912 = vshrl.u32 1326507024, %v3897
    %v3913 = vor.u32 %v3911, %v3912
    %vm3914 = vcmp.lt.s32.totalorder %v3895, 1
    %vm3915 = vcmp.lt.s32.totalorder %v3895, 2
    %vm3916 = vcmp.lt.s32.totalorder %v3895, 3
    %vm3917 = vcmp.lt.s32.totalorder %v3895, 4
    %v3918 = vsel %vm3914, %v3898, %v3901
    %v3919 = vsel %vm3917, %v3907, 2102212464
    %v3920 = vsel %vm3916, %v3904, %v3919
    %v3921 = vsel %vm3915, %v3918, %v3920
    %v3922 = vsel %vm3914, %v3901, %v3904
    %v3923 = vsel %vm3917, %v3910, 920167782
    %v3924 = vsel %vm3916, %v3907, %v3923
    %v3925 = vsel %vm3915, %v3922, %v3924
    %v3926 = vsel %vm3914, %v3904, %v3907
    %v3927 = vsel %vm3917, %v3913, 1326507024
    %v3928 = vsel %vm3916, %v3910, %v3927
    %v3929 = vsel %vm3915, %v3926, %v3928
    %v3930 = vshll.u32 %v3890, 8
    %v3931 = vmul.u32.u64.compose %v3930, %v3929
    %v3932 = vextract.low.u32 %v3931
    %v3933 = vextract.high.u32 %v3931
    %v3934 = vmul.u32.u64.compose %v3930, %v3925
    %v3935 = vextract.low.u32 %v3934
    %v3936 = vextract.high.u32 %v3934
    %v3937 = vmul.u32 %v3930, %v3921
    %v3938 = vadd.s32 %v3933, %v3935
    %vm3939 = vc.u32 %v3933, %v3935
    %v3940 = vadd.s32 %v3936, 1
    %v3941 = vsel %vm3939, %v3940, %v3936
    %v3942 = vadd.s32 %v3937, %v3941
    %v3943 = vadd.s32 %v3942, 536870912
    %v3944 = vshrl.u32 %v3943, 30
    %v3945 = vshll.u32 %v3944, 30
    %v3946 = vsub.s32 %v3942, %v3945
    %vm3947 = vcmp.lt.s32.totalorder %v3946, 0
    %v3948 = vsub.s32 0, %v3946
    %v3949 = vsel %vm3947, %v3948, %v3946
    %v3950 = vclz %v3949
    %v3951 = vsub.s32 %v3950, 2
    %vm3952 = vcmp.gt.s32.totalorder 0, %v3951
    %v3953 = vsel %vm3952, 0, %v3951
    %v3954 = vsub.s32 32, %v3953
    %v3955 = vshll.u32 %v3946, %v3953
    %v3956 = vshrl.u32 %v3938, %v3954
    %v3957 = vor.u32 %v3955, %v3956
    %v3958 = vsub.s32 4294967266, %v3953
    %v3959 = vadd.s32 %v3958, 127
    %v3960 = vshll.u32 %v3959, 23
    %v3961 = vor.u32 4788187, %v3960
    %v3962 = vand.u32 2147483647, %v3961
    %v3964 = vcvt.s32.f32 %v3957
    %v3965 = vmul.f32 %v3964, %v3962
    %v3966 = vxor.u32 %v3965, 2147483648
    %v3967 = vsel %vm3884, %v3966, %v3965
    %v3968 = vsub.s32 4, %v3944
    %v3969 = vsel %vm3884, %v3968, %v3944
    %v3970 = vsel %vm3883, %v3777, %v3967
    %v3971 = vsel %vm3883, 0, %v3969
    %v3972 = vcosq.f32.pop %v3970
    %v3973 = vsinq.f32.pop %v3970
    %vm3974 = vweird.f32 %v3777
    %v3975 = vadd.s32 %v3971, 3
    %v3976 = vand.u32 %v3975, 3
    %vm3977 = vcmp.lt.s32.totalorder %v3976, 2
    %vm3978 = vcmp.eq.s32.totalorder %v3976, 0
    %v3979 = vxor.u32 %v3973, 2147483648
    %v3980 = vsel %vm3978, %v3972, %v3979
    %vm3981 = vcmp.eq.s32.totalorder %v3976, 2
    %v3982 = vxor.u32 %v3972, 2147483648
    %v3983 = vsel %vm3981, %v3982, %v3973
    %v3984 = vsel %vm3977, %v3980, %v3983
    %v3985 = vsel %vm3974, nan, %v3984
    %v3986 = vand.u32 2147483647, %v3776
    %vm3987 = vcmp.le.f32.partialorder %v3986, 0.7853982
    %vm3988 = vcmp.lt.s32.totalorder %v3776, 0
    %v3989 = vand.u32 %v3776, 2139095040
    %v3990 = vshrl.u32 %v3989, 23
    %v3991 = vsub.s32 %v3990, 127
    %v3992 = vand.u32 2147483647, %v3776
    %v3993 = vand.u32 %v3992, 8388607
    %v3994 = vor.u32 %v3993, 8388608
    %v3995 = vsub.s32 0, %v3994
    %v3996 = vadd.s32 %v3991, 1
    %vm3997 = vcmp.gt.s32.totalorder %v3996, 0
    %v3998 = vsel %vm3997, %v3996, 0
    %v3999 = vshrl.u32 %v3998, 5
    %v4000 = vand.u32 %v3998, 31
    %v4001 = vsub.s32 32, %v4000
    %v4002 = vshrl.u32 683565275, %v4001
    %v4003 = vshll.u32 683565275, %v4000
    %v4004 = vshrl.u32 2475754826, %v4001
    %v4005 = vor.u32 %v4003, %v4004
    %v4006 = vshll.u32 2475754826, %v4000
    %v4007 = vshrl.u32 2131351028, %v4001
    %v4008 = vor.u32 %v4006, %v4007
    %v4009 = vshll.u32 2131351028, %v4000
    %v4010 = vshrl.u32 2102212464, %v4001
    %v4011 = vor.u32 %v4009, %v4010
    %v4012 = vshll.u32 2102212464, %v4000
    %v4013 = vshrl.u32 920167782, %v4001
    %v4014 = vor.u32 %v4012, %v4013
    %v4015 = vshll.u32 920167782, %v4000
    %v4016 = vshrl.u32 1326507024, %v4001
    %v4017 = vor.u32 %v4015, %v4016
    %vm4018 = vcmp.lt.s32.totalorder %v3999, 1
    %vm4019 = vcmp.lt.s32.totalorder %v3999, 2
    %vm4020 = vcmp.lt.s32.totalorder %v3999, 3
    %vm4021 = vcmp.lt.s32.totalorder %v3999, 4
    %v4022 = vsel %vm4018, %v4002, %v4005
    %v4023 = vsel %vm4021, %v4011, 2102212464
    %v4024 = vsel %vm4020, %v4008, %v4023
    %v4025 = vsel %vm4019, %v4022, %v4024
    %v4026 = vsel %vm4018, %v4005, %v4008
    %v4027 = vsel %vm4021, %v4014, 920167782
    %v4028 = vsel %vm4020, %v4011, %v4027
    %v4029 = vsel %vm4019, %v4026, %v4028
    %v4030 = vsel %vm4018, %v4008, %v4011
    %v4031 = vsel %vm4021, %v4017, 1326507024
    %v4032 = vsel %vm4020, %v4014, %v4031
    %v4033 = vsel %vm4019, %v4030, %v4032
    %v4034 = vshll.u32 %v3994, 8
    %v4035 = vmul.u32.u64.compose %v4034, %v4033
    %v4036 = vextract.low.u32 %v4035
    %v4037 = vextract.high.u32 %v4035
    %v4038 = vmul.u32.u64.compose %v4034, %v4029
    %v4039 = vextract.low.u32 %v4038
    %v4040 = vextract.high.u32 %v4038
    %v4041 = vmul.u32 %v4034, %v4025
    %v4042 = vadd.s32 %v4037, %v4039
    %vm4043 = vc.u32 %v4037, %v4039
    %v4044 = vadd.s32 %v4040, 1
    %v4045 = vsel %vm4043, %v4044, %v4040
    %v4046 = vadd.s32 %v4041, %v4045
    %v4047 = vadd.s32 %v4046, 536870912
    %v4048 = vshrl.u32 %v4047, 30
    %v4049 = vshll.u32 %v4048, 30
    %v4050 = vsub.s32 %v4046, %v4049
    %vm4051 = vcmp.lt.s32.totalorder %v4050, 0
    %v4052 = vsub.s32 0, %v4050
    %v4053 = vsel %vm4051, %v4052, %v4050
    %v4054 = vclz %v4053
    %v4055 = vsub.s32 %v4054, 2
    %vm4056 = vcmp.gt.s32.totalorder 0, %v4055
    %v4057 = vsel %vm4056, 0, %v4055
    %v4058 = vsub.s32 32, %v4057
    %v4059 = vshll.u32 %v4050, %v4057
    %v4060 = vshrl.u32 %v4042, %v4058
    %v4061 = vor.u32 %v4059, %v4060
    %v4062 = vsub.s32 4294967266, %v4057
    %v4063 = vadd.s32 %v4062, 127
    %v4064 = vshll.u32 %v4063, 23
    %v4065 = vor.u32 4788187, %v4064
    %v4066 = vand.u32 2147483647, %v4065
    %v4068 = vcvt.s32.f32 %v4061
    %v4069 = vmul.f32 %v4068, %v4066
    %v4070 = vxor.u32 %v4069, 2147483648
    %v4071 = vsel %vm3988, %v4070, %v4069
    %v4072 = vsub.s32 4, %v4048
    %v4073 = vsel %vm3988, %v4072, %v4048
    %v4074 = vsel %vm3987, %v3776, %v4071
    %v4075 = vsel %vm3987, 0, %v4073
    %v4076 = vcosq.f32.pop %v4074
    %v4077 = vsinq.f32.pop %v4074
    %vm4078 = vweird.f32 %v3776
    %v4079 = vand.u32 %v4075, 3
    %vm4080 = vcmp.lt.s32.totalorder %v4079, 2
    %vm4081 = vcmp.eq.s32.totalorder %v4079, 0
    %v4082 = vxor.u32 %v4077, 2147483648
    %v4083 = vsel %vm4081, %v4076, %v4082
    %vm4084 = vcmp.eq.s32.totalorder %v4079, 2
    %v4085 = vxor.u32 %v4076, 2147483648
    %v4086 = vsel %vm4084, %v4085, %v4077
    %v4087 = vsel %vm4080, %v4083, %v4086
    %v4088 = vsel %vm4078, nan, %v4087
    %v4089 = vand.u32 2147483647, %v3777
    %vm4090 = vcmp.le.f32.partialorder %v4089, 0.7853982
    %vm4091 = vcmp.lt.s32.totalorder %v3777, 0
    %v4092 = vand.u32 %v3777, 2139095040
    %v4093 = vshrl.u32 %v4092, 23
    %v4094 = vsub.s32 %v4093, 127
    %v4095 = vand.u32 2147483647, %v3777
    %v4096 = vand.u32 %v4095, 8388607
    %v4097 = vor.u32 %v4096, 8388608
    %v4098 = vsub.s32 0, %v4097
    %v4099 = vadd.s32 %v4094, 1
    %vm4100 = vcmp.gt.s32.totalorder %v4099, 0
    %v4101 = vsel %vm4100, %v4099, 0
    %v4102 = vshrl.u32 %v4101, 5
    %v4103 = vand.u32 %v4101, 31
    %v4104 = vsub.s32 32, %v4103
    %v4105 = vshrl.u32 683565275, %v4104
    %v4106 = vshll.u32 683565275, %v4103
    %v4107 = vshrl.u32 2475754826, %v4104
    %v4108 = vor.u32 %v4106, %v4107
    %v4109 = vshll.u32 2475754826, %v4103
    %v4110 = vshrl.u32 2131351028, %v4104
    %v4111 = vor.u32 %v4109, %v4110
    %v4112 = vshll.u32 2131351028, %v4103
    %v4113 = vshrl.u32 2102212464, %v4104
    %v4114 = vor.u32 %v4112, %v4113
    %v4115 = vshll.u32 2102212464, %v4103
    %v4116 = vshrl.u32 920167782, %v4104
    %v4117 = vor.u32 %v4115, %v4116
    %v4118 = vshll.u32 920167782, %v4103
    %v4119 = vshrl.u32 1326507024, %v4104
    %v4120 = vor.u32 %v4118, %v4119
    %vm4121 = vcmp.lt.s32.totalorder %v4102, 1
    %vm4122 = vcmp.lt.s32.totalorder %v4102, 2
    %vm4123 = vcmp.lt.s32.totalorder %v4102, 3
    %vm4124 = vcmp.lt.s32.totalorder %v4102, 4
    %v4125 = vsel %vm4121, %v4105, %v4108
    %v4126 = vsel %vm4124, %v4114, 2102212464
    %v4127 = vsel %vm4123, %v4111, %v4126
    %v4128 = vsel %vm4122, %v4125, %v4127
    %v4129 = vsel %vm4121, %v4108, %v4111
    %v4130 = vsel %vm4124, %v4117, 920167782
    %v4131 = vsel %vm4123, %v4114, %v4130
    %v4132 = vsel %vm4122, %v4129, %v4131
    %v4133 = vsel %vm4121, %v4111, %v4114
    %v4134 = vsel %vm4124, %v4120, 1326507024
    %v4135 = vsel %vm4123, %v4117, %v4134
    %v4136 = vsel %vm4122, %v4133, %v4135
    %v4137 = vshll.u32 %v4097, 8
    %v4138 = vmul.u32.u64.compose %v4137, %v4136
    %v4139 = vextract.low.u32 %v4138
    %v4140 = vextract.high.u32 %v4138
    %v4141 = vmul.u32.u64.compose %v4137, %v4132
    %v4142 = vextract.low.u32 %v4141
    %v4143 = vextract.high.u32 %v4141
    %v4144 = vmul.u32 %v4137, %v4128
    %v4145 = vadd.s32 %v4140, %v4142
    %vm4146 = vc.u32 %v4140, %v4142
    %v4147 = vadd.s32 %v4143, 1
    %v4148 = vsel %vm4146, %v4147, %v4143
    %v4149 = vadd.s32 %v4144, %v4148
    %v4150 = vadd.s32 %v4149, 536870912
    %v4151 = vshrl.u32 %v4150, 30
    %v4152 = vshll.u32 %v4151, 30
    %v4153 = vsub.s32 %v4149, %v4152
    %vm4154 = vcmp.lt.s32.totalorder %v4153, 0
    %v4155 = vsub.s32 0, %v4153
    %v4156 = vsel %vm4154, %v4155, %v4153
    %v4157 = vclz %v4156
    %v4158 = vsub.s32 %v4157, 2
    %vm4159 = vcmp.gt.s32.totalorder 0, %v4158
    %v4160 = vsel %vm4159, 0, %v4158
    %v4161 = vsub.s32 32, %v4160
    %v4162 = vshll.u32 %v4153, %v4160
    %v4163 = vshrl.u32 %v4145, %v4161
    %v4164 = vor.u32 %v4162, %v4163
    %v4165 = vsub.s32 4294967266, %v4160
    %v4166 = vadd.s32 %v4165, 127
    %v4167 = vshll.u32 %v4166, 23
    %v4168 = vor.u32 4788187, %v4167
    %v4169 = vand.u32 2147483647, %v4168
    %v4171 = vcvt.s32.f32 %v4164
    %v4172 = vmul.f32 %v4171, %v4169
    %v4173 = vxor.u32 %v4172, 2147483648
    %v4174 = vsel %vm4091, %v4173, %v4172
    %v4175 = vsub.s32 4, %v4151
    %v4176 = vsel %vm4091, %v4175, %v4151
    %v4177 = vsel %vm4090, %v3777, %v4174
    %v4178 = vsel %vm4090, 0, %v4176
    %v4179 = vcosq.f32.pop %v4177
    %v4180 = vsinq.f32.pop %v4177
    %vm4181 = vweird.f32 %v3777
    %v4182 = vand.u32 %v4178, 3
    %vm4183 = vcmp.lt.s32.totalorder %v4182, 2
    %vm4184 = vcmp.eq.s32.totalorder %v4182, 0
    %v4185 = vxor.u32 %v4180, 2147483648
    %v4186 = vsel %vm4184, %v4179, %v4185
    %vm4187 = vcmp.eq.s32.totalorder %v4182, 2
    %v4188 = vxor.u32 %v4179, 2147483648
    %v4189 = vsel %vm4187, %v4188, %v4180
    %v4190 = vsel %vm4183, %v4186, %v4189
    %v4191 = vsel %vm4181, nan, %v4190
    %4194 = vrot.lane.b32.xlu0 %v32, 32
    %v4195 = vpop.permute.xlu0 %4194
    %4196 = vrot.lane.b32.xlu0 %v33, 32
    %v4197 = vpop.permute.xlu0 %4196
    %4202 = vrot.lane.b32.xlu0 %v137, 36
    %v4203 = vpop.permute.xlu0 %4202
    %4204 = vrot.lane.b32.xlu0 %v241, 36
    %v4205 = vpop.permute.xlu0 %4204
    %4210 = vrot.lane.b32.xlu0 %v344, 40
    %v4211 = vpop.permute.xlu0 %4210
    %4212 = vrot.lane.b32.xlu0 %v447, 40
    %v4213 = vpop.permute.xlu0 %4212
    %4218 = vrot.lane.b32.xlu0 %v553, 44
    %v4219 = vpop.permute.xlu0 %4218
    %4220 = vrot.lane.b32.xlu0 %v657, 44
    %v4221 = vpop.permute.xlu0 %4220
    %4226 = vrot.lane.b32.xlu0 %v760, 48
    %v4227 = vpop.permute.xlu0 %4226
    %4228 = vrot.lane.b32.xlu0 %v863, 48
    %v4229 = vpop.permute.xlu0 %4228
    %4234 = vrot.lane.b32.xlu0 %v969, 52
    %v4235 = vpop.permute.xlu0 %4234
    %4236 = vrot.lane.b32.xlu0 %v1073, 52
    %v4237 = vpop.permute.xlu0 %4236
    %4242 = vrot.lane.b32.xlu0 %v1176, 56
    %v4243 = vpop.permute.xlu0 %4242
    %4244 = vrot.lane.b32.xlu0 %v1279, 56
    %v4245 = vpop.permute.xlu0 %4244
    %4250 = vrot.lane.b32.xlu0 %v1385, 60
    %v4251 = vpop.permute.xlu0 %4250
    %4252 = vrot.lane.b32.xlu0 %v1489, 60
    %v4253 = vpop.permute.xlu0 %4252
    %4258 = vrot.lane.b32.xlu0 %v1592, 64
    %v4259 = vpop.permute.xlu0 %4258
    %4260 = vrot.lane.b32.xlu0 %v1695, 64
    %v4261 = vpop.permute.xlu0 %4260
    %4266 = vrot.lane.b32.xlu0 %v1801, 68
    %v4267 = vpop.permute.xlu0 %4266
    %4268 = vrot.lane.b32.xlu0 %v1905, 68
    %v4269 = vpop.permute.xlu0 %4268
    %4274 = vrot.lane.b32.xlu0 %v2008, 72
    %v4275 = vpop.permute.xlu0 %4274
    %4276 = vrot.lane.b32.xlu0 %v2111, 72
    %v4277 = vpop.permute.xlu0 %4276
    %4282 = vrot.lane.b32.xlu0 %v2217, 76
    %v4283 = vpop.permute.xlu0 %4282
    %4284 = vrot.lane.b32.xlu0 %v2321, 76
    %v4285 = vpop.permute.xlu0 %4284
    %4290 = vrot.lane.b32.xlu0 %v2424, 80
    %v4291 = vpop.permute.xlu0 %4290
    %4292 = vrot.lane.b32.xlu0 %v2527, 80
    %v4293 = vpop.permute.xlu0 %4292
    %4298 = vrot.lane.b32.xlu0 %v2633, 84
    %v4299 = vpop.permute.xlu0 %4298
    %4300 = vrot.lane.b32.xlu0 %v2737, 84
    %v4301 = vpop.permute.xlu0 %4300
    %4306 = vrot.lane.b32.xlu0 %v2840, 88
    %v4307 = vpop.permute.xlu0 %4306
    %4308 = vrot.lane.b32.xlu0 %v2943, 88
    %v4309 = vpop.permute.xlu0 %4308
    %vm4312 = vcmask 261120
    %v4313 = vsel %vm4312, %v30, %v4195
    %v4314 = vsel %vm4312, %v31, %v4197
    %vm4315 = vcmask 293888
    %v4316 = vsel %vm4315, %v4313, %v4203
    %v4317 = vsel %vm4315, %v4314, %v4205
    %vm4318 = vcmask 326656
    %v4319 = vsel %vm4318, %v4316, %v4211
    %v4320 = vsel %vm4318, %v4317, %v4213
    %vm4321 = vcmask 359424
    %v4322 = vsel %vm4321, %v4319, %v4219
    %v4323 = vsel %vm4321, %v4320, %v4221
    %vm4324 = vcmask 392192
    %v4325 = vsel %vm4324, %v4322, %v4227
    %v4326 = vsel %vm4324, %v4323, %v4229
    %vm4327 = vcmask 424960
    %v4328 = vsel %vm4327, %v4325, %v4235
    %v4329 = vsel %vm4327, %v4326, %v4237
    %vm4330 = vcmask 457728
    %v4331 = vsel %vm4330, %v4328, %v4243
    %v4332 = vsel %vm4330, %v4329, %v4245
    %vm4333 = vcmask 490496
    %v4334 = vsel %vm4333, %v4331, %v4251
    %v4335 = vsel %vm4333, %v4332, %v4253
    %vm4336 = vcmask 523264
    %v4337 = vsel %vm4336, %v4334, %v4259
    %v4338 = vsel %vm4336, %v4335, %v4261
    %vm4339 = vcmask 556032
    %v4340 = vsel %vm4339, %v4337, %v4267
    %v4341 = vsel %vm4339, %v4338, %v4269
    %vm4342 = vcmask 588800
    %v4343 = vsel %vm4342, %v4340, %v4275
    %v4344 = vsel %vm4342, %v4341, %v4277
    %vm4345 = vcmask 621568
    %v4346 = vsel %vm4345, %v4343, %v4283
    %v4347 = vsel %vm4345, %v4344, %v4285
    %vm4348 = vcmask 654336
    %v4349 = vsel %vm4348, %v4346, %v4291
    %v4350 = vsel %vm4348, %v4347, %v4293
    %vm4351 = vcmask 687104
    %v4352 = vsel %vm4351, %v4349, %v4299
    %v4353 = vsel %vm4351, %v4350, %v4301
    %vm4354 = vcmask 719872
    %v4355 = vsel %vm4354, %v4352, %v4307
    %v4356 = vsel %vm4354, %v4353, %v4309
    %4359 = vrot.lane.b32.xlu0 %v3256, 4
    %v4360 = vpop.permute.xlu0 %4359
    %4361 = vrot.lane.b32.xlu0 %v3359, 4
    %v4362 = vpop.permute.xlu0 %4361
    %4367 = vrot.lane.b32.xlu0 %v3465, 8
    %v4368 = vpop.permute.xlu0 %4367
    %4369 = vrot.lane.b32.xlu0 %v3569, 8
    %v4370 = vpop.permute.xlu0 %4369
    %4375 = vrot.lane.b32.xlu0 %v3672, 12
    %v4376 = vpop.permute.xlu0 %4375
    %4377 = vrot.lane.b32.xlu0 %v3775, 12
    %v4378 = vpop.permute.xlu0 %4377
    %4383 = vrot.lane.b32.xlu0 %v3881, 16
    %v4384 = vpop.permute.xlu0 %4383
    %4385 = vrot.lane.b32.xlu0 %v3985, 16
    %v4386 = vpop.permute.xlu0 %4385
    %4391 = vrot.lane.b32.xlu0 %v4088, 20
    %v4392 = vpop.permute.xlu0 %4391
    %4393 = vrot.lane.b32.xlu0 %v4191, 20
    %v4394 = vpop.permute.xlu0 %4393
    %vm4397 = vcmask 31744
    %v4398 = vsel %vm4397, %v3049, %v4360
    %v4399 = vsel %vm4397, %v3153, %v4362
    %vm4400 = vcmask 64512
    %v4401 = vsel %vm4400, %v4398, %v4368
    %v4402 = vsel %vm4400, %v4399, %v4370
    %vm4403 = vcmask 97280
    %v4404 = vsel %vm4403, %v4401, %v4376
    %v4405 = vsel %vm4403, %v4402, %v4378
    %vm4406 = vcmask 130048
    %v4407 = vsel %vm4406, %v4404, %v4384
    %v4408 = vsel %vm4406, %v4405, %v4386
    %vm4409 = vcmask 162816
    %v4410 = vsel %vm4409, %v4407, %v4392
    %v4411 = vsel %vm4409, %v4408, %v4394
    %vm4412 = vcmask 195584
    %v4413 = vsel %vm4412, %v4410, 0.0
    %v4414 = vsel %vm4412, %v4411, 0.0
    %4417 = vrot.lane.b32.xlu0 %v4413, 92
    %v4418 = vpop.permute.xlu0 %4417
    %4419 = vrot.lane.b32.xlu0 %v4414, 92
    %v4420 = vpop.permute.xlu0 %4419
    %vm4423 = vcmask 752640
    %v4424 = vsel %vm4423, %v4355, %v4418
    %v4425 = vsel %vm4423, %v4356, %v4420
    %v4426 = vld [vmem:[%s2] sm:$0xff]
    %v4427 = vld [vmem:[%s2 + $0x8] sm:$0xff]
    %v4428 = vld [vmem:[%s2 + $0x10] sm:$0xff]
    %v4429 = vld [vmem:[%s2 + $0x18] sm:$0xff]
    %v4430 = vld [vmem:[%s2 + $0x20] sm:$0xff]
    %v4431 = vld [vmem:[%s2 + $0x28] sm:$0xff]
    %v4432 = vld [vmem:[%s2 + $0x30] sm:$0xff]
    %v4433 = vld [vmem:[%s2 + $0x38] sm:$0xff]
    %v4434 = vld [vmem:[%s2 + $0x40] sm:$0xff]
    %v4435 = vld [vmem:[%s2 + $0x48] sm:$0xff]
    %v4436 = vld [vmem:[%s2 + $0x50] sm:$0xff]
    %v4437 = vld [vmem:[%s2 + $0x58] sm:$0xff]
    %v4438 = vld [vmem:[%s2 + $0x60] sm:$0xff]
    %v4439 = vld [vmem:[%s2 + $0x68] sm:$0xff]
    %v4440 = vld [vmem:[%s2 + $0x70] sm:$0xff]
    %v4441 = vld [vmem:[%s2 + $0x78] sm:$0xff]
    %v4442 = vld [vmem:[%s3] sm:$0x1]
    %v4444 = vlaneseq
    %v4445 = vshrl.u32 %v4444, 7
    %v4446 = vsub.s32 0, %v4445
    %v4447 = vrot.slane %v4442, %v4446
    %4449 = vmatprep.subr.mxu0 0.0
    %4450 = vmatpush1.msra.mxu0 %v4426
    %4451 = vmatprep.subr.mxu0 0.0
    %4452 = vmatpush1.msra.mxu0 %v4427
    %4453 = vmatprep.subr.mxu0 0.0
    %4454 = vmatpush1.msra.mxu0 %v4428
    %4455 = vmatprep.subr.mxu0 0.0
    %4456 = vmatpush1.msra.mxu0 %v4429
    %4457 = vmatprep.subr.mxu0 0.0
    %4458 = vmatpush1.msra.mxu0 %v4430
    %4459 = vmatprep.subr.mxu0 0.0
    %4460 = vmatpush1.msra.mxu0 %v4431
    %4461 = vmatprep.subr.mxu0 0.0
    %4462 = vmatpush1.msra.mxu0 %v4432
    %4463 = vmatprep.subr.mxu0 0.0
    %4464 = vmatpush1.msra.mxu0 %v4433
    %4465 = vmatprep.subr.mxu0 0.0
    %4466 = vmatpush1.msra.mxu0 %v4434
    %4467 = vmatprep.subr.mxu0 0.0
    %4468 = vmatpush1.msra.mxu0 %v4435
    %4469 = vmatprep.subr.mxu0 0.0
    %4470 = vmatpush1.msra.mxu0 %v4436
    %4471 = vmatprep.subr.mxu0 0.0
    %4472 = vmatpush1.msra.mxu0 %v4437
    %4473 = vmatprep.subr.mxu0 0.0
    %4474 = vmatpush1.msra.mxu0 %v4438
    %4475 = vmatprep.subr.mxu0 0.0
    %4476 = vmatpush1.msra.mxu0 %v4439
    %4477 = vmatprep.subr.mxu0 0.0
    %4478 = vmatpush1.msra.mxu0 %v4440
    %4479 = vmatprep.subr.mxu0 0.0
    %4480 = vmatpush1.msra.mxu0 %v4441
    %4481 = vmatprep.subr.mxu0 0.0
    %4482 = vmatpush1.msra.mxu0 0.0
    %4483 = vmatprep.subr.mxu0 0.0
    %4484 = vmatpush1.msra.mxu0 0.0
    %4485 = vmatprep.subr.mxu0 0.0
    %4486 = vmatpush1.msra.mxu0 0.0
    %4487 = vmatprep.subr.mxu0 0.0
    %4488 = vmatpush1.msra.mxu0 0.0
    %4489 = vmatprep.subr.mxu0 0.0
    %4490 = vmatpush1.msra.mxu0 0.0
    %4491 = vmatprep.subr.mxu0 0.0
    %4492 = vmatpush1.msra.mxu0 0.0
    %4493 = vmatprep.subr.mxu0 0.0
    %4494 = vmatpush1.msra.mxu0 0.0
    %4495 = vmatprep.subr.mxu0 0.0
    %4496 = vmatpush1.msra.mxu0 0.0
    %4497 = vmatprep.subr.mxu0 0.0
    %4498 = vmatpush1.msra.mxu0 0.0
    %4499 = vmatprep.subr.mxu0 0.0
    %4500 = vmatpush1.msra.mxu0 0.0
    %4501 = vmatprep.subr.mxu0 0.0
    %4502 = vmatpush1.msra.mxu0 0.0
    %4503 = vmatprep.subr.mxu0 0.0
    %4504 = vmatpush1.msra.mxu0 0.0
    %4505 = vmatprep.subr.mxu0 0.0
    %4506 = vmatpush1.msra.mxu0 0.0
    %4507 = vmatprep.subr.mxu0 0.0
    %4508 = vmatpush1.msra.mxu0 0.0
    %4509 = vmatprep.subr.mxu0 0.0
    %4510 = vmatpush1.msra.mxu0 0.0
    %4511 = vmatprep.subr.mxu0 0.0
    %4512 = vmatpush1.msra.mxu0 0.0
    %4513 = vmatprep.mubr.f32.mxu0 0.0
    %4514 = vmatmul.mubr.f32.gmra.mrb[0].mxu0 %v4424
    %v4515 = vpop.f32.mrb[0].mxu0
    %v4516 = vadd.f32 %v4447, %v4515
    %v4517 = vpop.f32.mrb[0].mxu0
    %4518 = vmatprep.mubr.f32.mxu0 0.0
    %4519 = vmatmul.mubr.f32.gmra.mrb[0].mxu0 %v4425
    %v4520 = vpop.f32.mrb[0].mxu0
    %v4521 = vadd.f32 %v4447, %v4520
    %v4522 = vpop.f32.mrb[0].mxu0
    %4523 = vdwg.mxu0
    %v4524 = vsel %vm4336, %v4516, 0.0
    %4525 = vadd.xlane.f32.xlu0 %v4524
    %v4526 = vpop.xlane.xlu0 %4525
    %v4527 = vsel %vm4336, %v4521, 0.0
    %4528 = vadd.xlane.f32.xlu0 %v4527
    %v4529 = vpop.xlane.xlu0 %4528
    %v4530 = vrcp.pop 64.0
    %v4531 = vmul.f32 %v4526, %v4530
    %v4532 = vmul.f32 %v4529, %v4530
    %v4533 = vmul.f32 %v4516, %v4516
    %v4534 = vmul.f32 %v4521, %v4521
    %v4535 = vsel %vm4336, %v4533, 0.0
    %4536 = vadd.xlane.f32.xlu0 %v4535
    %v4537 = vpop.xlane.xlu0 %4536
    %v4538 = vsel %vm4336, %v4534, 0.0
    %4539 = vadd.xlane.f32.xlu0 %v4538
    %v4540 = vpop.xlane.xlu0 %4539
    %v4541 = vmul.f32 %v4537, %v4530
    %v4542 = vmul.f32 %v4540, %v4530
    %v4543 = vmul.f32 %v4531, %v4531
    %v4544 = vmul.f32 %v4532, %v4532
    %v4545 = vsub.f32 %v4541, %v4543
    %v4546 = vsub.f32 %v4542, %v4544
    %v4547 = vsub.f32 %v4516, %v4531
    %v4548 = vsub.f32 %v4521, %v4532
    %v4549 = vadd.f32 %v4545, 1e-05
    %v4550 = vadd.f32 %v4546, 1e-05
    %v4551 = vrsqrt.pop %v4549
    %v4552 = vrsqrt.pop %v4550
    %v4553 = vmul.f32 %v4547, %v4551
    %v4554 = vmul.f32 %v4548, %v4552
    %v4555 = vld [vmem:[%s4] sm:$0x1]
    %v4557 = vlaneseq
    %v4558 = vshrl.u32 %v4557, 7
    %v4559 = vsub.s32 0, %v4558
    %v4560 = vrot.slane %v4555, %v4559
    %v4562 = vmul.f32 %v4553, %v4560
    %v4563 = vmul.f32 %v4554, %v4560
    %v4564 = vld [vmem:[%s5] sm:$0x1]
    %v4566 = vlaneseq
    %v4567 = vshrl.u32 %v4566, 7
    %v4568 = vsub.s32 0, %v4567
    %v4569 = vrot.slane %v4564, %v4568
    %v4571 = vadd.f32 %v4562, %v4569
    %v4572 = vadd.f32 %v4563, %v4569
    %v4573 = vmax.f32 %v4571, 0.0
    %v4574 = vmax.f32 %v4572, 0.0
    %v4575 = vld [vmem:[%s6] sm:$0xff]
    %v4576 = vld [vmem:[%s6 + $0x8] sm:$0xff]
    %v4577 = vld [vmem:[%s6 + $0x10] sm:$0xff]
    %v4578 = vld [vmem:[%s6 + $0x18] sm:$0xff]
    %v4579 = vld [vmem:[%s6 + $0x20] sm:$0xff]
    %v4580 = vld [vmem:[%s6 + $0x28] sm:$0xff]
    %v4581 = vld [vmem:[%s6 + $0x30] sm:$0xff]
    %v4582 = vld [vmem:[%s6 + $0x38] sm:$0xff]
    %v4583 = vld [vmem:[%s7] sm:$0x1]
    %v4585 = vlaneseq
    %v4586 = vshrl.u32 %v4585, 7
    %v4587 = vsub.s32 0, %v4586
    %v4588 = vrot.slane %v4583, %v4587
    %v4591 = vsel %vm4336, %v4573, 0
    %v4594 = vsel %vm4336, %v4574, 0
    %4596 = vmatprep.subr.mxu0 0.0
    %4597 = vmatpush1.msra.mxu0 %v4575
    %4598 = vmatprep.subr.mxu0 0.0
    %4599 = vmatpush1.msra.mxu0 %v4576
    %4600 = vmatprep.subr.mxu0 0.0
    %4601 = vmatpush1.msra.mxu0 %v4577
    %4602 = vmatprep.subr.mxu0 0.0
    %4603 = vmatpush1.msra.mxu0 %v4578
    %4604 = vmatprep.subr.mxu0 0.0
    %4605 = vmatpush1.msra.mxu0 %v4579
    %4606 = vmatprep.subr.mxu0 0.0
    %4607 = vmatpush1.msra.mxu0 %v4580
    %4608 = vmatprep.subr.mxu0 0.0
    %4609 = vmatpush1.msra.mxu0 %v4581
    %4610 = vmatprep.subr.mxu0 0.0
    %4611 = vmatpush1.msra.mxu0 %v4582
    %4612 = vmatprep.subr.mxu0 0.0
    %4613 = vmatpush1.msra.mxu0 0.0
    %4614 = vmatprep.subr.mxu0 0.0
    %4615 = vmatpush1.msra.mxu0 0.0
    %4616 = vmatprep.subr.mxu0 0.0
    %4617 = vmatpush1.msra.mxu0 0.0
    %4618 = vmatprep.subr.mxu0 0.0
    %4619 = vmatpush1.msra.mxu0 0.0
    %4620 = vmatprep.subr.mxu0 0.0
    %4621 = vmatpush1.msra.mxu0 0.0
    %4622 = vmatprep.subr.mxu0 0.0
    %4623 = vmatpush1.msra.mxu0 0.0
    %4624 = vmatprep.subr.mxu0 0.0
    %4625 = vmatpush1.msra.mxu0 0.0
    %4626 = vmatprep.subr.mxu0 0.0
    %4627 = vmatpush1.msra.mxu0 0.0
    %4628 = vmatprep.subr.mxu0 0.0
    %4629 = vmatpush1.msra.mxu0 0.0
    %4630 = vmatprep.subr.mxu0 0.0
    %4631 = vmatpush1.msra.mxu0 0.0
    %4632 = vmatprep.subr.mxu0 0.0
    %4633 = vmatpush1.msra.mxu0 0.0
    %4634 = vmatprep.subr.mxu0 0.0
    %4635 = vmatpush1.msra.mxu0 0.0
    %4636 = vmatprep.subr.mxu0 0.0
    %4637 = vmatpush1.msra.mxu0 0.0
    %4638 = vmatprep.subr.mxu0 0.0
    %4639 = vmatpush1.msra.mxu0 0.0
    %4640 = vmatprep.subr.mxu0 0.0
    %4641 = vmatpush1.msra.mxu0 0.0
    %4642 = vmatprep.subr.mxu0 0.0
    %4643 = vmatpush1.msra.mxu0 0.0
    %4644 = vmatprep.subr.mxu0 0.0
    %4645 = vmatpush1.msra.mxu0 0.0
    %4646 = vmatprep.subr.mxu0 0.0
    %4647 = vmatpush1.msra.mxu0 0.0
    %4648 = vmatprep.subr.mxu0 0.0
    %4649 = vmatpush1.msra.mxu0 0.0
    %4650 = vmatprep.subr.mxu0 0.0
    %4651 = vmatpush1.msra.mxu0 0.0
    %4652 = vmatprep.subr.mxu0 0.0
    %4653 = vmatpush1.msra.mxu0 0.0
    %4654 = vmatprep.subr.mxu0 0.0
    %4655 = vmatpush1.msra.mxu0 0.0
    %4656 = vmatprep.subr.mxu0 0.0
    %4657 = vmatpush1.msra.mxu0 0.0
    %4658 = vmatprep.subr.mxu0 0.0
    %4659 = vmatpush1.msra.mxu0 0.0
    %4660 = vmatprep.mubr.f32.mxu0 0.0
    %4661 = vmatmul.mubr.f32.gmra.mrb[0].mxu0 %v4591
    %v4662 = vpop.f32.mrb[0].mxu0
    %v4663 = vadd.f32 %v4588, %v4662
    %v4664 = vpop.f32.mrb[0].mxu0
    %4665 = vmatprep.mubr.f32.mxu0 0.0
    %4666 = vmatmul.mubr.f32.gmra.mrb[0].mxu0 %v4594
    %v4667 = vpop.f32.mrb[0].mxu0
    %v4668 = vadd.f32 %v4588, %v4667
    %v4669 = vpop.f32.mrb[0].mxu0
    %4670 = vdwg.mxu0
    %v4671 = vadd.f32 %v4663, %v30
    %v4672 = vadd.f32 %v4668, %v31
    %4673 = vst.msk [vmem:[#allocation2] sm:$0xff] %vm4312, %v4671
    %4674 = vst.msk [vmem:[#allocation2 + $0x8] sm:$0xff] %vm4312, %v4672
    // Predicated region
    $region34: #{tpu_custom_call.1} parent=1 // pred_check
      _
    $region35: #{tpu_custom_call.1} parent=1 // pred_check_branch
      %4676 = sbr.rel (0) target = $region37
    $region36: #{tpu_custom_call.1} parent=1 // pred_region
      %s4678 = ssub.s32 256, 256
      %4679 = vsyncadd [#allocation3], %s4678
      %s4680 = sshll.u32 [#allocation2], 4
      %s4681 = int_to_ptr.vmem [resolvable:$true] %s4680
      %4686 = dma.vmem_to_hbm [thread:$0]  %s4681, 256, %s8, [#allocation3], 128, 128, 8
    $region37: #{tpu_custom_call.1} parent=1 // pred_fallthru
      _
    // Predicated region
    $region38: #{tpu_custom_call.1} parent=1 // pred_check
      _
    $region39: #{tpu_custom_call.1} parent=1 // pred_check_branch
      %4688 = sbr.rel (0) target = $region41
    $region40: #{tpu_custom_call.1} parent=1 // pred_region
      %4689 = dma.done [#allocation3], 256
    $region41: #{tpu_custom_call.1} parent=1 // pred_fallthru
      _
    %4690 = vsyncpa [#allocation3], 1

</llo_original>
